<compile_context>
chip_gen: v7x
topology: tpu7x:2x2x1
jax: 0.10.0
libtpu: 0.0.40
codegen_flags: <defaults>
</compile_context>

<pallas_src>
import math

import jax
import jax.numpy as jnp
import numpy as np
from jax.experimental import pallas as pl
from jax.experimental.pallas import tpu as pltpu

# Small, self-consistent problem sizes.
BATCH = 2
SEQ = 16
D_MODEL = 32
N_HEADS = 4
D_FF = 64
N_LAYERS = 2
EPS = 1e-5  # nn.LayerNorm default

_PARAM_ORDER = ("wqkv", "bqkv", "wo", "bo", "g1", "be1",
                "w1", "bf1", "w2", "bf2", "g2", "be2")


# ----------------------------- shared math -----------------------------------


def _layernorm(z, g, b):
    # Single-pass variance: E[x^2] - mu^2 (one cross-lane reduction saved).
    mu = jnp.mean(z, axis=-1, keepdims=True)
    ms = jnp.mean(z * z, axis=-1, keepdims=True)
    var = jnp.maximum(ms - mu * mu, 0.0)
    return (z - mu) * jax.lax.rsqrt(var + EPS) * g + b


# ----------------------------- kernel ----------------------------------------


def make_encoder_kernel(n_layers, n_heads, seq, d_model, output_attention):
    """Fused encoder kernel: one batch element per grid step, all layers inside."""
    H, L, D = n_heads, seq, d_model
    dk = D // H
    scale = 1.0 / math.sqrt(dk)

    def kernel(x_ref, wqkv_ref, bqkv_ref, wo_ref, bo_ref,
               g1_ref, be1_ref, w1_ref, bf1_ref, w2_ref, bf2_ref,
               g2_ref, be2_ref, gf_ref, betaf_ref, *out_refs):
        out_ref = out_refs[0]
        attn_refs = out_refs[1:] if output_attention else ()

        x = x_ref[...].astype(jnp.float32)                # (L, D) for this batch

        for l in range(n_layers):                         # static unroll over layers
            # Fused Q/K/V projection: one MXU push with K = D, N = 3*D.
            qkv = (jnp.dot(x, wqkv_ref[l], preferred_element_type=jnp.float32)
                   + bqkv_ref[l])                         # (L, 3D)

            # Head-major (H, L, dk) operands for head-batched matmuls.
            q = jnp.stack([qkv[:, h * dk:(h + 1) * dk] for h in range(H)], axis=0)
            k = jnp.stack([qkv[:, D + h * dk:D + (h + 1) * dk]
                           for h in range(H)], axis=0)
            v = jnp.stack([qkv[:, 2 * D + h * dk:2 * D + (h + 1) * dk]
                           for h in range(H)], axis=0)

            # Scores batched over heads (contract last dims -> no explicit K^T).
            s = jax.lax.dot_general(
                q, k, (((2,), (2,)), ((0,), (0,))),
                preferred_element_type=jnp.float32) * scale           # (H, L, L)
            s = s - jnp.max(s, axis=-1, keepdims=True)
            e = jnp.exp(s)
            denom = jnp.sum(e, axis=-1, keepdims=True)
            if output_attention:
                a = e / denom                              # exact weights for output
                attn_refs[l][0] = a.astype(attn_refs[l].dtype)
            else:
                a = e * pl.reciprocal(denom, approx=True)  # EUP slot, fast path

            # A @ V batched over heads.
            ov = jax.lax.dot_general(
                a, v, (((2,), (1,)), ((0,), (0,))),
                preferred_element_type=jnp.float32)                    # (H, L, dk)

            # Lane-concat heads back to (L, D), then a single full-depth (K=D)
            # output projection (instead of H tiny K=dk matmuls).
            o = jnp.concatenate([ov[h] for h in range(H)], axis=-1)    # (L, D)
            new_x = (jnp.dot(o, wo_ref[l], preferred_element_type=jnp.float32)
                     + bo_ref[l])

            # x = x + dropout(new_x); y = x = norm1(x)   (dropout == identity)
            xn = _layernorm(x + new_x, g1_ref[l], be1_ref[l])

            # FFN: Conv1d(d_model, d_ff, 1) -> relu -> Conv1d(d_ff, d_model, 1)
            y = jnp.dot(xn, w1_ref[l], preferred_element_type=jnp.float32) + bf1_ref[l]
            y = jnp.maximum(y, 0.0)
            y = jnp.dot(y, w2_ref[l], preferred_element_type=jnp.float32) + bf2_ref[l]

            # norm2(x + y)
            x = _layernorm(xn + y, g2_ref[l], be2_ref[l])

        # final Encoder LayerNorm
        x = _layernorm(x, gf_ref[...], betaf_ref[...])
        out_ref[...] = x.astype(out_ref.dtype)

    return kernel


# ----------------------------- wrapper ----------------------------------------


def _vmem_budget_bytes(args, out_shapes):
    def nbytes(a):
        return int(np.prod(a.shape)) * jnp.dtype(a.dtype).itemsize
    total = sum(nbytes(a) for a in args) + sum(nbytes(s) for s in out_shapes)
    # double-buffered pipeline buffers + headroom for in-kernel temporaries
    return int(min(2 * total + (4 << 20), 128 << 20))


def encoder_forward(x, stacked_layers, norm_params, attn_mask=None,
                    output_attention=False):
    """Mirrors Encoder.forward (conv_layers=None branch): returns (x, attns).

    The encoder self-attention is FullAttention(mask_flag=False); a non-None
    attn_mask is rejected rather than silently ignored.  With
    output_attention=False (Informer default) attention weights are never
    materialized and attns is a list of None, like the PyTorch module.
    """
    if attn_mask is not None:
        raise NotImplementedError("attn_mask is not supported (mask_flag=False).")

    B, L, D = x.shape
    H = N_HEADS
    n_layers = stacked_layers["wqkv"].shape[0]

    x_flat = x.reshape(B * L, D)                      # free reshape outside kernel
    weight_args = [stacked_layers[k] for k in _PARAM_ORDER]
    weight_args += [norm_params[0], norm_params[1]]
    args = [x_flat] + weight_args

    out_shapes = [jax.ShapeDtypeStruct((B * L, D), x.dtype)]
    if output_attention:
        out_shapes += [jax.ShapeDtypeStruct((B, H, L, L), jnp.float32)
                       for _ in range(n_layers)]

    # x: one (L, D) slab per grid step (one batch element per step).
    in_specs = [pl.BlockSpec((L, D), lambda b: (b, 0))]
    # Weights: full arrays with a constant block index across the batch grid
    # (Pallas skips the re-DMA when the block index does not change).
    for a in weight_args:
        in_specs.append(pl.BlockSpec(a.shape, lambda b, _nd=a.ndim: (0,) * _nd))

    out_specs = [pl.BlockSpec((L, D), lambda b: (b, 0))]
    if output_attention:
        out_specs += [pl.BlockSpec((1, H, L, L), lambda b: (b, 0, 0, 0))
                      for _ in range(n_layers)]

    kernel = make_encoder_kernel(n_layers, H, L, D, output_attention)
    outs = pl.pallas_call(
        kernel,
        grid=(B,),
        out_shape=tuple(out_shapes),
        in_specs=in_specs,
        out_specs=tuple(out_specs),
        compiler_params=pltpu.CompilerParams(
            dimension_semantics=("parallel",),   # batch is independent -> 2nd TC on v7x
            vmem_limit_bytes=_vmem_budget_bytes(args, out_shapes)),
    )(*args)

    y = outs[0].reshape(B, L, D)
    attns = list(outs[1:]) if output_attention else [None] * n_layers
    return y, attns


# ----------------------------- reference (pure JAX) ---------------------------


def encoder_reference(x, per_layer_params, norm_params):
    B, L, D = x.shape
    H, dk = N_HEADS, D // N_HEADS
    attns = []
    for p in per_layer_params:
        qkv = x @ p["wqkv"] + p["bqkv"]               # (B, L, 3D)
        q, k, v = jnp.split(qkv, 3, axis=-1)
        q = q.reshape(B, L, H, dk)
        k = k.reshape(B, L, H, dk)
        v = v.reshape(B, L, H, dk)
        s = jnp.einsum("blhd,bmhd->bhlm", q, k) / math.sqrt(dk)
        a = jax.nn.softmax(s, axis=-1)
        attns.append(a)
        o = jnp.einsum("bhlm,bmhd->blhd", a, v).reshape(B, L, D)
        new_x = o @ p["wo"] + p["bo"]
        xn = _layernorm(x + new_x, p["g1"], p["be1"])
        y = jnp.maximum(xn @ p["w1"] + p["bf1"], 0.0)
        y = y @ p["w2"] + p["bf2"]
        x = _layernorm(xn + y, p["g2"], p["be2"])
    x = _layernorm(x, norm_params[0], norm_params[1])
    return x, attns


# ----------------------------- parameter init --------------------------------


def init_layer_params(key):
    keys = jax.random.split(key, 6)

    def lin(k, din, dout):
        w = jax.random.normal(k, (din, dout), jnp.float32) * (1.0 / math.sqrt(din))
        b = jnp.zeros((1, dout), jnp.float32)
        return w, b

    wq, bq = lin(keys[0], D_MODEL, D_MODEL)
    wk, bk = lin(keys[1], D_MODEL, D_MODEL)
    wv, bv = lin(keys[2], D_MODEL, D_MODEL)
    wo, bo = lin(keys[3], D_MODEL, D_MODEL)
    w1, bf1 = lin(keys[4], D_MODEL, D_FF)
    w2, bf2 = lin(keys[5], D_FF, D_MODEL)
    return {
        "wqkv": jnp.concatenate([wq, wk, wv], axis=1),   # fused QKV weight (D, 3D)
        "bqkv": jnp.concatenate([bq, bk, bv], axis=1),   # (1, 3D)
        "wo": wo, "bo": bo,
        "g1": jnp.ones((1, D_MODEL), jnp.float32),
        "be1": jnp.zeros((1, D_MODEL), jnp.float32),
        "w1": w1, "bf1": bf1, "w2": w2, "bf2": bf2,
        "g2": jnp.ones((1, D_MODEL), jnp.float32),
        "be2": jnp.zeros((1, D_MODEL), jnp.float32),
    }


def stack_layer_params(per_layer):
    return {k: jnp.stack([p[k] for p in per_layer], axis=0) for k in per_layer[0]}


if __name__ == "__main__":
    key = jax.random.PRNGKey(0)
    key, kx = jax.random.split(key)
    x = jax.random.normal(kx, (BATCH, SEQ, D_MODEL), jnp.float32)

    layer_keys = jax.random.split(key, N_LAYERS)
    per_layer = [init_layer_params(k) for k in layer_keys]
    stacked = stack_layer_params(per_layer)
    norm_params = (jnp.ones((1, D_MODEL), jnp.float32),
                   jnp.zeros((1, D_MODEL), jnp.float32))

    # Fast path (Informer default output_attention=False -> attns are None).
    out, attns = encoder_forward(x, stacked, norm_params, attn_mask=None)
    out = jax.block_until_ready(out)
    assert out.shape == (BATCH, SEQ, D_MODEL)
    assert all(a is None for a in attns)

    # Path that also materializes per-layer attention weights (exact softmax).
    out2, attns2 = encoder_forward(x, stacked, norm_params, attn_mask=None,
                                   output_attention=True)
    out2 = jax.block_until_ready(out2)
    attns2 = [jax.block_until_ready(a) for a in attns2]
    assert out2.shape == (BATCH, SEQ, D_MODEL)
    assert all(a.shape == (BATCH, N_HEADS, SEQ, SEQ) for a in attns2)

    # Numerical cross-check against a pure-JAX reference of the same module.
    ref_out, ref_attns = encoder_reference(x, per_layer, norm_params)
    np.testing.assert_allclose(np.asarray(out), np.asarray(ref_out),
                               atol=1e-2, rtol=1e-2)
    np.testing.assert_allclose(np.asarray(out2), np.asarray(ref_out),
                               atol=1e-3, rtol=1e-3)
    for a, ra in zip(attns2, ref_attns):
        np.testing.assert_allclose(np.asarray(a), np.asarray(ra),
                                   atol=1e-3, rtol=1e-3)

    print("KERNEL_OK")
</pallas_src>

<mosaic_0001>
module attributes {stable_mosaic.version = 11 : i64} {
  func.func @kernel(%arg0: i32, %arg1: memref<16x32xf32, #tpu.memory_space<vmem>>, %arg2: memref<2x32x96xf32, #tpu.memory_space<vmem>>, %arg3: memref<2x1x96xf32, #tpu.memory_space<vmem>>, %arg4: memref<2x32x32xf32, #tpu.memory_space<vmem>>, %arg5: memref<2x1x32xf32, #tpu.memory_space<vmem>>, %arg6: memref<2x1x32xf32, #tpu.memory_space<vmem>>, %arg7: memref<2x1x32xf32, #tpu.memory_space<vmem>>, %arg8: memref<2x32x64xf32, #tpu.memory_space<vmem>>, %arg9: memref<2x1x64xf32, #tpu.memory_space<vmem>>, %arg10: memref<2x64x32xf32, #tpu.memory_space<vmem>>, %arg11: memref<2x1x32xf32, #tpu.memory_space<vmem>>, %arg12: memref<2x1x32xf32, #tpu.memory_space<vmem>>, %arg13: memref<2x1x32xf32, #tpu.memory_space<vmem>>, %arg14: memref<1x32xf32, #tpu.memory_space<vmem>>, %arg15: memref<1x32xf32, #tpu.memory_space<vmem>>, %arg16: memref<16x32xf32, #tpu.memory_space<vmem>>) attributes {dimension_semantics = [#tpu.dimension_semantics<parallel>], iteration_bounds = array<i64: 2>, scalar_prefetch = 0 : i64, scratch_operands = 0 : i64, tpu.core_type = #tpu.core_type<tc>, window_params = [{transform_indices = @transform_0, window_bounds = array<i64: 16, 32>}, {pipeline_mode = #tpu.pipeline_mode<synchronous>, transform_indices = @transform_1, window_bounds = array<i64: 2, 32, 96>}, {pipeline_mode = #tpu.pipeline_mode<synchronous>, transform_indices = @transform_2, window_bounds = array<i64: 2, 1, 96>}, {pipeline_mode = #tpu.pipeline_mode<synchronous>, transform_indices = @transform_3, window_bounds = array<i64: 2, 32, 32>}, {pipeline_mode = #tpu.pipeline_mode<synchronous>, transform_indices = @transform_4, window_bounds = array<i64: 2, 1, 32>}, {pipeline_mode = #tpu.pipeline_mode<synchronous>, transform_indices = @transform_5, window_bounds = array<i64: 2, 1, 32>}, {pipeline_mode = #tpu.pipeline_mode<synchronous>, transform_indices = @transform_6, window_bounds = array<i64: 2, 1, 32>}, {pipeline_mode = #tpu.pipeline_mode<synchronous>, transform_indices = @transform_7, window_bounds = array<i64: 2, 32, 64>}, {pipeline_mode = #tpu.pipeline_mode<synchronous>, transform_indices = @transform_8, window_bounds = array<i64: 2, 1, 64>}, {pipeline_mode = #tpu.pipeline_mode<synchronous>, transform_indices = @transform_9, window_bounds = array<i64: 2, 64, 32>}, {pipeline_mode = #tpu.pipeline_mode<synchronous>, transform_indices = @transform_10, window_bounds = array<i64: 2, 1, 32>}, {pipeline_mode = #tpu.pipeline_mode<synchronous>, transform_indices = @transform_11, window_bounds = array<i64: 2, 1, 32>}, {pipeline_mode = #tpu.pipeline_mode<synchronous>, transform_indices = @transform_12, window_bounds = array<i64: 2, 1, 32>}, {pipeline_mode = #tpu.pipeline_mode<synchronous>, transform_indices = @transform_13, window_bounds = array<i64: 1, 32>}, {pipeline_mode = #tpu.pipeline_mode<synchronous>, transform_indices = @transform_14, window_bounds = array<i64: 1, 32>}, {transform_indices = @transform_15, window_bounds = array<i64: 16, 32>}]} {
    %c0 = arith.constant 0 : index
    %c0_0 = arith.constant 0 : index
    %0 = vector.load %arg1[%c0, %c0_0] : memref<16x32xf32, #tpu.memory_space<vmem>>, vector<16x32xf32>
    %c0_1 = arith.constant 0 : index
    %c0_2 = arith.constant 0 : index
    %c0_3 = arith.constant 0 : index
    %1 = vector.load %arg2[%c0_1, %c0_2, %c0_3] : memref<2x32x96xf32, #tpu.memory_space<vmem>>, vector<1x32x96xf32>
    %2 = vector.shape_cast %1 : vector<1x32x96xf32> to vector<32x96xf32>
    %cst = arith.constant dense<0.000000e+00> : vector<16x96xf32>
    %3 = tpu.matmul %0, %2, %cst {dimension_numbers = #tpu.dot_dimension_numbers<[1], [0], [0], [1], [0, 0, 1, 1], [], []>} : vector<16x32xf32>, vector<32x96xf32>, vector<16x96xf32> -> vector<16x96xf32>
    %c0_4 = arith.constant 0 : index
    %c0_5 = arith.constant 0 : index
    %c0_6 = arith.constant 0 : index
    %4 = vector.load %arg3[%c0_4, %c0_5, %c0_6] : memref<2x1x96xf32, #tpu.memory_space<vmem>>, vector<1x1x96xf32>
    %5 = vector.shape_cast %4 : vector<1x1x96xf32> to vector<1x96xf32>
    %6 = vector.broadcast %5 : vector<1x96xf32> to vector<16x96xf32>
    %7 = arith.addf %3, %6 : vector<16x96xf32>
    %8 = vector.extract_strided_slice %7 {offsets = [0, 0], sizes = [16, 8], strides = [1, 1]} : vector<16x96xf32> to vector<16x8xf32>
    %9 = vector.extract_strided_slice %7 {offsets = [0, 8], sizes = [16, 8], strides = [1, 1]} : vector<16x96xf32> to vector<16x8xf32>
    %10 = vector.extract_strided_slice %7 {offsets = [0, 16], sizes = [16, 8], strides = [1, 1]} : vector<16x96xf32> to vector<16x8xf32>
    %11 = vector.extract_strided_slice %7 {offsets = [0, 24], sizes = [16, 8], strides = [1, 1]} : vector<16x96xf32> to vector<16x8xf32>
    %12 = vector.shape_cast %8 : vector<16x8xf32> to vector<1x16x8xf32>
    %13 = vector.shape_cast %9 : vector<16x8xf32> to vector<1x16x8xf32>
    %14 = vector.shape_cast %10 : vector<16x8xf32> to vector<1x16x8xf32>
    %15 = vector.shape_cast %11 : vector<16x8xf32> to vector<1x16x8xf32>
    %16 = tpu.concatenate %12, %13, %14, %15 in 0 : vector<1x16x8xf32>, vector<1x16x8xf32>, vector<1x16x8xf32>, vector<1x16x8xf32> -> vector<4x16x8xf32>
    %17 = vector.extract_strided_slice %7 {offsets = [0, 32], sizes = [16, 8], strides = [1, 1]} : vector<16x96xf32> to vector<16x8xf32>
    %18 = vector.extract_strided_slice %7 {offsets = [0, 40], sizes = [16, 8], strides = [1, 1]} : vector<16x96xf32> to vector<16x8xf32>
    %19 = vector.extract_strided_slice %7 {offsets = [0, 48], sizes = [16, 8], strides = [1, 1]} : vector<16x96xf32> to vector<16x8xf32>
    %20 = vector.extract_strided_slice %7 {offsets = [0, 56], sizes = [16, 8], strides = [1, 1]} : vector<16x96xf32> to vector<16x8xf32>
    %21 = vector.shape_cast %17 : vector<16x8xf32> to vector<1x16x8xf32>
    %22 = vector.shape_cast %18 : vector<16x8xf32> to vector<1x16x8xf32>
    %23 = vector.shape_cast %19 : vector<16x8xf32> to vector<1x16x8xf32>
    %24 = vector.shape_cast %20 : vector<16x8xf32> to vector<1x16x8xf32>
    %25 = tpu.concatenate %21, %22, %23, %24 in 0 : vector<1x16x8xf32>, vector<1x16x8xf32>, vector<1x16x8xf32>, vector<1x16x8xf32> -> vector<4x16x8xf32>
    %26 = vector.extract_strided_slice %7 {offsets = [0, 64], sizes = [16, 8], strides = [1, 1]} : vector<16x96xf32> to vector<16x8xf32>
    %27 = vector.extract_strided_slice %7 {offsets = [0, 72], sizes = [16, 8], strides = [1, 1]} : vector<16x96xf32> to vector<16x8xf32>
    %28 = vector.extract_strided_slice %7 {offsets = [0, 80], sizes = [16, 8], strides = [1, 1]} : vector<16x96xf32> to vector<16x8xf32>
    %29 = vector.extract_strided_slice %7 {offsets = [0, 88], sizes = [16, 8], strides = [1, 1]} : vector<16x96xf32> to vector<16x8xf32>
    %30 = vector.shape_cast %26 : vector<16x8xf32> to vector<1x16x8xf32>
    %31 = vector.shape_cast %27 : vector<16x8xf32> to vector<1x16x8xf32>
    %32 = vector.shape_cast %28 : vector<16x8xf32> to vector<1x16x8xf32>
    %33 = vector.shape_cast %29 : vector<16x8xf32> to vector<1x16x8xf32>
    %34 = tpu.concatenate %30, %31, %32, %33 in 0 : vector<1x16x8xf32>, vector<1x16x8xf32>, vector<1x16x8xf32>, vector<1x16x8xf32> -> vector<4x16x8xf32>
    %cst_7 = arith.constant dense<0.000000e+00> : vector<4x16x16xf32>
    %35 = tpu.matmul %16, %25, %cst_7 {dimension_numbers = #tpu.dot_dimension_numbers<[2], [2], [1], [1], [0, 0, 0, 1, 1, 1], [0], [0]>} : vector<4x16x8xf32>, vector<4x16x8xf32>, vector<4x16x16xf32> -> vector<4x16x16xf32>
    %cst_8 = arith.constant 0.353553385 : f32
    %36 = vector.broadcast %cst_8 : f32 to vector<4x16x16xf32>
    %37 = arith.mulf %35, %36 : vector<4x16x16xf32>
    %cst_9 = arith.constant dense<0xFF800000> : vector<4x16xf32>
    %38 = vector.multi_reduction <maximumf>, %37, %cst_9 [2] : vector<4x16x16xf32> to vector<4x16xf32>
    %39 = vector.shape_cast %38 : vector<4x16xf32> to vector<4x16x1xf32>
    %40 = vector.broadcast %39 : vector<4x16x1xf32> to vector<4x16x16xf32>
    %41 = arith.subf %37, %40 : vector<4x16x16xf32>
    %42 = math.exp %41 : vector<4x16x16xf32>
    %cst_10 = arith.constant dense<0.000000e+00> : vector<4x16xf32>
    %43 = vector.multi_reduction <add>, %42, %cst_10 [2] : vector<4x16x16xf32> to vector<4x16xf32>
    %44 = vector.shape_cast %43 : vector<4x16xf32> to vector<4x16x1xf32>
    %45 = tpu.reciprocal %44 {approx = true} : vector<4x16x1xf32> -> vector<4x16x1xf32>
    %46 = vector.broadcast %45 : vector<4x16x1xf32> to vector<4x16x16xf32>
    %47 = arith.mulf %42, %46 : vector<4x16x16xf32>
    %cst_11 = arith.constant dense<0.000000e+00> : vector<4x16x8xf32>
    %48 = tpu.matmul %47, %34, %cst_11 {dimension_numbers = #tpu.dot_dimension_numbers<[2], [1], [1], [2], [0, 0, 0, 1, 1, 2], [0], [0]>} : vector<4x16x16xf32>, vector<4x16x8xf32>, vector<4x16x8xf32> -> vector<4x16x8xf32>
    %49 = vector.extract_strided_slice %48 {offsets = [0, 0, 0], sizes = [1, 16, 8], strides = [1, 1, 1]} : vector<4x16x8xf32> to vector<1x16x8xf32>
    %50 = vector.shape_cast %49 : vector<1x16x8xf32> to vector<16x8xf32>
    %51 = vector.extract_strided_slice %48 {offsets = [1, 0, 0], sizes = [1, 16, 8], strides = [1, 1, 1]} : vector<4x16x8xf32> to vector<1x16x8xf32>
    %52 = vector.shape_cast %51 : vector<1x16x8xf32> to vector<16x8xf32>
    %53 = vector.extract_strided_slice %48 {offsets = [2, 0, 0], sizes = [1, 16, 8], strides = [1, 1, 1]} : vector<4x16x8xf32> to vector<1x16x8xf32>
    %54 = vector.shape_cast %53 : vector<1x16x8xf32> to vector<16x8xf32>
    %55 = vector.extract_strided_slice %48 {offsets = [3, 0, 0], sizes = [1, 16, 8], strides = [1, 1, 1]} : vector<4x16x8xf32> to vector<1x16x8xf32>
    %56 = vector.shape_cast %55 : vector<1x16x8xf32> to vector<16x8xf32>
    %57 = tpu.concatenate %50, %52, %54, %56 in 1 : vector<16x8xf32>, vector<16x8xf32>, vector<16x8xf32>, vector<16x8xf32> -> vector<16x32xf32>
    %c0_12 = arith.constant 0 : index
    %c0_13 = arith.constant 0 : index
    %c0_14 = arith.constant 0 : index
    %58 = vector.load %arg4[%c0_12, %c0_13, %c0_14] : memref<2x32x32xf32, #tpu.memory_space<vmem>>, vector<1x32x32xf32>
    %59 = vector.shape_cast %58 : vector<1x32x32xf32> to vector<32x32xf32>
    %cst_15 = arith.constant dense<0.000000e+00> : vector<16x32xf32>
    %60 = tpu.matmul %57, %59, %cst_15 {dimension_numbers = #tpu.dot_dimension_numbers<[1], [0], [0], [1], [0, 0, 1, 1], [], []>} : vector<16x32xf32>, vector<32x32xf32>, vector<16x32xf32> -> vector<16x32xf32>
    %c0_16 = arith.constant 0 : index
    %c0_17 = arith.constant 0 : index
    %c0_18 = arith.constant 0 : index
    %61 = vector.load %arg5[%c0_16, %c0_17, %c0_18] : memref<2x1x32xf32, #tpu.memory_space<vmem>>, vector<1x1x32xf32>
    %62 = vector.shape_cast %61 : vector<1x1x32xf32> to vector<1x32xf32>
    %63 = vector.broadcast %62 : vector<1x32xf32> to vector<16x32xf32>
    %64 = arith.addf %60, %63 : vector<16x32xf32>
    %65 = arith.addf %0, %64 : vector<16x32xf32>
    %c0_19 = arith.constant 0 : index
    %c0_20 = arith.constant 0 : index
    %c0_21 = arith.constant 0 : index
    %66 = vector.load %arg6[%c0_19, %c0_20, %c0_21] : memref<2x1x32xf32, #tpu.memory_space<vmem>>, vector<1x1x32xf32>
    %67 = vector.shape_cast %66 : vector<1x1x32xf32> to vector<1x32xf32>
    %c0_22 = arith.constant 0 : index
    %c0_23 = arith.constant 0 : index
    %c0_24 = arith.constant 0 : index
    %68 = vector.load %arg7[%c0_22, %c0_23, %c0_24] : memref<2x1x32xf32, #tpu.memory_space<vmem>>, vector<1x1x32xf32>
    %69 = vector.shape_cast %68 : vector<1x1x32xf32> to vector<1x32xf32>
    %cst_25 = arith.constant dense<0.000000e+00> : vector<16xf32>
    %70 = vector.multi_reduction <add>, %65, %cst_25 [1] : vector<16x32xf32> to vector<16xf32>
    %71 = vector.shape_cast %70 : vector<16xf32> to vector<16x1xf32>
    %cst_26 = arith.constant 3.200000e+01 : f32
    %72 = vector.broadcast %cst_26 : f32 to vector<16x1xf32>
    %73 = arith.divf %71, %72 : vector<16x1xf32>
    %74 = arith.mulf %65, %65 : vector<16x32xf32>
    %cst_27 = arith.constant dense<0.000000e+00> : vector<16xf32>
    %75 = vector.multi_reduction <add>, %74, %cst_27 [1] : vector<16x32xf32> to vector<16xf32>
    %76 = vector.shape_cast %75 : vector<16xf32> to vector<16x1xf32>
    %cst_28 = arith.constant 3.200000e+01 : f32
    %77 = vector.broadcast %cst_28 : f32 to vector<16x1xf32>
    %78 = arith.divf %76, %77 : vector<16x1xf32>
    %79 = arith.mulf %73, %73 : vector<16x1xf32>
    %80 = arith.subf %78, %79 : vector<16x1xf32>
    %cst_29 = arith.constant 0.000000e+00 : f32
    %81 = vector.broadcast %cst_29 : f32 to vector<16x1xf32>
    %82 = arith.maximumf %80, %81 : vector<16x1xf32>
    %83 = vector.broadcast %73 : vector<16x1xf32> to vector<16x32xf32>
    %84 = arith.subf %65, %83 : vector<16x32xf32>
    %cst_30 = arith.constant 9.99999974E-6 : f32
    %85 = vector.broadcast %cst_30 : f32 to vector<16x1xf32>
    %86 = arith.addf %82, %85 : vector<16x1xf32>
    %87 = math.rsqrt %86 : vector<16x1xf32>
    %88 = vector.broadcast %87 : vector<16x1xf32> to vector<16x32xf32>
    %89 = arith.mulf %84, %88 : vector<16x32xf32>
    %90 = vector.broadcast %67 : vector<1x32xf32> to vector<16x32xf32>
    %91 = arith.mulf %89, %90 : vector<16x32xf32>
    %92 = vector.broadcast %69 : vector<1x32xf32> to vector<16x32xf32>
    %93 = arith.addf %91, %92 : vector<16x32xf32>
    %c0_31 = arith.constant 0 : index
    %c0_32 = arith.constant 0 : index
    %c0_33 = arith.constant 0 : index
    %94 = vector.load %arg8[%c0_31, %c0_32, %c0_33] : memref<2x32x64xf32, #tpu.memory_space<vmem>>, vector<1x32x64xf32>
    %95 = vector.shape_cast %94 : vector<1x32x64xf32> to vector<32x64xf32>
    %cst_34 = arith.constant dense<0.000000e+00> : vector<16x64xf32>
    %96 = tpu.matmul %93, %95, %cst_34 {dimension_numbers = #tpu.dot_dimension_numbers<[1], [0], [0], [1], [0, 0, 1, 1], [], []>} : vector<16x32xf32>, vector<32x64xf32>, vector<16x64xf32> -> vector<16x64xf32>
    %c0_35 = arith.constant 0 : index
    %c0_36 = arith.constant 0 : index
    %c0_37 = arith.constant 0 : index
    %97 = vector.load %arg9[%c0_35, %c0_36, %c0_37] : memref<2x1x64xf32, #tpu.memory_space<vmem>>, vector<1x1x64xf32>
    %98 = vector.shape_cast %97 : vector<1x1x64xf32> to vector<1x64xf32>
    %99 = vector.broadcast %98 : vector<1x64xf32> to vector<16x64xf32>
    %100 = arith.addf %96, %99 : vector<16x64xf32>
    %cst_38 = arith.constant 0.000000e+00 : f32
    %101 = vector.broadcast %cst_38 : f32 to vector<16x64xf32>
    %102 = arith.maximumf %100, %101 : vector<16x64xf32>
    %c0_39 = arith.constant 0 : index
    %c0_40 = arith.constant 0 : index
    %c0_41 = arith.constant 0 : index
    %103 = vector.load %arg10[%c0_39, %c0_40, %c0_41] : memref<2x64x32xf32, #tpu.memory_space<vmem>>, vector<1x64x32xf32>
    %104 = vector.shape_cast %103 : vector<1x64x32xf32> to vector<64x32xf32>
    %cst_42 = arith.constant dense<0.000000e+00> : vector<16x32xf32>
    %105 = tpu.matmul %102, %104, %cst_42 {dimension_numbers = #tpu.dot_dimension_numbers<[1], [0], [0], [1], [0, 0, 1, 1], [], []>} : vector<16x64xf32>, vector<64x32xf32>, vector<16x32xf32> -> vector<16x32xf32>
    %c0_43 = arith.constant 0 : index
    %c0_44 = arith.constant 0 : index
    %c0_45 = arith.constant 0 : index
    %106 = vector.load %arg11[%c0_43, %c0_44, %c0_45] : memref<2x1x32xf32, #tpu.memory_space<vmem>>, vector<1x1x32xf32>
    %107 = vector.shape_cast %106 : vector<1x1x32xf32> to vector<1x32xf32>
    %108 = vector.broadcast %107 : vector<1x32xf32> to vector<16x32xf32>
    %109 = arith.addf %105, %108 : vector<16x32xf32>
    %110 = arith.addf %93, %109 : vector<16x32xf32>
    %c0_46 = arith.constant 0 : index
    %c0_47 = arith.constant 0 : index
    %c0_48 = arith.constant 0 : index
    %111 = vector.load %arg12[%c0_46, %c0_47, %c0_48] : memref<2x1x32xf32, #tpu.memory_space<vmem>>, vector<1x1x32xf32>
    %112 = vector.shape_cast %111 : vector<1x1x32xf32> to vector<1x32xf32>
    %c0_49 = arith.constant 0 : index
    %c0_50 = arith.constant 0 : index
    %c0_51 = arith.constant 0 : index
    %113 = vector.load %arg13[%c0_49, %c0_50, %c0_51] : memref<2x1x32xf32, #tpu.memory_space<vmem>>, vector<1x1x32xf32>
    %114 = vector.shape_cast %113 : vector<1x1x32xf32> to vector<1x32xf32>
    %cst_52 = arith.constant dense<0.000000e+00> : vector<16xf32>
    %115 = vector.multi_reduction <add>, %110, %cst_52 [1] : vector<16x32xf32> to vector<16xf32>
    %116 = vector.shape_cast %115 : vector<16xf32> to vector<16x1xf32>
    %cst_53 = arith.constant 3.200000e+01 : f32
    %117 = vector.broadcast %cst_53 : f32 to vector<16x1xf32>
    %118 = arith.divf %116, %117 : vector<16x1xf32>
    %119 = arith.mulf %110, %110 : vector<16x32xf32>
    %cst_54 = arith.constant dense<0.000000e+00> : vector<16xf32>
    %120 = vector.multi_reduction <add>, %119, %cst_54 [1] : vector<16x32xf32> to vector<16xf32>
    %121 = vector.shape_cast %120 : vector<16xf32> to vector<16x1xf32>
    %cst_55 = arith.constant 3.200000e+01 : f32
    %122 = vector.broadcast %cst_55 : f32 to vector<16x1xf32>
    %123 = arith.divf %121, %122 : vector<16x1xf32>
    %124 = arith.mulf %118, %118 : vector<16x1xf32>
    %125 = arith.subf %123, %124 : vector<16x1xf32>
    %cst_56 = arith.constant 0.000000e+00 : f32
    %126 = vector.broadcast %cst_56 : f32 to vector<16x1xf32>
    %127 = arith.maximumf %125, %126 : vector<16x1xf32>
    %128 = vector.broadcast %118 : vector<16x1xf32> to vector<16x32xf32>
    %129 = arith.subf %110, %128 : vector<16x32xf32>
    %cst_57 = arith.constant 9.99999974E-6 : f32
    %130 = vector.broadcast %cst_57 : f32 to vector<16x1xf32>
    %131 = arith.addf %127, %130 : vector<16x1xf32>
    %132 = math.rsqrt %131 : vector<16x1xf32>
    %133 = vector.broadcast %132 : vector<16x1xf32> to vector<16x32xf32>
    %134 = arith.mulf %129, %133 : vector<16x32xf32>
    %135 = vector.broadcast %112 : vector<1x32xf32> to vector<16x32xf32>
    %136 = arith.mulf %134, %135 : vector<16x32xf32>
    %137 = vector.broadcast %114 : vector<1x32xf32> to vector<16x32xf32>
    %138 = arith.addf %136, %137 : vector<16x32xf32>
    %c1 = arith.constant 1 : index
    %c0_58 = arith.constant 0 : index
    %c0_59 = arith.constant 0 : index
    %139 = vector.load %arg2[%c1, %c0_58, %c0_59] : memref<2x32x96xf32, #tpu.memory_space<vmem>>, vector<1x32x96xf32>
    %140 = vector.shape_cast %139 : vector<1x32x96xf32> to vector<32x96xf32>
    %cst_60 = arith.constant dense<0.000000e+00> : vector<16x96xf32>
    %141 = tpu.matmul %138, %140, %cst_60 {dimension_numbers = #tpu.dot_dimension_numbers<[1], [0], [0], [1], [0, 0, 1, 1], [], []>} : vector<16x32xf32>, vector<32x96xf32>, vector<16x96xf32> -> vector<16x96xf32>
    %c1_61 = arith.constant 1 : index
    %c0_62 = arith.constant 0 : index
    %c0_63 = arith.constant 0 : index
    %142 = vector.load %arg3[%c1_61, %c0_62, %c0_63] : memref<2x1x96xf32, #tpu.memory_space<vmem>>, vector<1x1x96xf32>
    %143 = vector.shape_cast %142 : vector<1x1x96xf32> to vector<1x96xf32>
    %144 = vector.broadcast %143 : vector<1x96xf32> to vector<16x96xf32>
    %145 = arith.addf %141, %144 : vector<16x96xf32>
    %146 = vector.extract_strided_slice %145 {offsets = [0, 0], sizes = [16, 8], strides = [1, 1]} : vector<16x96xf32> to vector<16x8xf32>
    %147 = vector.extract_strided_slice %145 {offsets = [0, 8], sizes = [16, 8], strides = [1, 1]} : vector<16x96xf32> to vector<16x8xf32>
    %148 = vector.extract_strided_slice %145 {offsets = [0, 16], sizes = [16, 8], strides = [1, 1]} : vector<16x96xf32> to vector<16x8xf32>
    %149 = vector.extract_strided_slice %145 {offsets = [0, 24], sizes = [16, 8], strides = [1, 1]} : vector<16x96xf32> to vector<16x8xf32>
    %150 = vector.shape_cast %146 : vector<16x8xf32> to vector<1x16x8xf32>
    %151 = vector.shape_cast %147 : vector<16x8xf32> to vector<1x16x8xf32>
    %152 = vector.shape_cast %148 : vector<16x8xf32> to vector<1x16x8xf32>
    %153 = vector.shape_cast %149 : vector<16x8xf32> to vector<1x16x8xf32>
    %154 = tpu.concatenate %150, %151, %152, %153 in 0 : vector<1x16x8xf32>, vector<1x16x8xf32>, vector<1x16x8xf32>, vector<1x16x8xf32> -> vector<4x16x8xf32>
    %155 = vector.extract_strided_slice %145 {offsets = [0, 32], sizes = [16, 8], strides = [1, 1]} : vector<16x96xf32> to vector<16x8xf32>
    %156 = vector.extract_strided_slice %145 {offsets = [0, 40], sizes = [16, 8], strides = [1, 1]} : vector<16x96xf32> to vector<16x8xf32>
    %157 = vector.extract_strided_slice %145 {offsets = [0, 48], sizes = [16, 8], strides = [1, 1]} : vector<16x96xf32> to vector<16x8xf32>
    %158 = vector.extract_strided_slice %145 {offsets = [0, 56], sizes = [16, 8], strides = [1, 1]} : vector<16x96xf32> to vector<16x8xf32>
    %159 = vector.shape_cast %155 : vector<16x8xf32> to vector<1x16x8xf32>
    %160 = vector.shape_cast %156 : vector<16x8xf32> to vector<1x16x8xf32>
    %161 = vector.shape_cast %157 : vector<16x8xf32> to vector<1x16x8xf32>
    %162 = vector.shape_cast %158 : vector<16x8xf32> to vector<1x16x8xf32>
    %163 = tpu.concatenate %159, %160, %161, %162 in 0 : vector<1x16x8xf32>, vector<1x16x8xf32>, vector<1x16x8xf32>, vector<1x16x8xf32> -> vector<4x16x8xf32>
    %164 = vector.extract_strided_slice %145 {offsets = [0, 64], sizes = [16, 8], strides = [1, 1]} : vector<16x96xf32> to vector<16x8xf32>
    %165 = vector.extract_strided_slice %145 {offsets = [0, 72], sizes = [16, 8], strides = [1, 1]} : vector<16x96xf32> to vector<16x8xf32>
    %166 = vector.extract_strided_slice %145 {offsets = [0, 80], sizes = [16, 8], strides = [1, 1]} : vector<16x96xf32> to vector<16x8xf32>
    %167 = vector.extract_strided_slice %145 {offsets = [0, 88], sizes = [16, 8], strides = [1, 1]} : vector<16x96xf32> to vector<16x8xf32>
    %168 = vector.shape_cast %164 : vector<16x8xf32> to vector<1x16x8xf32>
    %169 = vector.shape_cast %165 : vector<16x8xf32> to vector<1x16x8xf32>
    %170 = vector.shape_cast %166 : vector<16x8xf32> to vector<1x16x8xf32>
    %171 = vector.shape_cast %167 : vector<16x8xf32> to vector<1x16x8xf32>
    %172 = tpu.concatenate %168, %169, %170, %171 in 0 : vector<1x16x8xf32>, vector<1x16x8xf32>, vector<1x16x8xf32>, vector<1x16x8xf32> -> vector<4x16x8xf32>
    %cst_64 = arith.constant dense<0.000000e+00> : vector<4x16x16xf32>
    %173 = tpu.matmul %154, %163, %cst_64 {dimension_numbers = #tpu.dot_dimension_numbers<[2], [2], [1], [1], [0, 0, 0, 1, 1, 1], [0], [0]>} : vector<4x16x8xf32>, vector<4x16x8xf32>, vector<4x16x16xf32> -> vector<4x16x16xf32>
    %cst_65 = arith.constant 0.353553385 : f32
    %174 = vector.broadcast %cst_65 : f32 to vector<4x16x16xf32>
    %175 = arith.mulf %173, %174 : vector<4x16x16xf32>
    %cst_66 = arith.constant dense<0xFF800000> : vector<4x16xf32>
    %176 = vector.multi_reduction <maximumf>, %175, %cst_66 [2] : vector<4x16x16xf32> to vector<4x16xf32>
    %177 = vector.shape_cast %176 : vector<4x16xf32> to vector<4x16x1xf32>
    %178 = vector.broadcast %177 : vector<4x16x1xf32> to vector<4x16x16xf32>
    %179 = arith.subf %175, %178 : vector<4x16x16xf32>
    %180 = math.exp %179 : vector<4x16x16xf32>
    %cst_67 = arith.constant dense<0.000000e+00> : vector<4x16xf32>
    %181 = vector.multi_reduction <add>, %180, %cst_67 [2] : vector<4x16x16xf32> to vector<4x16xf32>
    %182 = vector.shape_cast %181 : vector<4x16xf32> to vector<4x16x1xf32>
    %183 = tpu.reciprocal %182 {approx = true} : vector<4x16x1xf32> -> vector<4x16x1xf32>
    %184 = vector.broadcast %183 : vector<4x16x1xf32> to vector<4x16x16xf32>
    %185 = arith.mulf %180, %184 : vector<4x16x16xf32>
    %cst_68 = arith.constant dense<0.000000e+00> : vector<4x16x8xf32>
    %186 = tpu.matmul %185, %172, %cst_68 {dimension_numbers = #tpu.dot_dimension_numbers<[2], [1], [1], [2], [0, 0, 0, 1, 1, 2], [0], [0]>} : vector<4x16x16xf32>, vector<4x16x8xf32>, vector<4x16x8xf32> -> vector<4x16x8xf32>
    %187 = vector.extract_strided_slice %186 {offsets = [0, 0, 0], sizes = [1, 16, 8], strides = [1, 1, 1]} : vector<4x16x8xf32> to vector<1x16x8xf32>
    %188 = vector.shape_cast %187 : vector<1x16x8xf32> to vector<16x8xf32>
    %189 = vector.extract_strided_slice %186 {offsets = [1, 0, 0], sizes = [1, 16, 8], strides = [1, 1, 1]} : vector<4x16x8xf32> to vector<1x16x8xf32>
    %190 = vector.shape_cast %189 : vector<1x16x8xf32> to vector<16x8xf32>
    %191 = vector.extract_strided_slice %186 {offsets = [2, 0, 0], sizes = [1, 16, 8], strides = [1, 1, 1]} : vector<4x16x8xf32> to vector<1x16x8xf32>
    %192 = vector.shape_cast %191 : vector<1x16x8xf32> to vector<16x8xf32>
    %193 = vector.extract_strided_slice %186 {offsets = [3, 0, 0], sizes = [1, 16, 8], strides = [1, 1, 1]} : vector<4x16x8xf32> to vector<1x16x8xf32>
    %194 = vector.shape_cast %193 : vector<1x16x8xf32> to vector<16x8xf32>
    %195 = tpu.concatenate %188, %190, %192, %194 in 1 : vector<16x8xf32>, vector<16x8xf32>, vector<16x8xf32>, vector<16x8xf32> -> vector<16x32xf32>
    %c1_69 = arith.constant 1 : index
    %c0_70 = arith.constant 0 : index
    %c0_71 = arith.constant 0 : index
    %196 = vector.load %arg4[%c1_69, %c0_70, %c0_71] : memref<2x32x32xf32, #tpu.memory_space<vmem>>, vector<1x32x32xf32>
    %197 = vector.shape_cast %196 : vector<1x32x32xf32> to vector<32x32xf32>
    %cst_72 = arith.constant dense<0.000000e+00> : vector<16x32xf32>
    %198 = tpu.matmul %195, %197, %cst_72 {dimension_numbers = #tpu.dot_dimension_numbers<[1], [0], [0], [1], [0, 0, 1, 1], [], []>} : vector<16x32xf32>, vector<32x32xf32>, vector<16x32xf32> -> vector<16x32xf32>
    %c1_73 = arith.constant 1 : index
    %c0_74 = arith.constant 0 : index
    %c0_75 = arith.constant 0 : index
    %199 = vector.load %arg5[%c1_73, %c0_74, %c0_75] : memref<2x1x32xf32, #tpu.memory_space<vmem>>, vector<1x1x32xf32>
    %200 = vector.shape_cast %199 : vector<1x1x32xf32> to vector<1x32xf32>
    %201 = vector.broadcast %200 : vector<1x32xf32> to vector<16x32xf32>
    %202 = arith.addf %198, %201 : vector<16x32xf32>
    %203 = arith.addf %138, %202 : vector<16x32xf32>
    %c1_76 = arith.constant 1 : index
    %c0_77 = arith.constant 0 : index
    %c0_78 = arith.constant 0 : index
    %204 = vector.load %arg6[%c1_76, %c0_77, %c0_78] : memref<2x1x32xf32, #tpu.memory_space<vmem>>, vector<1x1x32xf32>
    %205 = vector.shape_cast %204 : vector<1x1x32xf32> to vector<1x32xf32>
    %c1_79 = arith.constant 1 : index
    %c0_80 = arith.constant 0 : index
    %c0_81 = arith.constant 0 : index
    %206 = vector.load %arg7[%c1_79, %c0_80, %c0_81] : memref<2x1x32xf32, #tpu.memory_space<vmem>>, vector<1x1x32xf32>
    %207 = vector.shape_cast %206 : vector<1x1x32xf32> to vector<1x32xf32>
    %cst_82 = arith.constant dense<0.000000e+00> : vector<16xf32>
    %208 = vector.multi_reduction <add>, %203, %cst_82 [1] : vector<16x32xf32> to vector<16xf32>
    %209 = vector.shape_cast %208 : vector<16xf32> to vector<16x1xf32>
    %cst_83 = arith.constant 3.200000e+01 : f32
    %210 = vector.broadcast %cst_83 : f32 to vector<16x1xf32>
    %211 = arith.divf %209, %210 : vector<16x1xf32>
    %212 = arith.mulf %203, %203 : vector<16x32xf32>
    %cst_84 = arith.constant dense<0.000000e+00> : vector<16xf32>
    %213 = vector.multi_reduction <add>, %212, %cst_84 [1] : vector<16x32xf32> to vector<16xf32>
    %214 = vector.shape_cast %213 : vector<16xf32> to vector<16x1xf32>
    %cst_85 = arith.constant 3.200000e+01 : f32
    %215 = vector.broadcast %cst_85 : f32 to vector<16x1xf32>
    %216 = arith.divf %214, %215 : vector<16x1xf32>
    %217 = arith.mulf %211, %211 : vector<16x1xf32>
    %218 = arith.subf %216, %217 : vector<16x1xf32>
    %cst_86 = arith.constant 0.000000e+00 : f32
    %219 = vector.broadcast %cst_86 : f32 to vector<16x1xf32>
    %220 = arith.maximumf %218, %219 : vector<16x1xf32>
    %221 = vector.broadcast %211 : vector<16x1xf32> to vector<16x32xf32>
    %222 = arith.subf %203, %221 : vector<16x32xf32>
    %cst_87 = arith.constant 9.99999974E-6 : f32
    %223 = vector.broadcast %cst_87 : f32 to vector<16x1xf32>
    %224 = arith.addf %220, %223 : vector<16x1xf32>
    %225 = math.rsqrt %224 : vector<16x1xf32>
    %226 = vector.broadcast %225 : vector<16x1xf32> to vector<16x32xf32>
    %227 = arith.mulf %222, %226 : vector<16x32xf32>
    %228 = vector.broadcast %205 : vector<1x32xf32> to vector<16x32xf32>
    %229 = arith.mulf %227, %228 : vector<16x32xf32>
    %230 = vector.broadcast %207 : vector<1x32xf32> to vector<16x32xf32>
    %231 = arith.addf %229, %230 : vector<16x32xf32>
    %c1_88 = arith.constant 1 : index
    %c0_89 = arith.constant 0 : index
    %c0_90 = arith.constant 0 : index
    %232 = vector.load %arg8[%c1_88, %c0_89, %c0_90] : memref<2x32x64xf32, #tpu.memory_space<vmem>>, vector<1x32x64xf32>
    %233 = vector.shape_cast %232 : vector<1x32x64xf32> to vector<32x64xf32>
    %cst_91 = arith.constant dense<0.000000e+00> : vector<16x64xf32>
    %234 = tpu.matmul %231, %233, %cst_91 {dimension_numbers = #tpu.dot_dimension_numbers<[1], [0], [0], [1], [0, 0, 1, 1], [], []>} : vector<16x32xf32>, vector<32x64xf32>, vector<16x64xf32> -> vector<16x64xf32>
    %c1_92 = arith.constant 1 : index
    %c0_93 = arith.constant 0 : index
    %c0_94 = arith.constant 0 : index
    %235 = vector.load %arg9[%c1_92, %c0_93, %c0_94] : memref<2x1x64xf32, #tpu.memory_space<vmem>>, vector<1x1x64xf32>
    %236 = vector.shape_cast %235 : vector<1x1x64xf32> to vector<1x64xf32>
    %237 = vector.broadcast %236 : vector<1x64xf32> to vector<16x64xf32>
    %238 = arith.addf %234, %237 : vector<16x64xf32>
    %cst_95 = arith.constant 0.000000e+00 : f32
    %239 = vector.broadcast %cst_95 : f32 to vector<16x64xf32>
    %240 = arith.maximumf %238, %239 : vector<16x64xf32>
    %c1_96 = arith.constant 1 : index
    %c0_97 = arith.constant 0 : index
    %c0_98 = arith.constant 0 : index
    %241 = vector.load %arg10[%c1_96, %c0_97, %c0_98] : memref<2x64x32xf32, #tpu.memory_space<vmem>>, vector<1x64x32xf32>
    %242 = vector.shape_cast %241 : vector<1x64x32xf32> to vector<64x32xf32>
    %cst_99 = arith.constant dense<0.000000e+00> : vector<16x32xf32>
    %243 = tpu.matmul %240, %242, %cst_99 {dimension_numbers = #tpu.dot_dimension_numbers<[1], [0], [0], [1], [0, 0, 1, 1], [], []>} : vector<16x64xf32>, vector<64x32xf32>, vector<16x32xf32> -> vector<16x32xf32>
    %c1_100 = arith.constant 1 : index
    %c0_101 = arith.constant 0 : index
    %c0_102 = arith.constant 0 : index
    %244 = vector.load %arg11[%c1_100, %c0_101, %c0_102] : memref<2x1x32xf32, #tpu.memory_space<vmem>>, vector<1x1x32xf32>
    %245 = vector.shape_cast %244 : vector<1x1x32xf32> to vector<1x32xf32>
    %246 = vector.broadcast %245 : vector<1x32xf32> to vector<16x32xf32>
    %247 = arith.addf %243, %246 : vector<16x32xf32>
    %248 = arith.addf %231, %247 : vector<16x32xf32>
    %c1_103 = arith.constant 1 : index
    %c0_104 = arith.constant 0 : index
    %c0_105 = arith.constant 0 : index
    %249 = vector.load %arg12[%c1_103, %c0_104, %c0_105] : memref<2x1x32xf32, #tpu.memory_space<vmem>>, vector<1x1x32xf32>
    %250 = vector.shape_cast %249 : vector<1x1x32xf32> to vector<1x32xf32>
    %c1_106 = arith.constant 1 : index
    %c0_107 = arith.constant 0 : index
    %c0_108 = arith.constant 0 : index
    %251 = vector.load %arg13[%c1_106, %c0_107, %c0_108] : memref<2x1x32xf32, #tpu.memory_space<vmem>>, vector<1x1x32xf32>
    %252 = vector.shape_cast %251 : vector<1x1x32xf32> to vector<1x32xf32>
    %cst_109 = arith.constant dense<0.000000e+00> : vector<16xf32>
    %253 = vector.multi_reduction <add>, %248, %cst_109 [1] : vector<16x32xf32> to vector<16xf32>
    %254 = vector.shape_cast %253 : vector<16xf32> to vector<16x1xf32>
    %cst_110 = arith.constant 3.200000e+01 : f32
    %255 = vector.broadcast %cst_110 : f32 to vector<16x1xf32>
    %256 = arith.divf %254, %255 : vector<16x1xf32>
    %257 = arith.mulf %248, %248 : vector<16x32xf32>
    %cst_111 = arith.constant dense<0.000000e+00> : vector<16xf32>
    %258 = vector.multi_reduction <add>, %257, %cst_111 [1] : vector<16x32xf32> to vector<16xf32>
    %259 = vector.shape_cast %258 : vector<16xf32> to vector<16x1xf32>
    %cst_112 = arith.constant 3.200000e+01 : f32
    %260 = vector.broadcast %cst_112 : f32 to vector<16x1xf32>
    %261 = arith.divf %259, %260 : vector<16x1xf32>
    %262 = arith.mulf %256, %256 : vector<16x1xf32>
    %263 = arith.subf %261, %262 : vector<16x1xf32>
    %cst_113 = arith.constant 0.000000e+00 : f32
    %264 = vector.broadcast %cst_113 : f32 to vector<16x1xf32>
    %265 = arith.maximumf %263, %264 : vector<16x1xf32>
    %266 = vector.broadcast %256 : vector<16x1xf32> to vector<16x32xf32>
    %267 = arith.subf %248, %266 : vector<16x32xf32>
    %cst_114 = arith.constant 9.99999974E-6 : f32
    %268 = vector.broadcast %cst_114 : f32 to vector<16x1xf32>
    %269 = arith.addf %265, %268 : vector<16x1xf32>
    %270 = math.rsqrt %269 : vector<16x1xf32>
    %271 = vector.broadcast %270 : vector<16x1xf32> to vector<16x32xf32>
    %272 = arith.mulf %267, %271 : vector<16x32xf32>
    %273 = vector.broadcast %250 : vector<1x32xf32> to vector<16x32xf32>
    %274 = arith.mulf %272, %273 : vector<16x32xf32>
    %275 = vector.broadcast %252 : vector<1x32xf32> to vector<16x32xf32>
    %276 = arith.addf %274, %275 : vector<16x32xf32>
    %c0_115 = arith.constant 0 : index
    %c0_116 = arith.constant 0 : index
    %277 = vector.load %arg14[%c0_115, %c0_116] : memref<1x32xf32, #tpu.memory_space<vmem>>, vector<1x32xf32>
    %c0_117 = arith.constant 0 : index
    %c0_118 = arith.constant 0 : index
    %278 = vector.load %arg15[%c0_117, %c0_118] : memref<1x32xf32, #tpu.memory_space<vmem>>, vector<1x32xf32>
    %cst_119 = arith.constant dense<0.000000e+00> : vector<16xf32>
    %279 = vector.multi_reduction <add>, %276, %cst_119 [1] : vector<16x32xf32> to vector<16xf32>
    %280 = vector.shape_cast %279 : vector<16xf32> to vector<16x1xf32>
    %cst_120 = arith.constant 3.200000e+01 : f32
    %281 = vector.broadcast %cst_120 : f32 to vector<16x1xf32>
    %282 = arith.divf %280, %281 : vector<16x1xf32>
    %283 = arith.mulf %276, %276 : vector<16x32xf32>
    %cst_121 = arith.constant dense<0.000000e+00> : vector<16xf32>
    %284 = vector.multi_reduction <add>, %283, %cst_121 [1] : vector<16x32xf32> to vector<16xf32>
    %285 = vector.shape_cast %284 : vector<16xf32> to vector<16x1xf32>
    %cst_122 = arith.constant 3.200000e+01 : f32
    %286 = vector.broadcast %cst_122 : f32 to vector<16x1xf32>
    %287 = arith.divf %285, %286 : vector<16x1xf32>
    %288 = arith.mulf %282, %282 : vector<16x1xf32>
    %289 = arith.subf %287, %288 : vector<16x1xf32>
    %cst_123 = arith.constant 0.000000e+00 : f32
    %290 = vector.broadcast %cst_123 : f32 to vector<16x1xf32>
    %291 = arith.maximumf %289, %290 : vector<16x1xf32>
    %292 = vector.broadcast %282 : vector<16x1xf32> to vector<16x32xf32>
    %293 = arith.subf %276, %292 : vector<16x32xf32>
    %cst_124 = arith.constant 9.99999974E-6 : f32
    %294 = vector.broadcast %cst_124 : f32 to vector<16x1xf32>
    %295 = arith.addf %291, %294 : vector<16x1xf32>
    %296 = math.rsqrt %295 : vector<16x1xf32>
    %297 = vector.broadcast %296 : vector<16x1xf32> to vector<16x32xf32>
    %298 = arith.mulf %293, %297 : vector<16x32xf32>
    %299 = vector.broadcast %277 : vector<1x32xf32> to vector<16x32xf32>
    %300 = arith.mulf %298, %299 : vector<16x32xf32>
    %301 = vector.broadcast %278 : vector<1x32xf32> to vector<16x32xf32>
    %302 = arith.addf %300, %301 : vector<16x32xf32>
    %c0_125 = arith.constant 0 : index
    %c0_126 = arith.constant 0 : index
    %303 = vector.load %arg16[%c0_125, %c0_126] : memref<16x32xf32, #tpu.memory_space<vmem>>, vector<16x32xf32>
    tpu.vector_store %arg16[%c0_125, %c0_126], %302 {strides = array<i32>} : memref<16x32xf32, #tpu.memory_space<vmem>>, vector<16x32xf32>,
    return
  }
  func.func @transform_0(%arg0: i32) -> (i32, i32) {
    %c0_i32 = arith.constant 0 : i32
    %c0_i32_0 = arith.constant 0 : i32
    return %arg0, %c0_i32 : i32, i32
  }
  func.func @transform_1(%arg0: i32) -> (i32, i32, i32) {
    %c0_i32 = arith.constant 0 : i32
    %c0_i32_0 = arith.constant 0 : i32
    %c0_i32_1 = arith.constant 0 : i32
    %c0_i32_2 = arith.constant 0 : i32
    return %c0_i32, %c0_i32_0, %c0_i32_1 : i32, i32, i32
  }
  func.func @transform_2(%arg0: i32) -> (i32, i32, i32) {
    %c0_i32 = arith.constant 0 : i32
    %c0_i32_0 = arith.constant 0 : i32
    %c0_i32_1 = arith.constant 0 : i32
    %c0_i32_2 = arith.constant 0 : i32
    return %c0_i32, %c0_i32_0, %c0_i32_1 : i32, i32, i32
  }
  func.func @transform_3(%arg0: i32) -> (i32, i32, i32) {
    %c0_i32 = arith.constant 0 : i32
    %c0_i32_0 = arith.constant 0 : i32
    %c0_i32_1 = arith.constant 0 : i32
    %c0_i32_2 = arith.constant 0 : i32
    return %c0_i32, %c0_i32_0, %c0_i32_1 : i32, i32, i32
  }
  func.func @transform_4(%arg0: i32) -> (i32, i32, i32) {
    %c0_i32 = arith.constant 0 : i32
    %c0_i32_0 = arith.constant 0 : i32
    %c0_i32_1 = arith.constant 0 : i32
    %c0_i32_2 = arith.constant 0 : i32
    return %c0_i32, %c0_i32_0, %c0_i32_1 : i32, i32, i32
  }
  func.func @transform_5(%arg0: i32) -> (i32, i32, i32) {
    %c0_i32 = arith.constant 0 : i32
    %c0_i32_0 = arith.constant 0 : i32
    %c0_i32_1 = arith.constant 0 : i32
    %c0_i32_2 = arith.constant 0 : i32
    return %c0_i32, %c0_i32_0, %c0_i32_1 : i32, i32, i32
  }
  func.func @transform_6(%arg0: i32) -> (i32, i32, i32) {
    %c0_i32 = arith.constant 0 : i32
    %c0_i32_0 = arith.constant 0 : i32
    %c0_i32_1 = arith.constant 0 : i32
    %c0_i32_2 = arith.constant 0 : i32
    return %c0_i32, %c0_i32_0, %c0_i32_1 : i32, i32, i32
  }
  func.func @transform_7(%arg0: i32) -> (i32, i32, i32) {
    %c0_i32 = arith.constant 0 : i32
    %c0_i32_0 = arith.constant 0 : i32
    %c0_i32_1 = arith.constant 0 : i32
    %c0_i32_2 = arith.constant 0 : i32
    return %c0_i32, %c0_i32_0, %c0_i32_1 : i32, i32, i32
  }
  func.func @transform_8(%arg0: i32) -> (i32, i32, i32) {
    %c0_i32 = arith.constant 0 : i32
    %c0_i32_0 = arith.constant 0 : i32
    %c0_i32_1 = arith.constant 0 : i32
    %c0_i32_2 = arith.constant 0 : i32
    return %c0_i32, %c0_i32_0, %c0_i32_1 : i32, i32, i32
  }
  func.func @transform_9(%arg0: i32) -> (i32, i32, i32) {
    %c0_i32 = arith.constant 0 : i32
    %c0_i32_0 = arith.constant 0 : i32
    %c0_i32_1 = arith.constant 0 : i32
    %c0_i32_2 = arith.constant 0 : i32
    return %c0_i32, %c0_i32_0, %c0_i32_1 : i32, i32, i32
  }
  func.func @transform_10(%arg0: i32) -> (i32, i32, i32) {
    %c0_i32 = arith.constant 0 : i32
    %c0_i32_0 = arith.constant 0 : i32
    %c0_i32_1 = arith.constant 0 : i32
    %c0_i32_2 = arith.constant 0 : i32
    return %c0_i32, %c0_i32_0, %c0_i32_1 : i32, i32, i32
  }
  func.func @transform_11(%arg0: i32) -> (i32, i32, i32) {
    %c0_i32 = arith.constant 0 : i32
    %c0_i32_0 = arith.constant 0 : i32
    %c0_i32_1 = arith.constant 0 : i32
    %c0_i32_2 = arith.constant 0 : i32
    return %c0_i32, %c0_i32_0, %c0_i32_1 : i32, i32, i32
  }
  func.func @transform_12(%arg0: i32) -> (i32, i32, i32) {
    %c0_i32 = arith.constant 0 : i32
    %c0_i32_0 = arith.constant 0 : i32
    %c0_i32_1 = arith.constant 0 : i32
    %c0_i32_2 = arith.constant 0 : i32
    return %c0_i32, %c0_i32_0, %c0_i32_1 : i32, i32, i32
  }
  func.func @transform_13(%arg0: i32) -> (i32, i32) {
    %c0_i32 = arith.constant 0 : i32
    %c0_i32_0 = arith.constant 0 : i32
    %c0_i32_1 = arith.constant 0 : i32
    return %c0_i32, %c0_i32_0 : i32, i32
  }
  func.func @transform_14(%arg0: i32) -> (i32, i32) {
    %c0_i32 = arith.constant 0 : i32
    %c0_i32_0 = arith.constant 0 : i32
    %c0_i32_1 = arith.constant 0 : i32
    return %c0_i32, %c0_i32_0 : i32, i32
  }
  func.func @transform_15(%arg0: i32) -> (i32, i32) {
    %c0_i32 = arith.constant 0 : i32
    %c0_i32_0 = arith.constant 0 : i32
    return %arg0, %c0_i32 : i32, i32
  }
}

</mosaic_0001>

<llo_original>
// kernel: tpu_custom_call.1
$region0: #{tpu_custom_call.1}
  #allocation0 [shape = 'u32[]', space=smem, size = 0x4, offset = 0x4, fixed_abs, tag = 'smem constant byte address 0x4 - core index']
  #allocation1 [shape = 'u32[144,128]{1,0:T(1,128)}', space=vmem, size = 0x12000, scoped, tag = 'internal scratch']
  %s0 = inlined_call_operand.hbm [shape: f32[32,32], index: 0, kind: input, shape index: {}]
  %s1 = inlined_call_operand.vmem [shape: f32[2,32,96], index: 1, kind: input, shape index: {}]
  %s2 = inlined_call_operand.vmem [shape: f32[2,1,96], index: 2, kind: input, shape index: {}]
  %s3 = inlined_call_operand.vmem [shape: f32[2,32,32], index: 3, kind: input, shape index: {}]
  %s4 = inlined_call_operand.vmem [shape: f32[2,1,32], index: 4, kind: input, shape index: {}]
  %s5 = inlined_call_operand.vmem [shape: f32[2,1,32], index: 5, kind: input, shape index: {}]
  %s6 = inlined_call_operand.vmem [shape: f32[2,1,32], index: 6, kind: input, shape index: {}]
  %s7 = inlined_call_operand.vmem [shape: f32[2,32,64], index: 7, kind: input, shape index: {}]
  %s8 = inlined_call_operand.vmem [shape: f32[2,1,64], index: 8, kind: input, shape index: {}]
  %s9 = inlined_call_operand.vmem [shape: f32[2,64,32], index: 9, kind: input, shape index: {}]
  %s10 = inlined_call_operand.vmem [shape: f32[2,1,32], index: 10, kind: input, shape index: {}]
  %s11 = inlined_call_operand.vmem [shape: f32[2,1,32], index: 11, kind: input, shape index: {}]
  %s12 = inlined_call_operand.vmem [shape: f32[2,1,32], index: 12, kind: input, shape index: {}]
  %s13 = inlined_call_operand.vmem [shape: f32[1,32], index: 13, kind: input, shape index: {}]
  %s14 = inlined_call_operand.vmem [shape: f32[1,32], index: 14, kind: input, shape index: {}]
  %s15 = inlined_call_operand.hbm [shape: f32[32,32], index: 15, kind: output, shape index: {}]
  %s16 = sld [smem:[#allocation0]]
  $region97: #{tpu_custom_call.1} parent=0
    _
  %s18 = ssub.s32 1, %s16
  %s19 = scalar_select 0, %s18, %s16
  $region1: #{tpu_custom_call.1} parent=0
    #allocation2 [shape = 'u8[16384]{0}', space=vmem, size = 0x4000, scoped, tag = 'input window, operand 0']
    #allocation3 [shape = 's32[2]{0}', space=sflag, size = 0x8, scoped, tag = 'scoped memory for tpu_custom_call.1']
    #allocation4 [shape = 's32[2]{0}', space=sflag, size = 0x8, scoped, tag = 'scoped memory for tpu_custom_call.1']
    #allocation5 [shape = 'u8[16384]{0}', space=vmem, size = 0x4000, scoped, tag = 'output window, operand 0']
    %20 = vsyncpa [#allocation3], 0
    %s21 = scalar_lea.sflag [#allocation3], 1
    %22 = vsyncpa %s21, 0
    %23 = vsyncpa [#allocation4], 0
    %s24 = scalar_lea.sflag [#allocation4], 1
    %25 = vsyncpa %s24, 0
    loop: start=0, step=1, limit=4
    $region2: #{tpu_custom_call.1} parent=1 // loop_pre_header
      _
    $region3: #{tpu_custom_call.1} parent=1 // loop_header
      %s27 = sphi 0, %s31
      %p28 = scmp.ge.s32.totalorder %s27, 4
      %s37 = sphi 0, %s39
      %s40 = sphi 0, %s37
      %s41 = sphi 0, %s40
      %s57 = sphi 0, %s41
      %s61 = sphi 0, %s61
      %s63 = sphi 0, %s61
      %s64 = sphi 0, %s63
      %s78 = sphi 0, %s64
      %s82 = sphi 0, %s82
      %s84 = sphi 0, %s82
      %s85 = sphi 0, %s84
      %s99 = sphi 0, %s85
      %s103 = sphi 0, %s103
      %s105 = sphi 0, %s103
      %s106 = sphi 0, %s105
      %s120 = sphi 0, %s106
      %s124 = sphi 0, %s124
      %s126 = sphi 0, %s124
      %s127 = sphi 0, %s126
      %s141 = sphi 0, %s127
      %s145 = sphi 0, %s145
      %s147 = sphi 0, %s145
      %s148 = sphi 0, %s147
      %s162 = sphi 0, %s148
      %s166 = sphi 0, %s166
      %s168 = sphi 0, %s166
      %s169 = sphi 0, %s168
      %s183 = sphi 0, %s169
      %s187 = sphi 0, %s187
      %s189 = sphi 0, %s187
      %s190 = sphi 0, %s189
      %s204 = sphi 0, %s190
      %s208 = sphi 0, %s208
      %s210 = sphi 0, %s208
      %s211 = sphi 0, %s210
      %s225 = sphi 0, %s211
      %s229 = sphi 0, %s229
      %s231 = sphi 0, %s229
      %s232 = sphi 0, %s231
      %s246 = sphi 0, %s232
      %s250 = sphi 0, %s250
      %s252 = sphi 0, %s250
      %s253 = sphi 0, %s252
      %s267 = sphi 0, %s253
      %s271 = sphi 0, %s271
      %s273 = sphi 0, %s271
      %s274 = sphi 0, %s273
      %s288 = sphi 0, %s274
      %s292 = sphi 0, %s292
      %s294 = sphi 0, %s292
      %s295 = sphi 0, %s294
      %s309 = sphi 0, %s295
      %s313 = sphi 0, %s313
      %s315 = sphi 0, %s313
      %s316 = sphi 0, %s315
      %s330 = sphi 0, %s316
      %s334 = sphi 0, %s334
      %s336 = sphi 0, %s334
      %s337 = sphi 0, %s336
      %s351 = sphi 0, %s337
      %s357 = sphi 0, %s359
      %s360 = sphi 0, %s357
      %s361 = sphi 0, %s360
      %s377 = sphi 0, %s361
    $region4: #{tpu_custom_call.1} parent=1 // loop_header_branch
      %30 = sbr.rel (%p28) target = $region8
    $region5: #{tpu_custom_call.1} parent=1 // loop_body
      %s32 = ssub.s32 %s27, 1
      %s33 = ssub.s32 %s27, 2
      %s34 = sadd.s32 %s27, 1
      %s35 = ssub.s32 %s27, %s34
      %p36 = scmp.eq.s32.totalorder %s35, 0
      %s38 = sadd.s32 %s37, 1
      %s39 = scalar_select %p36, %s37, %s38
      %p42 = pneg %p36
      %p43 = scmp.eq.s32.totalorder %s27, 1
      %p44 = por %p42, %p43
      %p45 = scmp.ne.s32.totalorder %s37, %s40
      %p46 = scmp.eq.s32.totalorder %s27, 0
      %p47 = por %p45, %p46
      %p48 = scmp.ne.s32.totalorder %s37, %s40
      %p49 = scmp.eq.s32.totalorder %s32, 1
      %p50 = por %p48, %p49
      %p51 = scmp.ne.s32.totalorder %s40, %s41
      %p52 = scmp.eq.s32.totalorder %s32, 0
      %p53 = por %p51, %p52
      %p54 = scmp.ne.s32.totalorder %s40, %s41
      %p55 = scmp.eq.s32.totalorder %s33, 1
      %p56 = por %p54, %p55
      %p58 = scmp.ne.s32.totalorder %s41, %s57
      %p59 = scmp.eq.s32.totalorder %s33, 0
      %p60 = por %p58, %p59
      %s62 = sadd.s32 %s61, 1
      %p65 = scmp.eq.s32.totalorder %s27, 1
      %p66 = scmp.ne.s32.totalorder %s61, %s63
      %p67 = scmp.eq.s32.totalorder %s27, 0
      %p68 = por %p66, %p67
      %p69 = scmp.ne.s32.totalorder %s61, %s63
      %p70 = scmp.eq.s32.totalorder %s32, 1
      %p71 = por %p69, %p70
      %p72 = scmp.ne.s32.totalorder %s63, %s64
      %p73 = scmp.eq.s32.totalorder %s32, 0
      %p74 = por %p72, %p73
      %p75 = scmp.ne.s32.totalorder %s63, %s64
      %p76 = scmp.eq.s32.totalorder %s33, 1
      %p77 = por %p75, %p76
      %p79 = scmp.ne.s32.totalorder %s64, %s78
      %p80 = scmp.eq.s32.totalorder %s33, 0
      %p81 = por %p79, %p80
      %s83 = sadd.s32 %s82, 1
      %p86 = scmp.eq.s32.totalorder %s27, 1
      %p87 = scmp.ne.s32.totalorder %s82, %s84
      %p88 = scmp.eq.s32.totalorder %s27, 0
      %p89 = por %p87, %p88
      %p90 = scmp.ne.s32.totalorder %s82, %s84
      %p91 = scmp.eq.s32.totalorder %s32, 1
      %p92 = por %p90, %p91
      %p93 = scmp.ne.s32.totalorder %s84, %s85
      %p94 = scmp.eq.s32.totalorder %s32, 0
      %p95 = por %p93, %p94
      %p96 = scmp.ne.s32.totalorder %s84, %s85
      %p97 = scmp.eq.s32.totalorder %s33, 1
      %p98 = por %p96, %p97
      %p100 = scmp.ne.s32.totalorder %s85, %s99
      %p101 = scmp.eq.s32.totalorder %s33, 0
      %p102 = por %p100, %p101
      %s104 = sadd.s32 %s103, 1
      %p107 = scmp.eq.s32.totalorder %s27, 1
      %p108 = scmp.ne.s32.totalorder %s103, %s105
      %p109 = scmp.eq.s32.totalorder %s27, 0
      %p110 = por %p108, %p109
      %p111 = scmp.ne.s32.totalorder %s103, %s105
      %p112 = scmp.eq.s32.totalorder %s32, 1
      %p113 = por %p111, %p112
      %p114 = scmp.ne.s32.totalorder %s105, %s106
      %p115 = scmp.eq.s32.totalorder %s32, 0
      %p116 = por %p114, %p115
      %p117 = scmp.ne.s32.totalorder %s105, %s106
      %p118 = scmp.eq.s32.totalorder %s33, 1
      %p119 = por %p117, %p118
      %p121 = scmp.ne.s32.totalorder %s106, %s120
      %p122 = scmp.eq.s32.totalorder %s33, 0
      %p123 = por %p121, %p122
      %s125 = sadd.s32 %s124, 1
      %p128 = scmp.eq.s32.totalorder %s27, 1
      %p129 = scmp.ne.s32.totalorder %s124, %s126
      %p130 = scmp.eq.s32.totalorder %s27, 0
      %p131 = por %p129, %p130
      %p132 = scmp.ne.s32.totalorder %s124, %s126
      %p133 = scmp.eq.s32.totalorder %s32, 1
      %p134 = por %p132, %p133
      %p135 = scmp.ne.s32.totalorder %s126, %s127
      %p136 = scmp.eq.s32.totalorder %s32, 0
      %p137 = por %p135, %p136
      %p138 = scmp.ne.s32.totalorder %s126, %s127
      %p139 = scmp.eq.s32.totalorder %s33, 1
      %p140 = por %p138, %p139
      %p142 = scmp.ne.s32.totalorder %s127, %s141
      %p143 = scmp.eq.s32.totalorder %s33, 0
      %p144 = por %p142, %p143
      %s146 = sadd.s32 %s145, 1
      %p149 = scmp.eq.s32.totalorder %s27, 1
      %p150 = scmp.ne.s32.totalorder %s145, %s147
      %p151 = scmp.eq.s32.totalorder %s27, 0
      %p152 = por %p150, %p151
      %p153 = scmp.ne.s32.totalorder %s145, %s147
      %p154 = scmp.eq.s32.totalorder %s32, 1
      %p155 = por %p153, %p154
      %p156 = scmp.ne.s32.totalorder %s147, %s148
      %p157 = scmp.eq.s32.totalorder %s32, 0
      %p158 = por %p156, %p157
      %p159 = scmp.ne.s32.totalorder %s147, %s148
      %p160 = scmp.eq.s32.totalorder %s33, 1
      %p161 = por %p159, %p160
      %p163 = scmp.ne.s32.totalorder %s148, %s162
      %p164 = scmp.eq.s32.totalorder %s33, 0
      %p165 = por %p163, %p164
      %s167 = sadd.s32 %s166, 1
      %p170 = scmp.eq.s32.totalorder %s27, 1
      %p171 = scmp.ne.s32.totalorder %s166, %s168
      %p172 = scmp.eq.s32.totalorder %s27, 0
      %p173 = por %p171, %p172
      %p174 = scmp.ne.s32.totalorder %s166, %s168
      %p175 = scmp.eq.s32.totalorder %s32, 1
      %p176 = por %p174, %p175
      %p177 = scmp.ne.s32.totalorder %s168, %s169
      %p178 = scmp.eq.s32.totalorder %s32, 0
      %p179 = por %p177, %p178
      %p180 = scmp.ne.s32.totalorder %s168, %s169
      %p181 = scmp.eq.s32.totalorder %s33, 1
      %p182 = por %p180, %p181
      %p184 = scmp.ne.s32.totalorder %s169, %s183
      %p185 = scmp.eq.s32.totalorder %s33, 0
      %p186 = por %p184, %p185
      %s188 = sadd.s32 %s187, 1
      %p191 = scmp.eq.s32.totalorder %s27, 1
      %p192 = scmp.ne.s32.totalorder %s187, %s189
      %p193 = scmp.eq.s32.totalorder %s27, 0
      %p194 = por %p192, %p193
      %p195 = scmp.ne.s32.totalorder %s187, %s189
      %p196 = scmp.eq.s32.totalorder %s32, 1
      %p197 = por %p195, %p196
      %p198 = scmp.ne.s32.totalorder %s189, %s190
      %p199 = scmp.eq.s32.totalorder %s32, 0
      %p200 = por %p198, %p199
      %p201 = scmp.ne.s32.totalorder %s189, %s190
      %p202 = scmp.eq.s32.totalorder %s33, 1
      %p203 = por %p201, %p202
      %p205 = scmp.ne.s32.totalorder %s190, %s204
      %p206 = scmp.eq.s32.totalorder %s33, 0
      %p207 = por %p205, %p206
      %s209 = sadd.s32 %s208, 1
      %p212 = scmp.eq.s32.totalorder %s27, 1
      %p213 = scmp.ne.s32.totalorder %s208, %s210
      %p214 = scmp.eq.s32.totalorder %s27, 0
      %p215 = por %p213, %p214
      %p216 = scmp.ne.s32.totalorder %s208, %s210
      %p217 = scmp.eq.s32.totalorder %s32, 1
      %p218 = por %p216, %p217
      %p219 = scmp.ne.s32.totalorder %s210, %s211
      %p220 = scmp.eq.s32.totalorder %s32, 0
      %p221 = por %p219, %p220
      %p222 = scmp.ne.s32.totalorder %s210, %s211
      %p223 = scmp.eq.s32.totalorder %s33, 1
      %p224 = por %p222, %p223
      %p226 = scmp.ne.s32.totalorder %s211, %s225
      %p227 = scmp.eq.s32.totalorder %s33, 0
      %p228 = por %p226, %p227
      %s230 = sadd.s32 %s229, 1
      %p233 = scmp.eq.s32.totalorder %s27, 1
      %p234 = scmp.ne.s32.totalorder %s229, %s231
      %p235 = scmp.eq.s32.totalorder %s27, 0
      %p236 = por %p234, %p235
      %p237 = scmp.ne.s32.totalorder %s229, %s231
      %p238 = scmp.eq.s32.totalorder %s32, 1
      %p239 = por %p237, %p238
      %p240 = scmp.ne.s32.totalorder %s231, %s232
      %p241 = scmp.eq.s32.totalorder %s32, 0
      %p242 = por %p240, %p241
      %p243 = scmp.ne.s32.totalorder %s231, %s232
      %p244 = scmp.eq.s32.totalorder %s33, 1
      %p245 = por %p243, %p244
      %p247 = scmp.ne.s32.totalorder %s232, %s246
      %p248 = scmp.eq.s32.totalorder %s33, 0
      %p249 = por %p247, %p248
      %s251 = sadd.s32 %s250, 1
      %p254 = scmp.eq.s32.totalorder %s27, 1
      %p255 = scmp.ne.s32.totalorder %s250, %s252
      %p256 = scmp.eq.s32.totalorder %s27, 0
      %p257 = por %p255, %p256
      %p258 = scmp.ne.s32.totalorder %s250, %s252
      %p259 = scmp.eq.s32.totalorder %s32, 1
      %p260 = por %p258, %p259
      %p261 = scmp.ne.s32.totalorder %s252, %s253
      %p262 = scmp.eq.s32.totalorder %s32, 0
      %p263 = por %p261, %p262
      %p264 = scmp.ne.s32.totalorder %s252, %s253
      %p265 = scmp.eq.s32.totalorder %s33, 1
      %p266 = por %p264, %p265
      %p268 = scmp.ne.s32.totalorder %s253, %s267
      %p269 = scmp.eq.s32.totalorder %s33, 0
      %p270 = por %p268, %p269
      %s272 = sadd.s32 %s271, 1
      %p275 = scmp.eq.s32.totalorder %s27, 1
      %p276 = scmp.ne.s32.totalorder %s271, %s273
      %p277 = scmp.eq.s32.totalorder %s27, 0
      %p278 = por %p276, %p277
      %p279 = scmp.ne.s32.totalorder %s271, %s273
      %p280 = scmp.eq.s32.totalorder %s32, 1
      %p281 = por %p279, %p280
      %p282 = scmp.ne.s32.totalorder %s273, %s274
      %p283 = scmp.eq.s32.totalorder %s32, 0
      %p284 = por %p282, %p283
      %p285 = scmp.ne.s32.totalorder %s273, %s274
      %p286 = scmp.eq.s32.totalorder %s33, 1
      %p287 = por %p285, %p286
      %p289 = scmp.ne.s32.totalorder %s274, %s288
      %p290 = scmp.eq.s32.totalorder %s33, 0
      %p291 = por %p289, %p290
      %s293 = sadd.s32 %s292, 1
      %p296 = scmp.eq.s32.totalorder %s27, 1
      %p297 = scmp.ne.s32.totalorder %s292, %s294
      %p298 = scmp.eq.s32.totalorder %s27, 0
      %p299 = por %p297, %p298
      %p300 = scmp.ne.s32.totalorder %s292, %s294
      %p301 = scmp.eq.s32.totalorder %s32, 1
      %p302 = por %p300, %p301
      %p303 = scmp.ne.s32.totalorder %s294, %s295
      %p304 = scmp.eq.s32.totalorder %s32, 0
      %p305 = por %p303, %p304
      %p306 = scmp.ne.s32.totalorder %s294, %s295
      %p307 = scmp.eq.s32.totalorder %s33, 1
      %p308 = por %p306, %p307
      %p310 = scmp.ne.s32.totalorder %s295, %s309
      %p311 = scmp.eq.s32.totalorder %s33, 0
      %p312 = por %p310, %p311
      %s314 = sadd.s32 %s313, 1
      %p317 = scmp.eq.s32.totalorder %s27, 1
      %p318 = scmp.ne.s32.totalorder %s313, %s315
      %p319 = scmp.eq.s32.totalorder %s27, 0
      %p320 = por %p318, %p319
      %p321 = scmp.ne.s32.totalorder %s313, %s315
      %p322 = scmp.eq.s32.totalorder %s32, 1
      %p323 = por %p321, %p322
      %p324 = scmp.ne.s32.totalorder %s315, %s316
      %p325 = scmp.eq.s32.totalorder %s32, 0
      %p326 = por %p324, %p325
      %p327 = scmp.ne.s32.totalorder %s315, %s316
      %p328 = scmp.eq.s32.totalorder %s33, 1
      %p329 = por %p327, %p328
      %p331 = scmp.ne.s32.totalorder %s316, %s330
      %p332 = scmp.eq.s32.totalorder %s33, 0
      %p333 = por %p331, %p332
      %s335 = sadd.s32 %s334, 1
      %p338 = scmp.eq.s32.totalorder %s27, 1
      %p339 = scmp.ne.s32.totalorder %s334, %s336
      %p340 = scmp.eq.s32.totalorder %s27, 0
      %p341 = por %p339, %p340
      %p342 = scmp.ne.s32.totalorder %s334, %s336
      %p343 = scmp.eq.s32.totalorder %s32, 1
      %p344 = por %p342, %p343
      %p345 = scmp.ne.s32.totalorder %s336, %s337
      %p346 = scmp.eq.s32.totalorder %s32, 0
      %p347 = por %p345, %p346
      %p348 = scmp.ne.s32.totalorder %s336, %s337
      %p349 = scmp.eq.s32.totalorder %s33, 1
      %p350 = por %p348, %p349
      %p352 = scmp.ne.s32.totalorder %s337, %s351
      %p353 = scmp.eq.s32.totalorder %s33, 0
      %p354 = por %p352, %p353
      %s355 = ssub.s32 %s27, %s34
      %p356 = scmp.eq.s32.totalorder %s355, 0
      %s358 = sadd.s32 %s357, 1
      %s359 = scalar_select %p356, %s357, %s358
      %p362 = pneg %p356
      %p363 = scmp.eq.s32.totalorder %s27, 1
      %p364 = por %p362, %p363
      %p365 = scmp.ne.s32.totalorder %s357, %s360
      %p366 = scmp.eq.s32.totalorder %s27, 0
      %p367 = por %p365, %p366
      %p368 = scmp.ne.s32.totalorder %s357, %s360
      %p369 = scmp.eq.s32.totalorder %s32, 1
      %p370 = por %p368, %p369
      %p371 = scmp.ne.s32.totalorder %s360, %s361
      %p372 = scmp.eq.s32.totalorder %s32, 0
      %p373 = por %p371, %p372
      %p374 = scmp.ne.s32.totalorder %s360, %s361
      %p375 = scmp.eq.s32.totalorder %s33, 1
      %p376 = por %p374, %p375
      %p378 = scmp.ne.s32.totalorder %s361, %s377
      %p379 = scmp.eq.s32.totalorder %s33, 0
      %p380 = por %p378, %p379
      %p381 = scmp.le.s32.totalorder 1, %s27
      %p382 = scmp.lt.s32.totalorder %s27, 3
      %p383 = pnand %p381, %p382
      %p384 = pneg %p383
      // Predicated region
      $region9: #{tpu_custom_call.1} parent=5 // pred_check
        _
      $region10: #{tpu_custom_call.1} parent=5 // pred_check_branch
        %386 = sbr.rel (%p383) target = $region12
      $region11: #{tpu_custom_call.1} parent=5 // pred_region
        %s387 = ssub.s32 %s27, 1
        // Predicated region
        $region13: #{tpu_custom_call.1} parent=11 // pred_check
          %p388 = pneg %p74
        $region14: #{tpu_custom_call.1} parent=11 // pred_check_branch
          %390 = sbr.rel (%p388) target = $region16
        $region15: #{tpu_custom_call.1} parent=11 // pred_region
          _
        $region16: #{tpu_custom_call.1} parent=11 // pred_fallthru
          _
        // Predicated region
        $region17: #{tpu_custom_call.1} parent=11 // pred_check
          %p391 = pneg %p95
        $region18: #{tpu_custom_call.1} parent=11 // pred_check_branch
          %393 = sbr.rel (%p391) target = $region20
        $region19: #{tpu_custom_call.1} parent=11 // pred_region
          _
        $region20: #{tpu_custom_call.1} parent=11 // pred_fallthru
          _
        // Predicated region
        $region21: #{tpu_custom_call.1} parent=11 // pred_check
          %p394 = pneg %p116
        $region22: #{tpu_custom_call.1} parent=11 // pred_check_branch
          %396 = sbr.rel (%p394) target = $region24
        $region23: #{tpu_custom_call.1} parent=11 // pred_region
          _
        $region24: #{tpu_custom_call.1} parent=11 // pred_fallthru
          _
        // Predicated region
        $region25: #{tpu_custom_call.1} parent=11 // pred_check
          %p397 = pneg %p137
        $region26: #{tpu_custom_call.1} parent=11 // pred_check_branch
          %399 = sbr.rel (%p397) target = $region28
        $region27: #{tpu_custom_call.1} parent=11 // pred_region
          _
        $region28: #{tpu_custom_call.1} parent=11 // pred_fallthru
          _
        // Predicated region
        $region29: #{tpu_custom_call.1} parent=11 // pred_check
          %p400 = pneg %p158
        $region30: #{tpu_custom_call.1} parent=11 // pred_check_branch
          %402 = sbr.rel (%p400) target = $region32
        $region31: #{tpu_custom_call.1} parent=11 // pred_region
          _
        $region32: #{tpu_custom_call.1} parent=11 // pred_fallthru
          _
        // Predicated region
        $region33: #{tpu_custom_call.1} parent=11 // pred_check
          %p403 = pneg %p179
        $region34: #{tpu_custom_call.1} parent=11 // pred_check_branch
          %405 = sbr.rel (%p403) target = $region36
        $region35: #{tpu_custom_call.1} parent=11 // pred_region
          _
        $region36: #{tpu_custom_call.1} parent=11 // pred_fallthru
          _
        // Predicated region
        $region37: #{tpu_custom_call.1} parent=11 // pred_check
          %p406 = pneg %p200
        $region38: #{tpu_custom_call.1} parent=11 // pred_check_branch
          %408 = sbr.rel (%p406) target = $region40
        $region39: #{tpu_custom_call.1} parent=11 // pred_region
          _
        $region40: #{tpu_custom_call.1} parent=11 // pred_fallthru
          _
        // Predicated region
        $region41: #{tpu_custom_call.1} parent=11 // pred_check
          %p409 = pneg %p221
        $region42: #{tpu_custom_call.1} parent=11 // pred_check_branch
          %411 = sbr.rel (%p409) target = $region44
        $region43: #{tpu_custom_call.1} parent=11 // pred_region
          _
        $region44: #{tpu_custom_call.1} parent=11 // pred_fallthru
          _
        // Predicated region
        $region45: #{tpu_custom_call.1} parent=11 // pred_check
          %p412 = pneg %p242
        $region46: #{tpu_custom_call.1} parent=11 // pred_check_branch
          %414 = sbr.rel (%p412) target = $region48
        $region47: #{tpu_custom_call.1} parent=11 // pred_region
          _
        $region48: #{tpu_custom_call.1} parent=11 // pred_fallthru
          _
        // Predicated region
        $region49: #{tpu_custom_call.1} parent=11 // pred_check
          %p415 = pneg %p263
        $region50: #{tpu_custom_call.1} parent=11 // pred_check_branch
          %417 = sbr.rel (%p415) target = $region52
        $region51: #{tpu_custom_call.1} parent=11 // pred_region
          _
        $region52: #{tpu_custom_call.1} parent=11 // pred_fallthru
          _
        // Predicated region
        $region53: #{tpu_custom_call.1} parent=11 // pred_check
          %p418 = pneg %p284
        $region54: #{tpu_custom_call.1} parent=11 // pred_check_branch
          %420 = sbr.rel (%p418) target = $region56
        $region55: #{tpu_custom_call.1} parent=11 // pred_region
          _
        $region56: #{tpu_custom_call.1} parent=11 // pred_fallthru
          _
        // Predicated region
        $region57: #{tpu_custom_call.1} parent=11 // pred_check
          %p421 = pneg %p305
        $region58: #{tpu_custom_call.1} parent=11 // pred_check_branch
          %423 = sbr.rel (%p421) target = $region60
        $region59: #{tpu_custom_call.1} parent=11 // pred_region
          _
        $region60: #{tpu_custom_call.1} parent=11 // pred_fallthru
          _
        // Predicated region
        $region61: #{tpu_custom_call.1} parent=11 // pred_check
          %p424 = pneg %p326
        $region62: #{tpu_custom_call.1} parent=11 // pred_check_branch
          %426 = sbr.rel (%p424) target = $region64
        $region63: #{tpu_custom_call.1} parent=11 // pred_region
          _
        $region64: #{tpu_custom_call.1} parent=11 // pred_fallthru
          _
        // Predicated region
        $region65: #{tpu_custom_call.1} parent=11 // pred_check
          %p427 = pneg %p347
        $region66: #{tpu_custom_call.1} parent=11 // pred_check_branch
          %429 = sbr.rel (%p427) target = $region68
        $region67: #{tpu_custom_call.1} parent=11 // pred_region
          _
        $region68: #{tpu_custom_call.1} parent=11 // pred_fallthru
          _
      $region12: #{tpu_custom_call.1} parent=5 // pred_fallthru
        _
      %p430 = scmp.lt.s32.totalorder %s27, 2
      // Predicated region
      $region69: #{tpu_custom_call.1} parent=5 // pred_check
        %p431 = pneg %p430
      $region70: #{tpu_custom_call.1} parent=5 // pred_check_branch
        %433 = sbr.rel (%p431) target = $region72
      $region71: #{tpu_custom_call.1} parent=5 // pred_region
        // Predicated region
        $region73: #{tpu_custom_call.1} parent=71 // pred_check
          %p434 = pneg %p47
        $region74: #{tpu_custom_call.1} parent=71 // pred_check_branch
          %436 = sbr.rel (%p434) target = $region76
        $region75: #{tpu_custom_call.1} parent=71 // pred_region
          %s437 = sand.u32 %s37, 1
          %s438 = scalar_lea.sflag [#allocation3], %s437
          %s439 = sand.u32 %s37, 1
          %s440 = smul.addr %s439, 16
          %s441 = scalar_lea.vmem [#allocation2], %s440
          %s442 = smul.u32 2, %s27
          %s444 = ssub.s32 256, 256
          %445 = vsyncadd %s438, %s444
          %s446 = smul.addr %s442, 128
          %s447 = scalar_lea.hbm %s0, %s446
          %s448 = sshll.u32 %s441, 4
          %s449 = int_to_ptr.vmem [resolvable:$true] %s448
          %454 = dma.hbm_to_vmem [thread:$0]  %s447, 256, %s449, %s438, 128, 128, 8
        $region76: #{tpu_custom_call.1} parent=71 // pred_fallthru
          _
      $region72: #{tpu_custom_call.1} parent=5 // pred_fallthru
        _
      %p455 = scmp.le.s32.totalorder 1, %s27
      %p456 = scmp.lt.s32.totalorder %s27, 3
      %p457 = pnand %p455, %p456
      %p458 = pneg %p457
      // Predicated region
      $region77: #{tpu_custom_call.1} parent=5 // pred_check
        _
      $region78: #{tpu_custom_call.1} parent=5 // pred_check_branch
        %460 = sbr.rel (%p457) target = $region80
      $region79: #{tpu_custom_call.1} parent=5 // pred_region
        %s461 = ssub.s32 %s27, 1
        %s462 = sand.u32 %s40, 1
        %s463 = scalar_lea.sflag [#allocation3], %s462
        %s464 = sand.u32 %s40, 1
        %s465 = smul.addr %s464, 16
        %s466 = scalar_lea.vmem [#allocation2], %s465
        // Predicated region
        $region81: #{tpu_custom_call.1} parent=79 // pred_check
          %p467 = pneg %p53
        $region82: #{tpu_custom_call.1} parent=79 // pred_check_branch
          %469 = sbr.rel (%p467) target = $region84
        $region83: #{tpu_custom_call.1} parent=79 // pred_region
          %470 = dma.done %s463, 256
        $region84: #{tpu_custom_call.1} parent=79 // pred_fallthru
          _
        %s471 = sand.u32 %s40, 1
        %s472 = scalar_lea.sflag [#allocation3], %s471
        %s473 = sand.u32 %s40, 1
        %s474 = smul.addr %s473, 16
        %s475 = scalar_lea.vmem [#allocation2], %s474
        %p476 = pneg %p53
        %p477 = pneg %p50
        %p478 = pneg %p74
        %p479 = pneg %p71
        %p480 = pneg %p95
        %p481 = pneg %p92
        %p482 = pneg %p116
        %p483 = pneg %p113
        %p484 = pneg %p137
        %p485 = pneg %p134
        %p486 = pneg %p158
        %p487 = pneg %p155
        %p488 = pneg %p179
        %p489 = pneg %p176
        %p490 = pneg %p200
        %p491 = pneg %p197
        %p492 = pneg %p221
        %p493 = pneg %p218
        %p494 = pneg %p242
        %p495 = pneg %p239
        %p496 = pneg %p263
        %p497 = pneg %p260
        %p498 = pneg %p284
        %p499 = pneg %p281
        %p500 = pneg %p305
        %p501 = pneg %p302
        %p502 = pneg %p326
        %p503 = pneg %p323
        %p504 = pneg %p347
        %p505 = pneg %p344
        %p506 = pneg %p373
        %p507 = pneg %p370
        %s508 = sand.u32 %s360, 1
        %s509 = scalar_lea.sflag [#allocation4], %s508
        %s510 = sand.u32 %s360, 1
        %s511 = smul.addr %s510, 16
        %s512 = scalar_lea.vmem [#allocation5], %s511
        %s513 = smul.u32 2, %s32
        %s514 = smul.u32 2, %s32
        %v515 = vld [vmem:[%s466] sm:$0xff]
        %v516 = vld [vmem:[%s466 + $0x8] sm:$0xff]
        %v517 = vld [vmem:[%s1] sm:$0xff]
        %v518 = vld [vmem:[%s1 + $0x8] sm:$0xff]
        %v519 = vld [vmem:[%s1 + $0x10] sm:$0xff]
        %v520 = vld [vmem:[%s1 + $0x18] sm:$0xff]
        %v521 = vld [vmem:[%s2] sm:$0x1]
        %v523 = vlaneseq
        %v524 = vshrl.u32 %v523, 7
        %v525 = vsub.s32 0, %v524
        %v526 = vrot.slane %v521, %v525
        %vm528 = vcmask 261120
        %v530 = vsel %vm528, %v515, 0
        %v533 = vsel %vm528, %v516, 0
        %535 = vmatprep.subr.mxu0 0.0
        %536 = vmatpush1.msra.mxu0 %v517
        %537 = vmatprep.subr.mxu0 0.0
        %538 = vmatpush1.msra.mxu0 %v518
        %539 = vmatprep.subr.mxu0 0.0
        %540 = vmatpush1.msra.mxu0 %v519
        %541 = vmatprep.subr.mxu0 0.0
        %542 = vmatpush1.msra.mxu0 %v520
        %543 = vmatprep.subr.mxu0 0.0
        %544 = vmatpush1.msra.mxu0 0.0
        %545 = vmatprep.subr.mxu0 0.0
        %546 = vmatpush1.msra.mxu0 0.0
        %547 = vmatprep.subr.mxu0 0.0
        %548 = vmatpush1.msra.mxu0 0.0
        %549 = vmatprep.subr.mxu0 0.0
        %550 = vmatpush1.msra.mxu0 0.0
        %551 = vmatprep.subr.mxu0 0.0
        %552 = vmatpush1.msra.mxu0 0.0
        %553 = vmatprep.subr.mxu0 0.0
        %554 = vmatpush1.msra.mxu0 0.0
        %555 = vmatprep.subr.mxu0 0.0
        %556 = vmatpush1.msra.mxu0 0.0
        %557 = vmatprep.subr.mxu0 0.0
        %558 = vmatpush1.msra.mxu0 0.0
        %559 = vmatprep.subr.mxu0 0.0
        %560 = vmatpush1.msra.mxu0 0.0
        %561 = vmatprep.subr.mxu0 0.0
        %562 = vmatpush1.msra.mxu0 0.0
        %563 = vmatprep.subr.mxu0 0.0
        %564 = vmatpush1.msra.mxu0 0.0
        %565 = vmatprep.subr.mxu0 0.0
        %566 = vmatpush1.msra.mxu0 0.0
        %567 = vmatprep.subr.mxu0 0.0
        %568 = vmatpush1.msra.mxu0 0.0
        %569 = vmatprep.subr.mxu0 0.0
        %570 = vmatpush1.msra.mxu0 0.0
        %571 = vmatprep.subr.mxu0 0.0
        %572 = vmatpush1.msra.mxu0 0.0
        %573 = vmatprep.subr.mxu0 0.0
        %574 = vmatpush1.msra.mxu0 0.0
        %575 = vmatprep.subr.mxu0 0.0
        %576 = vmatpush1.msra.mxu0 0.0
        %577 = vmatprep.subr.mxu0 0.0
        %578 = vmatpush1.msra.mxu0 0.0
        %579 = vmatprep.subr.mxu0 0.0
        %580 = vmatpush1.msra.mxu0 0.0
        %581 = vmatprep.subr.mxu0 0.0
        %582 = vmatpush1.msra.mxu0 0.0
        %583 = vmatprep.subr.mxu0 0.0
        %584 = vmatpush1.msra.mxu0 0.0
        %585 = vmatprep.subr.mxu0 0.0
        %586 = vmatpush1.msra.mxu0 0.0
        %587 = vmatprep.subr.mxu0 0.0
        %588 = vmatpush1.msra.mxu0 0.0
        %589 = vmatprep.subr.mxu0 0.0
        %590 = vmatpush1.msra.mxu0 0.0
        %591 = vmatprep.subr.mxu0 0.0
        %592 = vmatpush1.msra.mxu0 0.0
        %593 = vmatprep.subr.mxu0 0.0
        %594 = vmatpush1.msra.mxu0 0.0
        %595 = vmatprep.subr.mxu0 0.0
        %596 = vmatpush1.msra.mxu0 0.0
        %597 = vmatprep.subr.mxu0 0.0
        %598 = vmatpush1.msra.mxu0 0.0
        %599 = vmatprep.mubr.f32.mxu0 0.0
        %600 = vmatmul.mubr.f32.gmra.mrb[0].mxu0 %v530
        %v601 = vpop.f32.mrb[0].mxu0
        %v602 = vadd.f32 %v526, %v601
        %v603 = vpop.f32.mrb[0].mxu0
        %604 = vmatprep.mubr.f32.mxu0 0.0
        %605 = vmatmul.mubr.f32.gmra.mrb[0].mxu0 %v533
        %v606 = vpop.f32.mrb[0].mxu0
        %v607 = vadd.f32 %v526, %v606
        %v608 = vpop.f32.mrb[0].mxu0
        %609 = vdwg.mxu0
        %612 = vrot.lane.b32.xlu0 %v602, 120
        %v613 = vpop.permute.xlu0 %612
        %614 = vrot.lane.b32.xlu0 %v607, 120
        %v615 = vpop.permute.xlu0 %614
        %616 = vrot.lane.b32.xlu0 %v602, 112
        %v617 = vpop.permute.xlu0 %616
        %618 = vrot.lane.b32.xlu0 %v607, 112
        %v619 = vpop.permute.xlu0 %618
        %620 = vrot.lane.b32.xlu0 %v602, 104
        %v621 = vpop.permute.xlu0 %620
        %622 = vrot.lane.b32.xlu0 %v607, 104
        %v623 = vpop.permute.xlu0 %622
        %624 = vrot.lane.b32.xlu0 %v602, 96
        %v625 = vpop.permute.xlu0 %624
        %626 = vrot.lane.b32.xlu0 %v607, 96
        %v627 = vpop.permute.xlu0 %626
        %vm628 = vcmask 64512
        %v629 = vsel %vm628, %v602, 0
        %v631 = vsel %vm628, %v607, 0
        %v633 = vsel %vm628, %v625, 0
        %v635 = vsel %vm628, %v627, 0
        %637 = vmatprep.subr.mxu0 0.0
        %638 = vmatpush1.xpose.msra.mxu0 %v633
        %639 = vmatprep.subr.mxu0 0.0
        %640 = vmatpush1.xpose.msra.mxu0 %v635
        %641 = vmatprep.subr.mxu0 0.0
        %642 = vmatpush1.xpose.msra.mxu0 0.0
        %643 = vmatprep.subr.mxu0 0.0
        %644 = vmatpush1.xpose.msra.mxu0 0.0
        %645 = vmatprep.subr.mxu0 0.0
        %646 = vmatpush1.xpose.msra.mxu0 0.0
        %647 = vmatprep.subr.mxu0 0.0
        %648 = vmatpush1.xpose.msra.mxu0 0.0
        %649 = vmatprep.subr.mxu0 0.0
        %650 = vmatpush1.xpose.msra.mxu0 0.0
        %651 = vmatprep.subr.mxu0 0.0
        %652 = vmatpush1.xpose.msra.mxu0 0.0
        %653 = vmatprep.subr.mxu0 0.0
        %654 = vmatpush1.xpose.msra.mxu0 0.0
        %655 = vmatprep.subr.mxu0 0.0
        %656 = vmatpush1.xpose.msra.mxu0 0.0
        %657 = vmatprep.subr.mxu0 0.0
        %658 = vmatpush1.xpose.msra.mxu0 0.0
        %659 = vmatprep.subr.mxu0 0.0
        %660 = vmatpush1.xpose.msra.mxu0 0.0
        %661 = vmatprep.subr.mxu0 0.0
        %662 = vmatpush1.xpose.msra.mxu0 0.0
        %663 = vmatprep.subr.mxu0 0.0
        %664 = vmatpush1.xpose.msra.mxu0 0.0
        %665 = vmatprep.subr.mxu0 0.0
        %666 = vmatpush1.xpose.msra.mxu0 0.0
        %667 = vmatprep.subr.mxu0 0.0
        %668 = vmatpush1.xpose.msra.mxu0 0.0
        %669 = vmatprep.subr.mxu0 0.0
        %670 = vmatpush1.xpose.msra.mxu0 0.0
        %671 = vmatprep.subr.mxu0 0.0
        %672 = vmatpush1.xpose.msra.mxu0 0.0
        %673 = vmatprep.subr.mxu0 0.0
        %674 = vmatpush1.xpose.msra.mxu0 0.0
        %675 = vmatprep.subr.mxu0 0.0
        %676 = vmatpush1.xpose.msra.mxu0 0.0
        %677 = vmatprep.subr.mxu0 0.0
        %678 = vmatpush1.xpose.msra.mxu0 0.0
        %679 = vmatprep.subr.mxu0 0.0
        %680 = vmatpush1.xpose.msra.mxu0 0.0
        %681 = vmatprep.subr.mxu0 0.0
        %682 = vmatpush1.xpose.msra.mxu0 0.0
        %683 = vmatprep.subr.mxu0 0.0
        %684 = vmatpush1.xpose.msra.mxu0 0.0
        %685 = vmatprep.subr.mxu0 0.0
        %686 = vmatpush1.xpose.msra.mxu0 0.0
        %687 = vmatprep.subr.mxu0 0.0
        %688 = vmatpush1.xpose.msra.mxu0 0.0
        %689 = vmatprep.subr.mxu0 0.0
        %690 = vmatpush1.xpose.msra.mxu0 0.0
        %691 = vmatprep.subr.mxu0 0.0
        %692 = vmatpush1.xpose.msra.mxu0 0.0
        %693 = vmatprep.subr.mxu0 0.0
        %694 = vmatpush1.xpose.msra.mxu0 0.0
        %695 = vmatprep.subr.mxu0 0.0
        %696 = vmatpush1.xpose.msra.mxu0 0.0
        %697 = vmatprep.subr.mxu0 0.0
        %698 = vmatpush1.xpose.msra.mxu0 0.0
        %699 = vmatprep.subr.mxu0 0.0
        %700 = vmatpush1.xpose.msra.mxu0 0.0
        %701 = vmatprep.mubr.f32.mxu0 0.0
        %702 = vmatmul.mubr.f32.gmra.mrb[0].mxu0 %v629
        %v703 = vpop.f32.mrb[0].mxu0
        %v704 = vadd.f32 0.0, %v703
        %v705 = vpop.f32.mrb[0].mxu0
        %706 = vmatprep.mubr.f32.mxu0 0.0
        %707 = vmatmul.mubr.f32.gmra.mrb[0].mxu0 %v631
        %v708 = vpop.f32.mrb[0].mxu0
        %v709 = vadd.f32 0.0, %v708
        %v710 = vpop.f32.mrb[0].mxu0
        %711 = vdwg.mxu0
        %712 = vrot.lane.b32.xlu0 %v613, 96
        %v713 = vpop.permute.xlu0 %712
        %714 = vrot.lane.b32.xlu0 %v615, 96
        %v715 = vpop.permute.xlu0 %714
        %v716 = vsel %vm628, %v613, 0
        %v718 = vsel %vm628, %v615, 0
        %v720 = vsel %vm628, %v713, 0
        %v722 = vsel %vm628, %v715, 0
        %724 = vmatprep.subr.mxu0 0.0
        %725 = vmatpush1.xpose.msra.mxu0 %v720
        %726 = vmatprep.subr.mxu0 0.0
        %727 = vmatpush1.xpose.msra.mxu0 %v722
        %728 = vmatprep.subr.mxu0 0.0
        %729 = vmatpush1.xpose.msra.mxu0 0.0
        %730 = vmatprep.subr.mxu0 0.0
        %731 = vmatpush1.xpose.msra.mxu0 0.0
        %732 = vmatprep.subr.mxu0 0.0
        %733 = vmatpush1.xpose.msra.mxu0 0.0
        %734 = vmatprep.subr.mxu0 0.0
        %735 = vmatpush1.xpose.msra.mxu0 0.0
        %736 = vmatprep.subr.mxu0 0.0
        %737 = vmatpush1.xpose.msra.mxu0 0.0
        %738 = vmatprep.subr.mxu0 0.0
        %739 = vmatpush1.xpose.msra.mxu0 0.0
        %740 = vmatprep.subr.mxu0 0.0
        %741 = vmatpush1.xpose.msra.mxu0 0.0
        %742 = vmatprep.subr.mxu0 0.0
        %743 = vmatpush1.xpose.msra.mxu0 0.0
        %744 = vmatprep.subr.mxu0 0.0
        %745 = vmatpush1.xpose.msra.mxu0 0.0
        %746 = vmatprep.subr.mxu0 0.0
        %747 = vmatpush1.xpose.msra.mxu0 0.0
        %748 = vmatprep.subr.mxu0 0.0
        %749 = vmatpush1.xpose.msra.mxu0 0.0
        %750 = vmatprep.subr.mxu0 0.0
        %751 = vmatpush1.xpose.msra.mxu0 0.0
        %752 = vmatprep.subr.mxu0 0.0
        %753 = vmatpush1.xpose.msra.mxu0 0.0
        %754 = vmatprep.subr.mxu0 0.0
        %755 = vmatpush1.xpose.msra.mxu0 0.0
        %756 = vmatprep.subr.mxu0 0.0
        %757 = vmatpush1.xpose.msra.mxu0 0.0
        %758 = vmatprep.subr.mxu0 0.0
        %759 = vmatpush1.xpose.msra.mxu0 0.0
        %760 = vmatprep.subr.mxu0 0.0
        %761 = vmatpush1.xpose.msra.mxu0 0.0
        %762 = vmatprep.subr.mxu0 0.0
        %763 = vmatpush1.xpose.msra.mxu0 0.0
        %764 = vmatprep.subr.mxu0 0.0
        %765 = vmatpush1.xpose.msra.mxu0 0.0
        %766 = vmatprep.subr.mxu0 0.0
        %767 = vmatpush1.xpose.msra.mxu0 0.0
        %768 = vmatprep.subr.mxu0 0.0
        %769 = vmatpush1.xpose.msra.mxu0 0.0
        %770 = vmatprep.subr.mxu0 0.0
        %771 = vmatpush1.xpose.msra.mxu0 0.0
        %772 = vmatprep.subr.mxu0 0.0
        %773 = vmatpush1.xpose.msra.mxu0 0.0
        %774 = vmatprep.subr.mxu0 0.0
        %775 = vmatpush1.xpose.msra.mxu0 0.0
        %776 = vmatprep.subr.mxu0 0.0
        %777 = vmatpush1.xpose.msra.mxu0 0.0
        %778 = vmatprep.subr.mxu0 0.0
        %779 = vmatpush1.xpose.msra.mxu0 0.0
        %780 = vmatprep.subr.mxu0 0.0
        %781 = vmatpush1.xpose.msra.mxu0 0.0
        %782 = vmatprep.subr.mxu0 0.0
        %783 = vmatpush1.xpose.msra.mxu0 0.0
        %784 = vmatprep.subr.mxu0 0.0
        %785 = vmatpush1.xpose.msra.mxu0 0.0
        %786 = vmatprep.subr.mxu0 0.0
        %787 = vmatpush1.xpose.msra.mxu0 0.0
        %788 = vmatprep.mubr.f32.mxu0 0.0
        %789 = vmatmul.mubr.f32.gmra.mrb[0].mxu0 %v716
        %v790 = vpop.f32.mrb[0].mxu0
        %v791 = vadd.f32 0.0, %v790
        %v792 = vpop.f32.mrb[0].mxu0
        %793 = vmatprep.mubr.f32.mxu0 0.0
        %794 = vmatmul.mubr.f32.gmra.mrb[0].mxu0 %v718
        %v795 = vpop.f32.mrb[0].mxu0
        %v796 = vadd.f32 0.0, %v795
        %v797 = vpop.f32.mrb[0].mxu0
        %798 = vdwg.mxu0
        %799 = vrot.lane.b32.xlu0 %v617, 96
        %v800 = vpop.permute.xlu0 %799
        %801 = vrot.lane.b32.xlu0 %v619, 96
        %v802 = vpop.permute.xlu0 %801
        %v803 = vsel %vm628, %v617, 0
        %v805 = vsel %vm628, %v619, 0
        %v807 = vsel %vm628, %v800, 0
        %v809 = vsel %vm628, %v802, 0
        %811 = vmatprep.subr.mxu0 0.0
        %812 = vmatpush1.xpose.msra.mxu0 %v807
        %813 = vmatprep.subr.mxu0 0.0
        %814 = vmatpush1.xpose.msra.mxu0 %v809
        %815 = vmatprep.subr.mxu0 0.0
        %816 = vmatpush1.xpose.msra.mxu0 0.0
        %817 = vmatprep.subr.mxu0 0.0
        %818 = vmatpush1.xpose.msra.mxu0 0.0
        %819 = vmatprep.subr.mxu0 0.0
        %820 = vmatpush1.xpose.msra.mxu0 0.0
        %821 = vmatprep.subr.mxu0 0.0
        %822 = vmatpush1.xpose.msra.mxu0 0.0
        %823 = vmatprep.subr.mxu0 0.0
        %824 = vmatpush1.xpose.msra.mxu0 0.0
        %825 = vmatprep.subr.mxu0 0.0
        %826 = vmatpush1.xpose.msra.mxu0 0.0
        %827 = vmatprep.subr.mxu0 0.0
        %828 = vmatpush1.xpose.msra.mxu0 0.0
        %829 = vmatprep.subr.mxu0 0.0
        %830 = vmatpush1.xpose.msra.mxu0 0.0
        %831 = vmatprep.subr.mxu0 0.0
        %832 = vmatpush1.xpose.msra.mxu0 0.0
        %833 = vmatprep.subr.mxu0 0.0
        %834 = vmatpush1.xpose.msra.mxu0 0.0
        %835 = vmatprep.subr.mxu0 0.0
        %836 = vmatpush1.xpose.msra.mxu0 0.0
        %837 = vmatprep.subr.mxu0 0.0
        %838 = vmatpush1.xpose.msra.mxu0 0.0
        %839 = vmatprep.subr.mxu0 0.0
        %840 = vmatpush1.xpose.msra.mxu0 0.0
        %841 = vmatprep.subr.mxu0 0.0
        %842 = vmatpush1.xpose.msra.mxu0 0.0
        %843 = vmatprep.subr.mxu0 0.0
        %844 = vmatpush1.xpose.msra.mxu0 0.0
        %845 = vmatprep.subr.mxu0 0.0
        %846 = vmatpush1.xpose.msra.mxu0 0.0
        %847 = vmatprep.subr.mxu0 0.0
        %848 = vmatpush1.xpose.msra.mxu0 0.0
        %849 = vmatprep.subr.mxu0 0.0
        %850 = vmatpush1.xpose.msra.mxu0 0.0
        %851 = vmatprep.subr.mxu0 0.0
        %852 = vmatpush1.xpose.msra.mxu0 0.0
        %853 = vmatprep.subr.mxu0 0.0
        %854 = vmatpush1.xpose.msra.mxu0 0.0
        %855 = vmatprep.subr.mxu0 0.0
        %856 = vmatpush1.xpose.msra.mxu0 0.0
        %857 = vmatprep.subr.mxu0 0.0
        %858 = vmatpush1.xpose.msra.mxu0 0.0
        %859 = vmatprep.subr.mxu0 0.0
        %860 = vmatpush1.xpose.msra.mxu0 0.0
        %861 = vmatprep.subr.mxu0 0.0
        %862 = vmatpush1.xpose.msra.mxu0 0.0
        %863 = vmatprep.subr.mxu0 0.0
        %864 = vmatpush1.xpose.msra.mxu0 0.0
        %865 = vmatprep.subr.mxu0 0.0
        %866 = vmatpush1.xpose.msra.mxu0 0.0
        %867 = vmatprep.subr.mxu0 0.0
        %868 = vmatpush1.xpose.msra.mxu0 0.0
        %869 = vmatprep.subr.mxu0 0.0
        %870 = vmatpush1.xpose.msra.mxu0 0.0
        %871 = vmatprep.subr.mxu0 0.0
        %872 = vmatpush1.xpose.msra.mxu0 0.0
        %873 = vmatprep.subr.mxu0 0.0
        %874 = vmatpush1.xpose.msra.mxu0 0.0
        %875 = vmatprep.mubr.f32.mxu0 0.0
        %876 = vmatmul.mubr.f32.gmra.mrb[0].mxu0 %v803
        %v877 = vpop.f32.mrb[0].mxu0
        %v878 = vadd.f32 0.0, %v877
        %v879 = vpop.f32.mrb[0].mxu0
        %880 = vmatprep.mubr.f32.mxu0 0.0
        %881 = vmatmul.mubr.f32.gmra.mrb[0].mxu0 %v805
        %v882 = vpop.f32.mrb[0].mxu0
        %v883 = vadd.f32 0.0, %v882
        %v884 = vpop.f32.mrb[0].mxu0
        %885 = vdwg.mxu0
        %886 = vrot.lane.b32.xlu0 %v621, 96
        %v887 = vpop.permute.xlu0 %886
        %888 = vrot.lane.b32.xlu0 %v623, 96
        %v889 = vpop.permute.xlu0 %888
        %v890 = vsel %vm628, %v621, 0
        %v892 = vsel %vm628, %v623, 0
        %v894 = vsel %vm628, %v887, 0
        %v896 = vsel %vm628, %v889, 0
        %898 = vmatprep.subr.mxu0 0.0
        %899 = vmatpush1.xpose.msra.mxu0 %v894
        %900 = vmatprep.subr.mxu0 0.0
        %901 = vmatpush1.xpose.msra.mxu0 %v896
        %902 = vmatprep.subr.mxu0 0.0
        %903 = vmatpush1.xpose.msra.mxu0 0.0
        %904 = vmatprep.subr.mxu0 0.0
        %905 = vmatpush1.xpose.msra.mxu0 0.0
        %906 = vmatprep.subr.mxu0 0.0
        %907 = vmatpush1.xpose.msra.mxu0 0.0
        %908 = vmatprep.subr.mxu0 0.0
        %909 = vmatpush1.xpose.msra.mxu0 0.0
        %910 = vmatprep.subr.mxu0 0.0
        %911 = vmatpush1.xpose.msra.mxu0 0.0
        %912 = vmatprep.subr.mxu0 0.0
        %913 = vmatpush1.xpose.msra.mxu0 0.0
        %914 = vmatprep.subr.mxu0 0.0
        %915 = vmatpush1.xpose.msra.mxu0 0.0
        %916 = vmatprep.subr.mxu0 0.0
        %917 = vmatpush1.xpose.msra.mxu0 0.0
        %918 = vmatprep.subr.mxu0 0.0
        %919 = vmatpush1.xpose.msra.mxu0 0.0
        %920 = vmatprep.subr.mxu0 0.0
        %921 = vmatpush1.xpose.msra.mxu0 0.0
        %922 = vmatprep.subr.mxu0 0.0
        %923 = vmatpush1.xpose.msra.mxu0 0.0
        %924 = vmatprep.subr.mxu0 0.0
        %925 = vmatpush1.xpose.msra.mxu0 0.0
        %926 = vmatprep.subr.mxu0 0.0
        %927 = vmatpush1.xpose.msra.mxu0 0.0
        %928 = vmatprep.subr.mxu0 0.0
        %929 = vmatpush1.xpose.msra.mxu0 0.0
        %930 = vmatprep.subr.mxu0 0.0
        %931 = vmatpush1.xpose.msra.mxu0 0.0
        %932 = vmatprep.subr.mxu0 0.0
        %933 = vmatpush1.xpose.msra.mxu0 0.0
        %934 = vmatprep.subr.mxu0 0.0
        %935 = vmatpush1.xpose.msra.mxu0 0.0
        %936 = vmatprep.subr.mxu0 0.0
        %937 = vmatpush1.xpose.msra.mxu0 0.0
        %938 = vmatprep.subr.mxu0 0.0
        %939 = vmatpush1.xpose.msra.mxu0 0.0
        %940 = vmatprep.subr.mxu0 0.0
        %941 = vmatpush1.xpose.msra.mxu0 0.0
        %942 = vmatprep.subr.mxu0 0.0
        %943 = vmatpush1.xpose.msra.mxu0 0.0
        %944 = vmatprep.subr.mxu0 0.0
        %945 = vmatpush1.xpose.msra.mxu0 0.0
        %946 = vmatprep.subr.mxu0 0.0
        %947 = vmatpush1.xpose.msra.mxu0 0.0
        %948 = vmatprep.subr.mxu0 0.0
        %949 = vmatpush1.xpose.msra.mxu0 0.0
        %950 = vmatprep.subr.mxu0 0.0
        %951 = vmatpush1.xpose.msra.mxu0 0.0
        %952 = vmatprep.subr.mxu0 0.0
        %953 = vmatpush1.xpose.msra.mxu0 0.0
        %954 = vmatprep.subr.mxu0 0.0
        %955 = vmatpush1.xpose.msra.mxu0 0.0
        %956 = vmatprep.subr.mxu0 0.0
        %957 = vmatpush1.xpose.msra.mxu0 0.0
        %958 = vmatprep.subr.mxu0 0.0
        %959 = vmatpush1.xpose.msra.mxu0 0.0
        %960 = vmatprep.subr.mxu0 0.0
        %961 = vmatpush1.xpose.msra.mxu0 0.0
        %962 = vmatprep.mubr.f32.mxu0 0.0
        %963 = vmatmul.mubr.f32.gmra.mrb[0].mxu0 %v890
        %v964 = vpop.f32.mrb[0].mxu0
        %v965 = vadd.f32 0.0, %v964
        %v966 = vpop.f32.mrb[0].mxu0
        %967 = vmatprep.mubr.f32.mxu0 0.0
        %968 = vmatmul.mubr.f32.gmra.mrb[0].mxu0 %v892
        %v969 = vpop.f32.mrb[0].mxu0
        %v970 = vadd.f32 0.0, %v969
        %v971 = vpop.f32.mrb[0].mxu0
        %972 = vdwg.mxu0
        %v973 = vmul.f32 %v704, 0.35355338
        %v974 = vmul.f32 %v709, 0.35355338
        %v975 = vmul.f32 %v791, 0.35355338
        %v976 = vmul.f32 %v796, 0.35355338
        %v977 = vmul.f32 %v878, 0.35355338
        %v978 = vmul.f32 %v883, 0.35355338
        %v979 = vmul.f32 %v965, 0.35355338
        %v980 = vmul.f32 %v970, 0.35355338
        %vm981 = vcmask 130048
        %v982 = vsel %vm981, %v973, -inf
        %983 = vmax.xlane.f32.xlu0 %v982
        %v984 = vpop.xlane.xlu0 %983
        %v985 = vsel %vm981, %v974, -inf
        %986 = vmax.xlane.f32.xlu0 %v985
        %v987 = vpop.xlane.xlu0 %986
        %v988 = vsel %vm981, %v975, -inf
        %989 = vmax.xlane.f32.xlu0 %v988
        %v990 = vpop.xlane.xlu0 %989
        %v991 = vsel %vm981, %v976, -inf
        %992 = vmax.xlane.f32.xlu0 %v991
        %v993 = vpop.xlane.xlu0 %992
        %v994 = vsel %vm981, %v977, -inf
        %995 = vmax.xlane.f32.xlu0 %v994
        %v996 = vpop.xlane.xlu0 %995
        %v997 = vsel %vm981, %v978, -inf
        %998 = vmax.xlane.f32.xlu0 %v997
        %v999 = vpop.xlane.xlu0 %998
        %v1000 = vsel %vm981, %v979, -inf
        %1001 = vmax.xlane.f32.xlu0 %v1000
        %v1002 = vpop.xlane.xlu0 %1001
        %v1003 = vsel %vm981, %v980, -inf
        %1004 = vmax.xlane.f32.xlu0 %v1003
        %v1005 = vpop.xlane.xlu0 %1004
        %v1006 = vsub.f32 %v973, %v984
        %v1007 = vsub.f32 %v974, %v987
        %v1008 = vsub.f32 %v975, %v990
        %v1009 = vsub.f32 %v976, %v993
        %v1010 = vsub.f32 %v977, %v996
        %v1011 = vsub.f32 %v978, %v999
        %v1012 = vsub.f32 %v979, %v1002
        %v1013 = vsub.f32 %v980, %v1005
        %v1014 = vmul.f32 %v1006, 1.442695
        %v1015 = vpow.pop %v1014
        %v1016 = vmul.f32 %v1007, 1.442695
        %v1017 = vpow.pop %v1016
        %v1018 = vmul.f32 %v1008, 1.442695
        %v1019 = vpow.pop %v1018
        %v1020 = vmul.f32 %v1009, 1.442695
        %v1021 = vpow.pop %v1020
        %v1022 = vmul.f32 %v1010, 1.442695
        %v1023 = vpow.pop %v1022
        %v1024 = vmul.f32 %v1011, 1.442695
        %v1025 = vpow.pop %v1024
        %v1026 = vmul.f32 %v1012, 1.442695
        %v1027 = vpow.pop %v1026
        %v1028 = vmul.f32 %v1013, 1.442695
        %v1029 = vpow.pop %v1028
        %v1030 = vsel %vm981, %v1015, 0.0
        %1031 = vadd.xlane.f32.xlu0 %v1030
        %v1032 = vpop.xlane.xlu0 %1031
        %v1033 = vsel %vm981, %v1017, 0.0
        %1034 = vadd.xlane.f32.xlu0 %v1033
        %v1035 = vpop.xlane.xlu0 %1034
        %v1036 = vsel %vm981, %v1019, 0.0
        %1037 = vadd.xlane.f32.xlu0 %v1036
        %v1038 = vpop.xlane.xlu0 %1037
        %v1039 = vsel %vm981, %v1021, 0.0
        %1040 = vadd.xlane.f32.xlu0 %v1039
        %v1041 = vpop.xlane.xlu0 %1040
        %v1042 = vsel %vm981, %v1023, 0.0
        %1043 = vadd.xlane.f32.xlu0 %v1042
        %v1044 = vpop.xlane.xlu0 %1043
        %v1045 = vsel %vm981, %v1025, 0.0
        %1046 = vadd.xlane.f32.xlu0 %v1045
        %v1047 = vpop.xlane.xlu0 %1046
        %v1048 = vsel %vm981, %v1027, 0.0
        %1049 = vadd.xlane.f32.xlu0 %v1048
        %v1050 = vpop.xlane.xlu0 %1049
        %v1051 = vsel %vm981, %v1029, 0.0
        %1052 = vadd.xlane.f32.xlu0 %v1051
        %v1053 = vpop.xlane.xlu0 %1052
        %v1054 = vrcp.pop %v1032
        %v1055 = vrcp.pop %v1035
        %v1056 = vrcp.pop %v1038
        %v1057 = vrcp.pop %v1041
        %v1058 = vrcp.pop %v1044
        %v1059 = vrcp.pop %v1047
        %v1060 = vrcp.pop %v1050
        %v1061 = vrcp.pop %v1053
        %v1062 = vmul.f32 %v1015, %v1054
        %v1063 = vmul.f32 %v1017, %v1055
        %v1064 = vmul.f32 %v1019, %v1056
        %v1065 = vmul.f32 %v1021, %v1057
        %v1066 = vmul.f32 %v1023, %v1058
        %v1067 = vmul.f32 %v1025, %v1059
        %v1068 = vmul.f32 %v1027, %v1060
        %v1069 = vmul.f32 %v1029, %v1061
        %1070 = vrot.lane.b32.xlu0 %v602, 64
        %v1071 = vpop.permute.xlu0 %1070
        %1072 = vrot.lane.b32.xlu0 %v607, 64
        %v1073 = vpop.permute.xlu0 %1072
        %v1077 = vsel %vm981, %v1062, 0
        %v1080 = vsel %vm981, %v1063, 0
        %1082 = vmatprep.subr.mxu0 0.0
        %1083 = vmatpush1.msra.mxu0 %v1071
        %1084 = vmatprep.subr.mxu0 0.0
        %1085 = vmatpush1.msra.mxu0 %v1073
        %1086 = vmatprep.subr.mxu0 0.0
        %1087 = vmatpush1.msra.mxu0 0.0
        %1088 = vmatprep.subr.mxu0 0.0
        %1089 = vmatpush1.msra.mxu0 0.0
        %1090 = vmatprep.subr.mxu0 0.0
        %1091 = vmatpush1.msra.mxu0 0.0
        %1092 = vmatprep.subr.mxu0 0.0
        %1093 = vmatpush1.msra.mxu0 0.0
        %1094 = vmatprep.subr.mxu0 0.0
        %1095 = vmatpush1.msra.mxu0 0.0
        %1096 = vmatprep.subr.mxu0 0.0
        %1097 = vmatpush1.msra.mxu0 0.0
        %1098 = vmatprep.subr.mxu0 0.0
        %1099 = vmatpush1.msra.mxu0 0.0
        %1100 = vmatprep.subr.mxu0 0.0
        %1101 = vmatpush1.msra.mxu0 0.0
        %1102 = vmatprep.subr.mxu0 0.0
        %1103 = vmatpush1.msra.mxu0 0.0
        %1104 = vmatprep.subr.mxu0 0.0
        %1105 = vmatpush1.msra.mxu0 0.0
        %1106 = vmatprep.subr.mxu0 0.0
        %1107 = vmatpush1.msra.mxu0 0.0
        %1108 = vmatprep.subr.mxu0 0.0
        %1109 = vmatpush1.msra.mxu0 0.0
        %1110 = vmatprep.subr.mxu0 0.0
        %1111 = vmatpush1.msra.mxu0 0.0
        %1112 = vmatprep.subr.mxu0 0.0
        %1113 = vmatpush1.msra.mxu0 0.0
        %1114 = vmatprep.subr.mxu0 0.0
        %1115 = vmatpush1.msra.mxu0 0.0
        %1116 = vmatprep.subr.mxu0 0.0
        %1117 = vmatpush1.msra.mxu0 0.0
        %1118 = vmatprep.subr.mxu0 0.0
        %1119 = vmatpush1.msra.mxu0 0.0
        %1120 = vmatprep.subr.mxu0 0.0
        %1121 = vmatpush1.msra.mxu0 0.0
        %1122 = vmatprep.subr.mxu0 0.0
        %1123 = vmatpush1.msra.mxu0 0.0
        %1124 = vmatprep.subr.mxu0 0.0
        %1125 = vmatpush1.msra.mxu0 0.0
        %1126 = vmatprep.subr.mxu0 0.0
        %1127 = vmatpush1.msra.mxu0 0.0
        %1128 = vmatprep.subr.mxu0 0.0
        %1129 = vmatpush1.msra.mxu0 0.0
        %1130 = vmatprep.subr.mxu0 0.0
        %1131 = vmatpush1.msra.mxu0 0.0
        %1132 = vmatprep.subr.mxu0 0.0
        %1133 = vmatpush1.msra.mxu0 0.0
        %1134 = vmatprep.subr.mxu0 0.0
        %1135 = vmatpush1.msra.mxu0 0.0
        %1136 = vmatprep.subr.mxu0 0.0
        %1137 = vmatpush1.msra.mxu0 0.0
        %1138 = vmatprep.subr.mxu0 0.0
        %1139 = vmatpush1.msra.mxu0 0.0
        %1140 = vmatprep.subr.mxu0 0.0
        %1141 = vmatpush1.msra.mxu0 0.0
        %1142 = vmatprep.subr.mxu0 0.0
        %1143 = vmatpush1.msra.mxu0 0.0
        %1144 = vmatprep.subr.mxu0 0.0
        %1145 = vmatpush1.msra.mxu0 0.0
        %1146 = vmatprep.mubr.f32.mxu0 0.0
        %1147 = vmatmul.mubr.f32.gmra.mrb[0].mxu0 %v1077
        %v1148 = vpop.f32.mrb[0].mxu0
        %v1149 = vadd.f32 0.0, %v1148
        %v1150 = vpop.f32.mrb[0].mxu0
        %1151 = vmatprep.mubr.f32.mxu0 0.0
        %1152 = vmatmul.mubr.f32.gmra.mrb[0].mxu0 %v1080
        %v1153 = vpop.f32.mrb[0].mxu0
        %v1154 = vadd.f32 0.0, %v1153
        %v1155 = vpop.f32.mrb[0].mxu0
        %1156 = vdwg.mxu0
        %1157 = vrot.lane.b32.xlu0 %v613, 64
        %v1158 = vpop.permute.xlu0 %1157
        %1159 = vrot.lane.b32.xlu0 %v615, 64
        %v1160 = vpop.permute.xlu0 %1159
        %v1164 = vsel %vm981, %v1064, 0
        %v1167 = vsel %vm981, %v1065, 0
        %1169 = vmatprep.subr.mxu0 0.0
        %1170 = vmatpush1.msra.mxu0 %v1158
        %1171 = vmatprep.subr.mxu0 0.0
        %1172 = vmatpush1.msra.mxu0 %v1160
        %1173 = vmatprep.subr.mxu0 0.0
        %1174 = vmatpush1.msra.mxu0 0.0
        %1175 = vmatprep.subr.mxu0 0.0
        %1176 = vmatpush1.msra.mxu0 0.0
        %1177 = vmatprep.subr.mxu0 0.0
        %1178 = vmatpush1.msra.mxu0 0.0
        %1179 = vmatprep.subr.mxu0 0.0
        %1180 = vmatpush1.msra.mxu0 0.0
        %1181 = vmatprep.subr.mxu0 0.0
        %1182 = vmatpush1.msra.mxu0 0.0
        %1183 = vmatprep.subr.mxu0 0.0
        %1184 = vmatpush1.msra.mxu0 0.0
        %1185 = vmatprep.subr.mxu0 0.0
        %1186 = vmatpush1.msra.mxu0 0.0
        %1187 = vmatprep.subr.mxu0 0.0
        %1188 = vmatpush1.msra.mxu0 0.0
        %1189 = vmatprep.subr.mxu0 0.0
        %1190 = vmatpush1.msra.mxu0 0.0
        %1191 = vmatprep.subr.mxu0 0.0
        %1192 = vmatpush1.msra.mxu0 0.0
        %1193 = vmatprep.subr.mxu0 0.0
        %1194 = vmatpush1.msra.mxu0 0.0
        %1195 = vmatprep.subr.mxu0 0.0
        %1196 = vmatpush1.msra.mxu0 0.0
        %1197 = vmatprep.subr.mxu0 0.0
        %1198 = vmatpush1.msra.mxu0 0.0
        %1199 = vmatprep.subr.mxu0 0.0
        %1200 = vmatpush1.msra.mxu0 0.0
        %1201 = vmatprep.subr.mxu0 0.0
        %1202 = vmatpush1.msra.mxu0 0.0
        %1203 = vmatprep.subr.mxu0 0.0
        %1204 = vmatpush1.msra.mxu0 0.0
        %1205 = vmatprep.subr.mxu0 0.0
        %1206 = vmatpush1.msra.mxu0 0.0
        %1207 = vmatprep.subr.mxu0 0.0
        %1208 = vmatpush1.msra.mxu0 0.0
        %1209 = vmatprep.subr.mxu0 0.0
        %1210 = vmatpush1.msra.mxu0 0.0
        %1211 = vmatprep.subr.mxu0 0.0
        %1212 = vmatpush1.msra.mxu0 0.0
        %1213 = vmatprep.subr.mxu0 0.0
        %1214 = vmatpush1.msra.mxu0 0.0
        %1215 = vmatprep.subr.mxu0 0.0
        %1216 = vmatpush1.msra.mxu0 0.0
        %1217 = vmatprep.subr.mxu0 0.0
        %1218 = vmatpush1.msra.mxu0 0.0
        %1219 = vmatprep.subr.mxu0 0.0
        %1220 = vmatpush1.msra.mxu0 0.0
        %1221 = vmatprep.subr.mxu0 0.0
        %1222 = vmatpush1.msra.mxu0 0.0
        %1223 = vmatprep.subr.mxu0 0.0
        %1224 = vmatpush1.msra.mxu0 0.0
        %1225 = vmatprep.subr.mxu0 0.0
        %1226 = vmatpush1.msra.mxu0 0.0
        %1227 = vmatprep.subr.mxu0 0.0
        %1228 = vmatpush1.msra.mxu0 0.0
        %1229 = vmatprep.subr.mxu0 0.0
        %1230 = vmatpush1.msra.mxu0 0.0
        %1231 = vmatprep.subr.mxu0 0.0
        %1232 = vmatpush1.msra.mxu0 0.0
        %1233 = vmatprep.mubr.f32.mxu0 0.0
        %1234 = vmatmul.mubr.f32.gmra.mrb[0].mxu0 %v1164
        %v1235 = vpop.f32.mrb[0].mxu0
        %v1236 = vadd.f32 0.0, %v1235
        %v1237 = vpop.f32.mrb[0].mxu0
        %1238 = vmatprep.mubr.f32.mxu0 0.0
        %1239 = vmatmul.mubr.f32.gmra.mrb[0].mxu0 %v1167
        %v1240 = vpop.f32.mrb[0].mxu0
        %v1241 = vadd.f32 0.0, %v1240
        %v1242 = vpop.f32.mrb[0].mxu0
        %1243 = vdwg.mxu0
        %1244 = vrot.lane.b32.xlu0 %v617, 64
        %v1245 = vpop.permute.xlu0 %1244
        %1246 = vrot.lane.b32.xlu0 %v619, 64
        %v1247 = vpop.permute.xlu0 %1246
        %v1251 = vsel %vm981, %v1066, 0
        %v1254 = vsel %vm981, %v1067, 0
        %1256 = vmatprep.subr.mxu0 0.0
        %1257 = vmatpush1.msra.mxu0 %v1245
        %1258 = vmatprep.subr.mxu0 0.0
        %1259 = vmatpush1.msra.mxu0 %v1247
        %1260 = vmatprep.subr.mxu0 0.0
        %1261 = vmatpush1.msra.mxu0 0.0
        %1262 = vmatprep.subr.mxu0 0.0
        %1263 = vmatpush1.msra.mxu0 0.0
        %1264 = vmatprep.subr.mxu0 0.0
        %1265 = vmatpush1.msra.mxu0 0.0
        %1266 = vmatprep.subr.mxu0 0.0
        %1267 = vmatpush1.msra.mxu0 0.0
        %1268 = vmatprep.subr.mxu0 0.0
        %1269 = vmatpush1.msra.mxu0 0.0
        %1270 = vmatprep.subr.mxu0 0.0
        %1271 = vmatpush1.msra.mxu0 0.0
        %1272 = vmatprep.subr.mxu0 0.0
        %1273 = vmatpush1.msra.mxu0 0.0
        %1274 = vmatprep.subr.mxu0 0.0
        %1275 = vmatpush1.msra.mxu0 0.0
        %1276 = vmatprep.subr.mxu0 0.0
        %1277 = vmatpush1.msra.mxu0 0.0
        %1278 = vmatprep.subr.mxu0 0.0
        %1279 = vmatpush1.msra.mxu0 0.0
        %1280 = vmatprep.subr.mxu0 0.0
        %1281 = vmatpush1.msra.mxu0 0.0
        %1282 = vmatprep.subr.mxu0 0.0
        %1283 = vmatpush1.msra.mxu0 0.0
        %1284 = vmatprep.subr.mxu0 0.0
        %1285 = vmatpush1.msra.mxu0 0.0
        %1286 = vmatprep.subr.mxu0 0.0
        %1287 = vmatpush1.msra.mxu0 0.0
        %1288 = vmatprep.subr.mxu0 0.0
        %1289 = vmatpush1.msra.mxu0 0.0
        %1290 = vmatprep.subr.mxu0 0.0
        %1291 = vmatpush1.msra.mxu0 0.0
        %1292 = vmatprep.subr.mxu0 0.0
        %1293 = vmatpush1.msra.mxu0 0.0
        %1294 = vmatprep.subr.mxu0 0.0
        %1295 = vmatpush1.msra.mxu0 0.0
        %1296 = vmatprep.subr.mxu0 0.0
        %1297 = vmatpush1.msra.mxu0 0.0
        %1298 = vmatprep.subr.mxu0 0.0
        %1299 = vmatpush1.msra.mxu0 0.0
        %1300 = vmatprep.subr.mxu0 0.0
        %1301 = vmatpush1.msra.mxu0 0.0
        %1302 = vmatprep.subr.mxu0 0.0
        %1303 = vmatpush1.msra.mxu0 0.0
        %1304 = vmatprep.subr.mxu0 0.0
        %1305 = vmatpush1.msra.mxu0 0.0
        %1306 = vmatprep.subr.mxu0 0.0
        %1307 = vmatpush1.msra.mxu0 0.0
        %1308 = vmatprep.subr.mxu0 0.0
        %1309 = vmatpush1.msra.mxu0 0.0
        %1310 = vmatprep.subr.mxu0 0.0
        %1311 = vmatpush1.msra.mxu0 0.0
        %1312 = vmatprep.subr.mxu0 0.0
        %1313 = vmatpush1.msra.mxu0 0.0
        %1314 = vmatprep.subr.mxu0 0.0
        %1315 = vmatpush1.msra.mxu0 0.0
        %1316 = vmatprep.subr.mxu0 0.0
        %1317 = vmatpush1.msra.mxu0 0.0
        %1318 = vmatprep.subr.mxu0 0.0
        %1319 = vmatpush1.msra.mxu0 0.0
        %1320 = vmatprep.mubr.f32.mxu0 0.0
        %1321 = vmatmul.mubr.f32.gmra.mrb[0].mxu0 %v1251
        %v1322 = vpop.f32.mrb[0].mxu0
        %v1323 = vadd.f32 0.0, %v1322
        %v1324 = vpop.f32.mrb[0].mxu0
        %1325 = vmatprep.mubr.f32.mxu0 0.0
        %1326 = vmatmul.mubr.f32.gmra.mrb[0].mxu0 %v1254
        %v1327 = vpop.f32.mrb[0].mxu0
        %v1328 = vadd.f32 0.0, %v1327
        %v1329 = vpop.f32.mrb[0].mxu0
        %1330 = vdwg.mxu0
        %1331 = vrot.lane.b32.xlu0 %v621, 64
        %v1332 = vpop.permute.xlu0 %1331
        %1333 = vrot.lane.b32.xlu0 %v623, 64
        %v1334 = vpop.permute.xlu0 %1333
        %v1338 = vsel %vm981, %v1068, 0
        %v1341 = vsel %vm981, %v1069, 0
        %1343 = vmatprep.subr.mxu0 0.0
        %1344 = vmatpush1.msra.mxu0 %v1332
        %1345 = vmatprep.subr.mxu0 0.0
        %1346 = vmatpush1.msra.mxu0 %v1334
        %1347 = vmatprep.subr.mxu0 0.0
        %1348 = vmatpush1.msra.mxu0 0.0
        %1349 = vmatprep.subr.mxu0 0.0
        %1350 = vmatpush1.msra.mxu0 0.0
        %1351 = vmatprep.subr.mxu0 0.0
        %1352 = vmatpush1.msra.mxu0 0.0
        %1353 = vmatprep.subr.mxu0 0.0
        %1354 = vmatpush1.msra.mxu0 0.0
        %1355 = vmatprep.subr.mxu0 0.0
        %1356 = vmatpush1.msra.mxu0 0.0
        %1357 = vmatprep.subr.mxu0 0.0
        %1358 = vmatpush1.msra.mxu0 0.0
        %1359 = vmatprep.subr.mxu0 0.0
        %1360 = vmatpush1.msra.mxu0 0.0
        %1361 = vmatprep.subr.mxu0 0.0
        %1362 = vmatpush1.msra.mxu0 0.0
        %1363 = vmatprep.subr.mxu0 0.0
        %1364 = vmatpush1.msra.mxu0 0.0
        %1365 = vmatprep.subr.mxu0 0.0
        %1366 = vmatpush1.msra.mxu0 0.0
        %1367 = vmatprep.subr.mxu0 0.0
        %1368 = vmatpush1.msra.mxu0 0.0
        %1369 = vmatprep.subr.mxu0 0.0
        %1370 = vmatpush1.msra.mxu0 0.0
        %1371 = vmatprep.subr.mxu0 0.0
        %1372 = vmatpush1.msra.mxu0 0.0
        %1373 = vmatprep.subr.mxu0 0.0
        %1374 = vmatpush1.msra.mxu0 0.0
        %1375 = vmatprep.subr.mxu0 0.0
        %1376 = vmatpush1.msra.mxu0 0.0
        %1377 = vmatprep.subr.mxu0 0.0
        %1378 = vmatpush1.msra.mxu0 0.0
        %1379 = vmatprep.subr.mxu0 0.0
        %1380 = vmatpush1.msra.mxu0 0.0
        %1381 = vmatprep.subr.mxu0 0.0
        %1382 = vmatpush1.msra.mxu0 0.0
        %1383 = vmatprep.subr.mxu0 0.0
        %1384 = vmatpush1.msra.mxu0 0.0
        %1385 = vmatprep.subr.mxu0 0.0
        %1386 = vmatpush1.msra.mxu0 0.0
        %1387 = vmatprep.subr.mxu0 0.0
        %1388 = vmatpush1.msra.mxu0 0.0
        %1389 = vmatprep.subr.mxu0 0.0
        %1390 = vmatpush1.msra.mxu0 0.0
        %1391 = vmatprep.subr.mxu0 0.0
        %1392 = vmatpush1.msra.mxu0 0.0
        %1393 = vmatprep.subr.mxu0 0.0
        %1394 = vmatpush1.msra.mxu0 0.0
        %1395 = vmatprep.subr.mxu0 0.0
        %1396 = vmatpush1.msra.mxu0 0.0
        %1397 = vmatprep.subr.mxu0 0.0
        %1398 = vmatpush1.msra.mxu0 0.0
        %1399 = vmatprep.subr.mxu0 0.0
        %1400 = vmatpush1.msra.mxu0 0.0
        %1401 = vmatprep.subr.mxu0 0.0
        %1402 = vmatpush1.msra.mxu0 0.0
        %1403 = vmatprep.subr.mxu0 0.0
        %1404 = vmatpush1.msra.mxu0 0.0
        %1405 = vmatprep.subr.mxu0 0.0
        %1406 = vmatpush1.msra.mxu0 0.0
        %1407 = vmatprep.mubr.f32.mxu0 0.0
        %1408 = vmatmul.mubr.f32.gmra.mrb[0].mxu0 %v1338
        %v1409 = vpop.f32.mrb[0].mxu0
        %v1410 = vadd.f32 0.0, %v1409
        %v1411 = vpop.f32.mrb[0].mxu0
        %1412 = vmatprep.mubr.f32.mxu0 0.0
        %1413 = vmatmul.mubr.f32.gmra.mrb[0].mxu0 %v1341
        %v1414 = vpop.f32.mrb[0].mxu0
        %v1415 = vadd.f32 0.0, %v1414
        %v1416 = vpop.f32.mrb[0].mxu0
        %1417 = vdwg.mxu0
        %1420 = vrot.lane.b32.xlu0 %v1236, 8
        %v1421 = vpop.permute.xlu0 %1420
        %1422 = vrot.lane.b32.xlu0 %v1241, 8
        %v1423 = vpop.permute.xlu0 %1422
        %1428 = vrot.lane.b32.xlu0 %v1323, 16
        %v1429 = vpop.permute.xlu0 %1428
        %1430 = vrot.lane.b32.xlu0 %v1328, 16
        %v1431 = vpop.permute.xlu0 %1430
        %1436 = vrot.lane.b32.xlu0 %v1410, 24
        %v1437 = vpop.permute.xlu0 %1436
        %1438 = vrot.lane.b32.xlu0 %v1415, 24
        %v1439 = vpop.permute.xlu0 %1438
        %v1442 = vsel %vm628, %v1149, %v1421
        %v1443 = vsel %vm628, %v1154, %v1423
        %v1444 = vsel %vm981, %v1442, %v1429
        %v1445 = vsel %vm981, %v1443, %v1431
        %vm1446 = vcmask 195584
        %v1447 = vsel %vm1446, %v1444, %v1437
        %v1448 = vsel %vm1446, %v1445, %v1439
        %v1449 = vld [vmem:[%s3] sm:$0xff]
        %v1450 = vld [vmem:[%s3 + $0x8] sm:$0xff]
        %v1451 = vld [vmem:[%s3 + $0x10] sm:$0xff]
        %v1452 = vld [vmem:[%s3 + $0x18] sm:$0xff]
        %v1453 = vld [vmem:[%s4] sm:$0x1]
        %v1455 = vlaneseq
        %v1456 = vshrl.u32 %v1455, 7
        %v1457 = vsub.s32 0, %v1456
        %v1458 = vrot.slane %v1453, %v1457
        %v1461 = vsel %vm528, %v1447, 0
        %v1464 = vsel %vm528, %v1448, 0
        %1466 = vmatprep.subr.mxu0 0.0
        %1467 = vmatpush1.msra.mxu0 %v1449
        %1468 = vmatprep.subr.mxu0 0.0
        %1469 = vmatpush1.msra.mxu0 %v1450
        %1470 = vmatprep.subr.mxu0 0.0
        %1471 = vmatpush1.msra.mxu0 %v1451
        %1472 = vmatprep.subr.mxu0 0.0
        %1473 = vmatpush1.msra.mxu0 %v1452
        %1474 = vmatprep.subr.mxu0 0.0
        %1475 = vmatpush1.msra.mxu0 0.0
        %1476 = vmatprep.subr.mxu0 0.0
        %1477 = vmatpush1.msra.mxu0 0.0
        %1478 = vmatprep.subr.mxu0 0.0
        %1479 = vmatpush1.msra.mxu0 0.0
        %1480 = vmatprep.subr.mxu0 0.0
        %1481 = vmatpush1.msra.mxu0 0.0
        %1482 = vmatprep.subr.mxu0 0.0
        %1483 = vmatpush1.msra.mxu0 0.0
        %1484 = vmatprep.subr.mxu0 0.0
        %1485 = vmatpush1.msra.mxu0 0.0
        %1486 = vmatprep.subr.mxu0 0.0
        %1487 = vmatpush1.msra.mxu0 0.0
        %1488 = vmatprep.subr.mxu0 0.0
        %1489 = vmatpush1.msra.mxu0 0.0
        %1490 = vmatprep.subr.mxu0 0.0
        %1491 = vmatpush1.msra.mxu0 0.0
        %1492 = vmatprep.subr.mxu0 0.0
        %1493 = vmatpush1.msra.mxu0 0.0
        %1494 = vmatprep.subr.mxu0 0.0
        %1495 = vmatpush1.msra.mxu0 0.0
        %1496 = vmatprep.subr.mxu0 0.0
        %1497 = vmatpush1.msra.mxu0 0.0
        %1498 = vmatprep.subr.mxu0 0.0
        %1499 = vmatpush1.msra.mxu0 0.0
        %1500 = vmatprep.subr.mxu0 0.0
        %1501 = vmatpush1.msra.mxu0 0.0
        %1502 = vmatprep.subr.mxu0 0.0
        %1503 = vmatpush1.msra.mxu0 0.0
        %1504 = vmatprep.subr.mxu0 0.0
        %1505 = vmatpush1.msra.mxu0 0.0
        %1506 = vmatprep.subr.mxu0 0.0
        %1507 = vmatpush1.msra.mxu0 0.0
        %1508 = vmatprep.subr.mxu0 0.0
        %1509 = vmatpush1.msra.mxu0 0.0
        %1510 = vmatprep.subr.mxu0 0.0
        %1511 = vmatpush1.msra.mxu0 0.0
        %1512 = vmatprep.subr.mxu0 0.0
        %1513 = vmatpush1.msra.mxu0 0.0
        %1514 = vmatprep.subr.mxu0 0.0
        %1515 = vmatpush1.msra.mxu0 0.0
        %1516 = vmatprep.subr.mxu0 0.0
        %1517 = vmatpush1.msra.mxu0 0.0
        %1518 = vmatprep.subr.mxu0 0.0
        %1519 = vmatpush1.msra.mxu0 0.0
        %1520 = vmatprep.subr.mxu0 0.0
        %1521 = vmatpush1.msra.mxu0 0.0
        %1522 = vmatprep.subr.mxu0 0.0
        %1523 = vmatpush1.msra.mxu0 0.0
        %1524 = vmatprep.subr.mxu0 0.0
        %1525 = vmatpush1.msra.mxu0 0.0
        %1526 = vmatprep.subr.mxu0 0.0
        %1527 = vmatpush1.msra.mxu0 0.0
        %1528 = vmatprep.subr.mxu0 0.0
        %1529 = vmatpush1.msra.mxu0 0.0
        %1530 = vmatprep.mubr.f32.mxu0 0.0
        %1531 = vmatmul.mubr.f32.gmra.mrb[0].mxu0 %v1461
        %v1532 = vpop.f32.mrb[0].mxu0
        %v1533 = vadd.f32 %v1458, %v1532
        %v1534 = vpop.f32.mrb[0].mxu0
        %1535 = vmatprep.mubr.f32.mxu0 0.0
        %1536 = vmatmul.mubr.f32.gmra.mrb[0].mxu0 %v1464
        %v1537 = vpop.f32.mrb[0].mxu0
        %v1538 = vadd.f32 %v1458, %v1537
        %v1539 = vpop.f32.mrb[0].mxu0
        %1540 = vdwg.mxu0
        %v1541 = vadd.f32 %v515, %v1533
        %v1542 = vadd.f32 %v516, %v1538
        %v1543 = vld [vmem:[%s5] sm:$0x1]
        %v1544 = vld [vmem:[%s6] sm:$0x1]
        %v1545 = vsel %vm528, %v1541, 0.0
        %1546 = vadd.xlane.f32.xlu0 %v1545
        %v1547 = vpop.xlane.xlu0 %1546
        %v1548 = vsel %vm528, %v1542, 0.0
        %1549 = vadd.xlane.f32.xlu0 %v1548
        %v1550 = vpop.xlane.xlu0 %1549
        %v1551 = vrcp.pop 32.0
        %v1552 = vmul.f32 %v1547, %v1551
        %v1553 = vmul.f32 %v1550, %v1551
        %v1554 = vmul.f32 %v1541, %v1541
        %v1555 = vmul.f32 %v1542, %v1542
        %v1556 = vsel %vm528, %v1554, 0.0
        %1557 = vadd.xlane.f32.xlu0 %v1556
        %v1558 = vpop.xlane.xlu0 %1557
        %v1559 = vsel %vm528, %v1555, 0.0
        %1560 = vadd.xlane.f32.xlu0 %v1559
        %v1561 = vpop.xlane.xlu0 %1560
        %v1562 = vmul.f32 %v1558, %v1551
        %v1563 = vmul.f32 %v1561, %v1551
        %v1564 = vmul.f32 %v1552, %v1552
        %v1565 = vmul.f32 %v1553, %v1553
        %v1566 = vsub.f32 %v1562, %v1564
        %v1567 = vsub.f32 %v1563, %v1565
        %v1568 = vmax.f32 %v1566, 0.0
        %v1569 = vmax.f32 %v1567, 0.0
        %v1570 = vsub.f32 %v1541, %v1552
        %v1571 = vsub.f32 %v1542, %v1553
        %v1572 = vadd.f32 %v1568, 1e-05
        %v1573 = vadd.f32 %v1569, 1e-05
        %v1574 = vrsqrt.pop %v1572
        %v1575 = vrsqrt.pop %v1573
        %v1576 = vmul.f32 %v1570, %v1574
        %v1577 = vmul.f32 %v1571, %v1575
        %v1579 = vlaneseq
        %v1580 = vshrl.u32 %v1579, 7
        %v1581 = vsub.s32 0, %v1580
        %v1582 = vrot.slane %v1543, %v1581
        %v1584 = vmul.f32 %v1576, %v1582
        %v1585 = vmul.f32 %v1577, %v1582
        %v1587 = vlaneseq
        %v1588 = vshrl.u32 %v1587, 7
        %v1589 = vsub.s32 0, %v1588
        %v1590 = vrot.slane %v1544, %v1589
        %v1592 = vadd.f32 %v1584, %v1590
        %v1593 = vadd.f32 %v1585, %v1590
        %v1594 = vld [vmem:[%s7] sm:$0xff]
        %v1595 = vld [vmem:[%s7 + $0x8] sm:$0xff]
        %v1596 = vld [vmem:[%s7 + $0x10] sm:$0xff]
        %v1597 = vld [vmem:[%s7 + $0x18] sm:$0xff]
        %v1598 = vld [vmem:[%s8] sm:$0x1]
        %v1600 = vlaneseq
        %v1601 = vshrl.u32 %v1600, 7
        %v1602 = vsub.s32 0, %v1601
        %v1603 = vrot.slane %v1598, %v1602
        %v1606 = vsel %vm528, %v1592, 0
        %v1609 = vsel %vm528, %v1593, 0
        %1611 = vmatprep.subr.mxu0 0.0
        %1612 = vmatpush1.msra.mxu0 %v1594
        %1613 = vmatprep.subr.mxu0 0.0
        %1614 = vmatpush1.msra.mxu0 %v1595
        %1615 = vmatprep.subr.mxu0 0.0
        %1616 = vmatpush1.msra.mxu0 %v1596
        %1617 = vmatprep.subr.mxu0 0.0
        %1618 = vmatpush1.msra.mxu0 %v1597
        %1619 = vmatprep.subr.mxu0 0.0
        %1620 = vmatpush1.msra.mxu0 0.0
        %1621 = vmatprep.subr.mxu0 0.0
        %1622 = vmatpush1.msra.mxu0 0.0
        %1623 = vmatprep.subr.mxu0 0.0
        %1624 = vmatpush1.msra.mxu0 0.0
        %1625 = vmatprep.subr.mxu0 0.0
        %1626 = vmatpush1.msra.mxu0 0.0
        %1627 = vmatprep.subr.mxu0 0.0
        %1628 = vmatpush1.msra.mxu0 0.0
        %1629 = vmatprep.subr.mxu0 0.0
        %1630 = vmatpush1.msra.mxu0 0.0
        %1631 = vmatprep.subr.mxu0 0.0
        %1632 = vmatpush1.msra.mxu0 0.0
        %1633 = vmatprep.subr.mxu0 0.0
        %1634 = vmatpush1.msra.mxu0 0.0
        %1635 = vmatprep.subr.mxu0 0.0
        %1636 = vmatpush1.msra.mxu0 0.0
        %1637 = vmatprep.subr.mxu0 0.0
        %1638 = vmatpush1.msra.mxu0 0.0
        %1639 = vmatprep.subr.mxu0 0.0
        %1640 = vmatpush1.msra.mxu0 0.0
        %1641 = vmatprep.subr.mxu0 0.0
        %1642 = vmatpush1.msra.mxu0 0.0
        %1643 = vmatprep.subr.mxu0 0.0
        %1644 = vmatpush1.msra.mxu0 0.0
        %1645 = vmatprep.subr.mxu0 0.0
        %1646 = vmatpush1.msra.mxu0 0.0
        %1647 = vmatprep.subr.mxu0 0.0
        %1648 = vmatpush1.msra.mxu0 0.0
        %1649 = vmatprep.subr.mxu0 0.0
        %1650 = vmatpush1.msra.mxu0 0.0
        %1651 = vmatprep.subr.mxu0 0.0
        %1652 = vmatpush1.msra.mxu0 0.0
        %1653 = vmatprep.subr.mxu0 0.0
        %1654 = vmatpush1.msra.mxu0 0.0
        %1655 = vmatprep.subr.mxu0 0.0
        %1656 = vmatpush1.msra.mxu0 0.0
        %1657 = vmatprep.subr.mxu0 0.0
        %1658 = vmatpush1.msra.mxu0 0.0
        %1659 = vmatprep.subr.mxu0 0.0
        %1660 = vmatpush1.msra.mxu0 0.0
        %1661 = vmatprep.subr.mxu0 0.0
        %1662 = vmatpush1.msra.mxu0 0.0
        %1663 = vmatprep.subr.mxu0 0.0
        %1664 = vmatpush1.msra.mxu0 0.0
        %1665 = vmatprep.subr.mxu0 0.0
        %1666 = vmatpush1.msra.mxu0 0.0
        %1667 = vmatprep.subr.mxu0 0.0
        %1668 = vmatpush1.msra.mxu0 0.0
        %1669 = vmatprep.subr.mxu0 0.0
        %1670 = vmatpush1.msra.mxu0 0.0
        %1671 = vmatprep.subr.mxu0 0.0
        %1672 = vmatpush1.msra.mxu0 0.0
        %1673 = vmatprep.subr.mxu0 0.0
        %1674 = vmatpush1.msra.mxu0 0.0
        %1675 = vmatprep.mubr.f32.mxu0 0.0
        %1676 = vmatmul.mubr.f32.gmra.mrb[0].mxu0 %v1606
        %v1677 = vpop.f32.mrb[0].mxu0
        %v1678 = vadd.f32 %v1603, %v1677
        %v1679 = vpop.f32.mrb[0].mxu0
        %1680 = vmatprep.mubr.f32.mxu0 0.0
        %1681 = vmatmul.mubr.f32.gmra.mrb[0].mxu0 %v1609
        %v1682 = vpop.f32.mrb[0].mxu0
        %v1683 = vadd.f32 %v1603, %v1682
        %v1684 = vpop.f32.mrb[0].mxu0
        %1685 = vdwg.mxu0
        %v1686 = vmax.f32 %v1678, 0.0
        %v1687 = vmax.f32 %v1683, 0.0
        %v1688 = vld [vmem:[%s9] sm:$0xff]
        %v1689 = vld [vmem:[%s9 + $0x8] sm:$0xff]
        %v1690 = vld [vmem:[%s9 + $0x10] sm:$0xff]
        %v1691 = vld [vmem:[%s9 + $0x18] sm:$0xff]
        %v1692 = vld [vmem:[%s9 + $0x20] sm:$0xff]
        %v1693 = vld [vmem:[%s9 + $0x28] sm:$0xff]
        %v1694 = vld [vmem:[%s9 + $0x30] sm:$0xff]
        %v1695 = vld [vmem:[%s9 + $0x38] sm:$0xff]
        %v1696 = vld [vmem:[%s10] sm:$0x1]
        %v1698 = vlaneseq
        %v1699 = vshrl.u32 %v1698, 7
        %v1700 = vsub.s32 0, %v1699
        %v1701 = vrot.slane %v1696, %v1700
        %vm1703 = vcmask 523264
        %v1705 = vsel %vm1703, %v1686, 0
        %v1708 = vsel %vm1703, %v1687, 0
        %1710 = vmatprep.subr.mxu0 0.0
        %1711 = vmatpush1.msra.mxu0 %v1688
        %1712 = vmatprep.subr.mxu0 0.0
        %1713 = vmatpush1.msra.mxu0 %v1689
        %1714 = vmatprep.subr.mxu0 0.0
        %1715 = vmatpush1.msra.mxu0 %v1690
        %1716 = vmatprep.subr.mxu0 0.0
        %1717 = vmatpush1.msra.mxu0 %v1691
        %1718 = vmatprep.subr.mxu0 0.0
        %1719 = vmatpush1.msra.mxu0 %v1692
        %1720 = vmatprep.subr.mxu0 0.0
        %1721 = vmatpush1.msra.mxu0 %v1693
        %1722 = vmatprep.subr.mxu0 0.0
        %1723 = vmatpush1.msra.mxu0 %v1694
        %1724 = vmatprep.subr.mxu0 0.0
        %1725 = vmatpush1.msra.mxu0 %v1695
        %1726 = vmatprep.subr.mxu0 0.0
        %1727 = vmatpush1.msra.mxu0 0.0
        %1728 = vmatprep.subr.mxu0 0.0
        %1729 = vmatpush1.msra.mxu0 0.0
        %1730 = vmatprep.subr.mxu0 0.0
        %1731 = vmatpush1.msra.mxu0 0.0
        %1732 = vmatprep.subr.mxu0 0.0
        %1733 = vmatpush1.msra.mxu0 0.0
        %1734 = vmatprep.subr.mxu0 0.0
        %1735 = vmatpush1.msra.mxu0 0.0
        %1736 = vmatprep.subr.mxu0 0.0
        %1737 = vmatpush1.msra.mxu0 0.0
        %1738 = vmatprep.subr.mxu0 0.0
        %1739 = vmatpush1.msra.mxu0 0.0
        %1740 = vmatprep.subr.mxu0 0.0
        %1741 = vmatpush1.msra.mxu0 0.0
        %1742 = vmatprep.subr.mxu0 0.0
        %1743 = vmatpush1.msra.mxu0 0.0
        %1744 = vmatprep.subr.mxu0 0.0
        %1745 = vmatpush1.msra.mxu0 0.0
        %1746 = vmatprep.subr.mxu0 0.0
        %1747 = vmatpush1.msra.mxu0 0.0
        %1748 = vmatprep.subr.mxu0 0.0
        %1749 = vmatpush1.msra.mxu0 0.0
        %1750 = vmatprep.subr.mxu0 0.0
        %1751 = vmatpush1.msra.mxu0 0.0
        %1752 = vmatprep.subr.mxu0 0.0
        %1753 = vmatpush1.msra.mxu0 0.0
        %1754 = vmatprep.subr.mxu0 0.0
        %1755 = vmatpush1.msra.mxu0 0.0
        %1756 = vmatprep.subr.mxu0 0.0
        %1757 = vmatpush1.msra.mxu0 0.0
        %1758 = vmatprep.subr.mxu0 0.0
        %1759 = vmatpush1.msra.mxu0 0.0
        %1760 = vmatprep.subr.mxu0 0.0
        %1761 = vmatpush1.msra.mxu0 0.0
        %1762 = vmatprep.subr.mxu0 0.0
        %1763 = vmatpush1.msra.mxu0 0.0
        %1764 = vmatprep.subr.mxu0 0.0
        %1765 = vmatpush1.msra.mxu0 0.0
        %1766 = vmatprep.subr.mxu0 0.0
        %1767 = vmatpush1.msra.mxu0 0.0
        %1768 = vmatprep.subr.mxu0 0.0
        %1769 = vmatpush1.msra.mxu0 0.0
        %1770 = vmatprep.subr.mxu0 0.0
        %1771 = vmatpush1.msra.mxu0 0.0
        %1772 = vmatprep.subr.mxu0 0.0
        %1773 = vmatpush1.msra.mxu0 0.0
        %1774 = vmatprep.mubr.f32.mxu0 0.0
        %1775 = vmatmul.mubr.f32.gmra.mrb[0].mxu0 %v1705
        %v1776 = vpop.f32.mrb[0].mxu0
        %v1777 = vadd.f32 %v1701, %v1776
        %v1778 = vpop.f32.mrb[0].mxu0
        %1779 = vmatprep.mubr.f32.mxu0 0.0
        %1780 = vmatmul.mubr.f32.gmra.mrb[0].mxu0 %v1708
        %v1781 = vpop.f32.mrb[0].mxu0
        %v1782 = vadd.f32 %v1701, %v1781
        %v1783 = vpop.f32.mrb[0].mxu0
        %1784 = vdwg.mxu0
        %v1785 = vadd.f32 %v1592, %v1777
        %v1786 = vadd.f32 %v1593, %v1782
        %v1787 = vld [vmem:[%s11] sm:$0x1]
        %v1788 = vld [vmem:[%s12] sm:$0x1]
        %v1789 = vsel %vm528, %v1785, 0.0
        %1790 = vadd.xlane.f32.xlu0 %v1789
        %v1791 = vpop.xlane.xlu0 %1790
        %v1792 = vsel %vm528, %v1786, 0.0
        %1793 = vadd.xlane.f32.xlu0 %v1792
        %v1794 = vpop.xlane.xlu0 %1793
        %v1795 = vmul.f32 %v1791, %v1551
        %v1796 = vmul.f32 %v1794, %v1551
        %v1797 = vmul.f32 %v1785, %v1785
        %v1798 = vmul.f32 %v1786, %v1786
        %v1799 = vsel %vm528, %v1797, 0.0
        %1800 = vadd.xlane.f32.xlu0 %v1799
        %v1801 = vpop.xlane.xlu0 %1800
        %v1802 = vsel %vm528, %v1798, 0.0
        %1803 = vadd.xlane.f32.xlu0 %v1802
        %v1804 = vpop.xlane.xlu0 %1803
        %v1805 = vmul.f32 %v1801, %v1551
        %v1806 = vmul.f32 %v1804, %v1551
        %v1807 = vmul.f32 %v1795, %v1795
        %v1808 = vmul.f32 %v1796, %v1796
        %v1809 = vsub.f32 %v1805, %v1807
        %v1810 = vsub.f32 %v1806, %v1808
        %v1811 = vmax.f32 %v1809, 0.0
        %v1812 = vmax.f32 %v1810, 0.0
        %v1813 = vsub.f32 %v1785, %v1795
        %v1814 = vsub.f32 %v1786, %v1796
        %v1815 = vadd.f32 %v1811, 1e-05
        %v1816 = vadd.f32 %v1812, 1e-05
        %v1817 = vrsqrt.pop %v1815
        %v1818 = vrsqrt.pop %v1816
        %v1819 = vmul.f32 %v1813, %v1817
        %v1820 = vmul.f32 %v1814, %v1818
        %v1822 = vlaneseq
        %v1823 = vshrl.u32 %v1822, 7
        %v1824 = vsub.s32 0, %v1823
        %v1825 = vrot.slane %v1787, %v1824
        %v1827 = vmul.f32 %v1819, %v1825
        %v1828 = vmul.f32 %v1820, %v1825
        %v1830 = vlaneseq
        %v1831 = vshrl.u32 %v1830, 7
        %v1832 = vsub.s32 0, %v1831
        %v1833 = vrot.slane %v1788, %v1832
        %v1835 = vadd.f32 %v1827, %v1833
        %v1836 = vadd.f32 %v1828, %v1833
        %s1837 = scalar_lea.vmem %s1, 32
        %v1838 = vld [vmem:[%s1837] sm:$0xff]
        %v1839 = vld [vmem:[%s1837 + $0x8] sm:$0xff]
        %v1840 = vld [vmem:[%s1837 + $0x10] sm:$0xff]
        %v1841 = vld [vmem:[%s1837 + $0x18] sm:$0xff]
        %s1842 = scalar_lea.vmem %s2, 1
        %v1843 = vld [vmem:[%s1842] sm:$0x1]
        %v1845 = vlaneseq
        %v1846 = vshrl.u32 %v1845, 7
        %v1847 = vsub.s32 0, %v1846
        %v1848 = vrot.slane %v1843, %v1847
        %v1851 = vsel %vm528, %v1835, 0
        %v1854 = vsel %vm528, %v1836, 0
        %1856 = vmatprep.subr.mxu0 0.0
        %1857 = vmatpush1.msra.mxu0 %v1838
        %1858 = vmatprep.subr.mxu0 0.0
        %1859 = vmatpush1.msra.mxu0 %v1839
        %1860 = vmatprep.subr.mxu0 0.0
        %1861 = vmatpush1.msra.mxu0 %v1840
        %1862 = vmatprep.subr.mxu0 0.0
        %1863 = vmatpush1.msra.mxu0 %v1841
        %1864 = vmatprep.subr.mxu0 0.0
        %1865 = vmatpush1.msra.mxu0 0.0
        %1866 = vmatprep.subr.mxu0 0.0
        %1867 = vmatpush1.msra.mxu0 0.0
        %1868 = vmatprep.subr.mxu0 0.0
        %1869 = vmatpush1.msra.mxu0 0.0
        %1870 = vmatprep.subr.mxu0 0.0
        %1871 = vmatpush1.msra.mxu0 0.0
        %1872 = vmatprep.subr.mxu0 0.0
        %1873 = vmatpush1.msra.mxu0 0.0
        %1874 = vmatprep.subr.mxu0 0.0
        %1875 = vmatpush1.msra.mxu0 0.0
        %1876 = vmatprep.subr.mxu0 0.0
        %1877 = vmatpush1.msra.mxu0 0.0
        %1878 = vmatprep.subr.mxu0 0.0
        %1879 = vmatpush1.msra.mxu0 0.0
        %1880 = vmatprep.subr.mxu0 0.0
        %1881 = vmatpush1.msra.mxu0 0.0
        %1882 = vmatprep.subr.mxu0 0.0
        %1883 = vmatpush1.msra.mxu0 0.0
        %1884 = vmatprep.subr.mxu0 0.0
        %1885 = vmatpush1.msra.mxu0 0.0
        %1886 = vmatprep.subr.mxu0 0.0
        %1887 = vmatpush1.msra.mxu0 0.0
        %1888 = vmatprep.subr.mxu0 0.0
        %1889 = vmatpush1.msra.mxu0 0.0
        %1890 = vmatprep.subr.mxu0 0.0
        %1891 = vmatpush1.msra.mxu0 0.0
        %1892 = vmatprep.subr.mxu0 0.0
        %1893 = vmatpush1.msra.mxu0 0.0
        %1894 = vmatprep.subr.mxu0 0.0
        %1895 = vmatpush1.msra.mxu0 0.0
        %1896 = vmatprep.subr.mxu0 0.0
        %1897 = vmatpush1.msra.mxu0 0.0
        %1898 = vmatprep.subr.mxu0 0.0
        %1899 = vmatpush1.msra.mxu0 0.0
        %1900 = vmatprep.subr.mxu0 0.0
        %1901 = vmatpush1.msra.mxu0 0.0
        %1902 = vmatprep.subr.mxu0 0.0
        %1903 = vmatpush1.msra.mxu0 0.0
        %1904 = vmatprep.subr.mxu0 0.0
        %1905 = vmatpush1.msra.mxu0 0.0
        %1906 = vmatprep.subr.mxu0 0.0
        %1907 = vmatpush1.msra.mxu0 0.0
        %1908 = vmatprep.subr.mxu0 0.0
        %1909 = vmatpush1.msra.mxu0 0.0
        %1910 = vmatprep.subr.mxu0 0.0
        %1911 = vmatpush1.msra.mxu0 0.0
        %1912 = vmatprep.subr.mxu0 0.0
        %1913 = vmatpush1.msra.mxu0 0.0
        %1914 = vmatprep.subr.mxu0 0.0
        %1915 = vmatpush1.msra.mxu0 0.0
        %1916 = vmatprep.subr.mxu0 0.0
        %1917 = vmatpush1.msra.mxu0 0.0
        %1918 = vmatprep.subr.mxu0 0.0
        %1919 = vmatpush1.msra.mxu0 0.0
        %1920 = vmatprep.mubr.f32.mxu0 0.0
        %1921 = vmatmul.mubr.f32.gmra.mrb[0].mxu0 %v1851
        %v1922 = vpop.f32.mrb[0].mxu0
        %v1923 = vadd.f32 %v1848, %v1922
        %v1924 = vpop.f32.mrb[0].mxu0
        %1925 = vmatprep.mubr.f32.mxu0 0.0
        %1926 = vmatmul.mubr.f32.gmra.mrb[0].mxu0 %v1854
        %v1927 = vpop.f32.mrb[0].mxu0
        %v1928 = vadd.f32 %v1848, %v1927
        %v1929 = vpop.f32.mrb[0].mxu0
        %1930 = vdwg.mxu0
        %1933 = vrot.lane.b32.xlu0 %v1923, 120
        %v1934 = vpop.permute.xlu0 %1933
        %1935 = vrot.lane.b32.xlu0 %v1928, 120
        %v1936 = vpop.permute.xlu0 %1935
        %1937 = vrot.lane.b32.xlu0 %v1923, 112
        %v1938 = vpop.permute.xlu0 %1937
        %1939 = vrot.lane.b32.xlu0 %v1928, 112
        %v1940 = vpop.permute.xlu0 %1939
        %1941 = vrot.lane.b32.xlu0 %v1923, 104
        %v1942 = vpop.permute.xlu0 %1941
        %1943 = vrot.lane.b32.xlu0 %v1928, 104
        %v1944 = vpop.permute.xlu0 %1943
        %1945 = vrot.lane.b32.xlu0 %v1923, 96
        %v1946 = vpop.permute.xlu0 %1945
        %1947 = vrot.lane.b32.xlu0 %v1928, 96
        %v1948 = vpop.permute.xlu0 %1947
        %v1949 = vsel %vm628, %v1923, 0
        %v1951 = vsel %vm628, %v1928, 0
        %v1953 = vsel %vm628, %v1946, 0
        %v1955 = vsel %vm628, %v1948, 0
        %1957 = vmatprep.subr.mxu0 0.0
        %1958 = vmatpush1.xpose.msra.mxu0 %v1953
        %1959 = vmatprep.subr.mxu0 0.0
        %1960 = vmatpush1.xpose.msra.mxu0 %v1955
        %1961 = vmatprep.subr.mxu0 0.0
        %1962 = vmatpush1.xpose.msra.mxu0 0.0
        %1963 = vmatprep.subr.mxu0 0.0
        %1964 = vmatpush1.xpose.msra.mxu0 0.0
        %1965 = vmatprep.subr.mxu0 0.0
        %1966 = vmatpush1.xpose.msra.mxu0 0.0
        %1967 = vmatprep.subr.mxu0 0.0
        %1968 = vmatpush1.xpose.msra.mxu0 0.0
        %1969 = vmatprep.subr.mxu0 0.0
        %1970 = vmatpush1.xpose.msra.mxu0 0.0
        %1971 = vmatprep.subr.mxu0 0.0
        %1972 = vmatpush1.xpose.msra.mxu0 0.0
        %1973 = vmatprep.subr.mxu0 0.0
        %1974 = vmatpush1.xpose.msra.mxu0 0.0
        %1975 = vmatprep.subr.mxu0 0.0
        %1976 = vmatpush1.xpose.msra.mxu0 0.0
        %1977 = vmatprep.subr.mxu0 0.0
        %1978 = vmatpush1.xpose.msra.mxu0 0.0
        %1979 = vmatprep.subr.mxu0 0.0
        %1980 = vmatpush1.xpose.msra.mxu0 0.0
        %1981 = vmatprep.subr.mxu0 0.0
        %1982 = vmatpush1.xpose.msra.mxu0 0.0
        %1983 = vmatprep.subr.mxu0 0.0
        %1984 = vmatpush1.xpose.msra.mxu0 0.0
        %1985 = vmatprep.subr.mxu0 0.0
        %1986 = vmatpush1.xpose.msra.mxu0 0.0
        %1987 = vmatprep.subr.mxu0 0.0
        %1988 = vmatpush1.xpose.msra.mxu0 0.0
        %1989 = vmatprep.subr.mxu0 0.0
        %1990 = vmatpush1.xpose.msra.mxu0 0.0
        %1991 = vmatprep.subr.mxu0 0.0
        %1992 = vmatpush1.xpose.msra.mxu0 0.0
        %1993 = vmatprep.subr.mxu0 0.0
        %1994 = vmatpush1.xpose.msra.mxu0 0.0
        %1995 = vmatprep.subr.mxu0 0.0
        %1996 = vmatpush1.xpose.msra.mxu0 0.0
        %1997 = vmatprep.subr.mxu0 0.0
        %1998 = vmatpush1.xpose.msra.mxu0 0.0
        %1999 = vmatprep.subr.mxu0 0.0
        %2000 = vmatpush1.xpose.msra.mxu0 0.0
        %2001 = vmatprep.subr.mxu0 0.0
        %2002 = vmatpush1.xpose.msra.mxu0 0.0
        %2003 = vmatprep.subr.mxu0 0.0
        %2004 = vmatpush1.xpose.msra.mxu0 0.0
        %2005 = vmatprep.subr.mxu0 0.0
        %2006 = vmatpush1.xpose.msra.mxu0 0.0
        %2007 = vmatprep.subr.mxu0 0.0
        %2008 = vmatpush1.xpose.msra.mxu0 0.0
        %2009 = vmatprep.subr.mxu0 0.0
        %2010 = vmatpush1.xpose.msra.mxu0 0.0
        %2011 = vmatprep.subr.mxu0 0.0
        %2012 = vmatpush1.xpose.msra.mxu0 0.0
        %2013 = vmatprep.subr.mxu0 0.0
        %2014 = vmatpush1.xpose.msra.mxu0 0.0
        %2015 = vmatprep.subr.mxu0 0.0
        %2016 = vmatpush1.xpose.msra.mxu0 0.0
        %2017 = vmatprep.subr.mxu0 0.0
        %2018 = vmatpush1.xpose.msra.mxu0 0.0
        %2019 = vmatprep.subr.mxu0 0.0
        %2020 = vmatpush1.xpose.msra.mxu0 0.0
        %2021 = vmatprep.mubr.f32.mxu0 0.0
        %2022 = vmatmul.mubr.f32.gmra.mrb[0].mxu0 %v1949
        %v2023 = vpop.f32.mrb[0].mxu0
        %v2024 = vadd.f32 0.0, %v2023
        %v2025 = vpop.f32.mrb[0].mxu0
        %2026 = vmatprep.mubr.f32.mxu0 0.0
        %2027 = vmatmul.mubr.f32.gmra.mrb[0].mxu0 %v1951
        %v2028 = vpop.f32.mrb[0].mxu0
        %v2029 = vadd.f32 0.0, %v2028
        %v2030 = vpop.f32.mrb[0].mxu0
        %2031 = vdwg.mxu0
        %2032 = vrot.lane.b32.xlu0 %v1934, 96
        %v2033 = vpop.permute.xlu0 %2032
        %2034 = vrot.lane.b32.xlu0 %v1936, 96
        %v2035 = vpop.permute.xlu0 %2034
        %v2036 = vsel %vm628, %v1934, 0
        %v2038 = vsel %vm628, %v1936, 0
        %v2040 = vsel %vm628, %v2033, 0
        %v2042 = vsel %vm628, %v2035, 0
        %2044 = vmatprep.subr.mxu0 0.0
        %2045 = vmatpush1.xpose.msra.mxu0 %v2040
        %2046 = vmatprep.subr.mxu0 0.0
        %2047 = vmatpush1.xpose.msra.mxu0 %v2042
        %2048 = vmatprep.subr.mxu0 0.0
        %2049 = vmatpush1.xpose.msra.mxu0 0.0
        %2050 = vmatprep.subr.mxu0 0.0
        %2051 = vmatpush1.xpose.msra.mxu0 0.0
        %2052 = vmatprep.subr.mxu0 0.0
        %2053 = vmatpush1.xpose.msra.mxu0 0.0
        %2054 = vmatprep.subr.mxu0 0.0
        %2055 = vmatpush1.xpose.msra.mxu0 0.0
        %2056 = vmatprep.subr.mxu0 0.0
        %2057 = vmatpush1.xpose.msra.mxu0 0.0
        %2058 = vmatprep.subr.mxu0 0.0
        %2059 = vmatpush1.xpose.msra.mxu0 0.0
        %2060 = vmatprep.subr.mxu0 0.0
        %2061 = vmatpush1.xpose.msra.mxu0 0.0
        %2062 = vmatprep.subr.mxu0 0.0
        %2063 = vmatpush1.xpose.msra.mxu0 0.0
        %2064 = vmatprep.subr.mxu0 0.0
        %2065 = vmatpush1.xpose.msra.mxu0 0.0
        %2066 = vmatprep.subr.mxu0 0.0
        %2067 = vmatpush1.xpose.msra.mxu0 0.0
        %2068 = vmatprep.subr.mxu0 0.0
        %2069 = vmatpush1.xpose.msra.mxu0 0.0
        %2070 = vmatprep.subr.mxu0 0.0
        %2071 = vmatpush1.xpose.msra.mxu0 0.0
        %2072 = vmatprep.subr.mxu0 0.0
        %2073 = vmatpush1.xpose.msra.mxu0 0.0
        %2074 = vmatprep.subr.mxu0 0.0
        %2075 = vmatpush1.xpose.msra.mxu0 0.0
        %2076 = vmatprep.subr.mxu0 0.0
        %2077 = vmatpush1.xpose.msra.mxu0 0.0
        %2078 = vmatprep.subr.mxu0 0.0
        %2079 = vmatpush1.xpose.msra.mxu0 0.0
        %2080 = vmatprep.subr.mxu0 0.0
        %2081 = vmatpush1.xpose.msra.mxu0 0.0
        %2082 = vmatprep.subr.mxu0 0.0
        %2083 = vmatpush1.xpose.msra.mxu0 0.0
        %2084 = vmatprep.subr.mxu0 0.0
        %2085 = vmatpush1.xpose.msra.mxu0 0.0
        %2086 = vmatprep.subr.mxu0 0.0
        %2087 = vmatpush1.xpose.msra.mxu0 0.0
        %2088 = vmatprep.subr.mxu0 0.0
        %2089 = vmatpush1.xpose.msra.mxu0 0.0
        %2090 = vmatprep.subr.mxu0 0.0
        %2091 = vmatpush1.xpose.msra.mxu0 0.0
        %2092 = vmatprep.subr.mxu0 0.0
        %2093 = vmatpush1.xpose.msra.mxu0 0.0
        %2094 = vmatprep.subr.mxu0 0.0
        %2095 = vmatpush1.xpose.msra.mxu0 0.0
        %2096 = vmatprep.subr.mxu0 0.0
        %2097 = vmatpush1.xpose.msra.mxu0 0.0
        %2098 = vmatprep.subr.mxu0 0.0
        %2099 = vmatpush1.xpose.msra.mxu0 0.0
        %2100 = vmatprep.subr.mxu0 0.0
        %2101 = vmatpush1.xpose.msra.mxu0 0.0
        %2102 = vmatprep.subr.mxu0 0.0
        %2103 = vmatpush1.xpose.msra.mxu0 0.0
        %2104 = vmatprep.subr.mxu0 0.0
        %2105 = vmatpush1.xpose.msra.mxu0 0.0
        %2106 = vmatprep.subr.mxu0 0.0
        %2107 = vmatpush1.xpose.msra.mxu0 0.0
        %2108 = vmatprep.mubr.f32.mxu0 0.0
        %2109 = vmatmul.mubr.f32.gmra.mrb[0].mxu0 %v2036
        %v2110 = vpop.f32.mrb[0].mxu0
        %v2111 = vadd.f32 0.0, %v2110
        %v2112 = vpop.f32.mrb[0].mxu0
        %2113 = vmatprep.mubr.f32.mxu0 0.0
        %2114 = vmatmul.mubr.f32.gmra.mrb[0].mxu0 %v2038
        %v2115 = vpop.f32.mrb[0].mxu0
        %v2116 = vadd.f32 0.0, %v2115
        %v2117 = vpop.f32.mrb[0].mxu0
        %2118 = vdwg.mxu0
        %2119 = vrot.lane.b32.xlu0 %v1938, 96
        %v2120 = vpop.permute.xlu0 %2119
        %2121 = vrot.lane.b32.xlu0 %v1940, 96
        %v2122 = vpop.permute.xlu0 %2121
        %v2123 = vsel %vm628, %v1938, 0
        %v2125 = vsel %vm628, %v1940, 0
        %v2127 = vsel %vm628, %v2120, 0
        %v2129 = vsel %vm628, %v2122, 0
        %2131 = vmatprep.subr.mxu0 0.0
        %2132 = vmatpush1.xpose.msra.mxu0 %v2127
        %2133 = vmatprep.subr.mxu0 0.0
        %2134 = vmatpush1.xpose.msra.mxu0 %v2129
        %2135 = vmatprep.subr.mxu0 0.0
        %2136 = vmatpush1.xpose.msra.mxu0 0.0
        %2137 = vmatprep.subr.mxu0 0.0
        %2138 = vmatpush1.xpose.msra.mxu0 0.0
        %2139 = vmatprep.subr.mxu0 0.0
        %2140 = vmatpush1.xpose.msra.mxu0 0.0
        %2141 = vmatprep.subr.mxu0 0.0
        %2142 = vmatpush1.xpose.msra.mxu0 0.0
        %2143 = vmatprep.subr.mxu0 0.0
        %2144 = vmatpush1.xpose.msra.mxu0 0.0
        %2145 = vmatprep.subr.mxu0 0.0
        %2146 = vmatpush1.xpose.msra.mxu0 0.0
        %2147 = vmatprep.subr.mxu0 0.0
        %2148 = vmatpush1.xpose.msra.mxu0 0.0
        %2149 = vmatprep.subr.mxu0 0.0
        %2150 = vmatpush1.xpose.msra.mxu0 0.0
        %2151 = vmatprep.subr.mxu0 0.0
        %2152 = vmatpush1.xpose.msra.mxu0 0.0
        %2153 = vmatprep.subr.mxu0 0.0
        %2154 = vmatpush1.xpose.msra.mxu0 0.0
        %2155 = vmatprep.subr.mxu0 0.0
        %2156 = vmatpush1.xpose.msra.mxu0 0.0
        %2157 = vmatprep.subr.mxu0 0.0
        %2158 = vmatpush1.xpose.msra.mxu0 0.0
        %2159 = vmatprep.subr.mxu0 0.0
        %2160 = vmatpush1.xpose.msra.mxu0 0.0
        %2161 = vmatprep.subr.mxu0 0.0
        %2162 = vmatpush1.xpose.msra.mxu0 0.0
        %2163 = vmatprep.subr.mxu0 0.0
        %2164 = vmatpush1.xpose.msra.mxu0 0.0
        %2165 = vmatprep.subr.mxu0 0.0
        %2166 = vmatpush1.xpose.msra.mxu0 0.0
        %2167 = vmatprep.subr.mxu0 0.0
        %2168 = vmatpush1.xpose.msra.mxu0 0.0
        %2169 = vmatprep.subr.mxu0 0.0
        %2170 = vmatpush1.xpose.msra.mxu0 0.0
        %2171 = vmatprep.subr.mxu0 0.0
        %2172 = vmatpush1.xpose.msra.mxu0 0.0
        %2173 = vmatprep.subr.mxu0 0.0
        %2174 = vmatpush1.xpose.msra.mxu0 0.0
        %2175 = vmatprep.subr.mxu0 0.0
        %2176 = vmatpush1.xpose.msra.mxu0 0.0
        %2177 = vmatprep.subr.mxu0 0.0
        %2178 = vmatpush1.xpose.msra.mxu0 0.0
        %2179 = vmatprep.subr.mxu0 0.0
        %2180 = vmatpush1.xpose.msra.mxu0 0.0
        %2181 = vmatprep.subr.mxu0 0.0
        %2182 = vmatpush1.xpose.msra.mxu0 0.0
        %2183 = vmatprep.subr.mxu0 0.0
        %2184 = vmatpush1.xpose.msra.mxu0 0.0
        %2185 = vmatprep.subr.mxu0 0.0
        %2186 = vmatpush1.xpose.msra.mxu0 0.0
        %2187 = vmatprep.subr.mxu0 0.0
        %2188 = vmatpush1.xpose.msra.mxu0 0.0
        %2189 = vmatprep.subr.mxu0 0.0
        %2190 = vmatpush1.xpose.msra.mxu0 0.0
        %2191 = vmatprep.subr.mxu0 0.0
        %2192 = vmatpush1.xpose.msra.mxu0 0.0
        %2193 = vmatprep.subr.mxu0 0.0
        %2194 = vmatpush1.xpose.msra.mxu0 0.0
        %2195 = vmatprep.mubr.f32.mxu0 0.0
        %2196 = vmatmul.mubr.f32.gmra.mrb[0].mxu0 %v2123
        %v2197 = vpop.f32.mrb[0].mxu0
        %v2198 = vadd.f32 0.0, %v2197
        %v2199 = vpop.f32.mrb[0].mxu0
        %2200 = vmatprep.mubr.f32.mxu0 0.0
        %2201 = vmatmul.mubr.f32.gmra.mrb[0].mxu0 %v2125
        %v2202 = vpop.f32.mrb[0].mxu0
        %v2203 = vadd.f32 0.0, %v2202
        %v2204 = vpop.f32.mrb[0].mxu0
        %2205 = vdwg.mxu0
        %2206 = vrot.lane.b32.xlu0 %v1942, 96
        %v2207 = vpop.permute.xlu0 %2206
        %2208 = vrot.lane.b32.xlu0 %v1944, 96
        %v2209 = vpop.permute.xlu0 %2208
        %v2210 = vsel %vm628, %v1942, 0
        %v2212 = vsel %vm628, %v1944, 0
        %v2214 = vsel %vm628, %v2207, 0
        %v2216 = vsel %vm628, %v2209, 0
        %2218 = vmatprep.subr.mxu0 0.0
        %2219 = vmatpush1.xpose.msra.mxu0 %v2214
        %2220 = vmatprep.subr.mxu0 0.0
        %2221 = vmatpush1.xpose.msra.mxu0 %v2216
        %2222 = vmatprep.subr.mxu0 0.0
        %2223 = vmatpush1.xpose.msra.mxu0 0.0
        %2224 = vmatprep.subr.mxu0 0.0
        %2225 = vmatpush1.xpose.msra.mxu0 0.0
        %2226 = vmatprep.subr.mxu0 0.0
        %2227 = vmatpush1.xpose.msra.mxu0 0.0
        %2228 = vmatprep.subr.mxu0 0.0
        %2229 = vmatpush1.xpose.msra.mxu0 0.0
        %2230 = vmatprep.subr.mxu0 0.0
        %2231 = vmatpush1.xpose.msra.mxu0 0.0
        %2232 = vmatprep.subr.mxu0 0.0
        %2233 = vmatpush1.xpose.msra.mxu0 0.0
        %2234 = vmatprep.subr.mxu0 0.0
        %2235 = vmatpush1.xpose.msra.mxu0 0.0
        %2236 = vmatprep.subr.mxu0 0.0
        %2237 = vmatpush1.xpose.msra.mxu0 0.0
        %2238 = vmatprep.subr.mxu0 0.0
        %2239 = vmatpush1.xpose.msra.mxu0 0.0
        %2240 = vmatprep.subr.mxu0 0.0
        %2241 = vmatpush1.xpose.msra.mxu0 0.0
        %2242 = vmatprep.subr.mxu0 0.0
        %2243 = vmatpush1.xpose.msra.mxu0 0.0
        %2244 = vmatprep.subr.mxu0 0.0
        %2245 = vmatpush1.xpose.msra.mxu0 0.0
        %2246 = vmatprep.subr.mxu0 0.0
        %2247 = vmatpush1.xpose.msra.mxu0 0.0
        %2248 = vmatprep.subr.mxu0 0.0
        %2249 = vmatpush1.xpose.msra.mxu0 0.0
        %2250 = vmatprep.subr.mxu0 0.0
        %2251 = vmatpush1.xpose.msra.mxu0 0.0
        %2252 = vmatprep.subr.mxu0 0.0
        %2253 = vmatpush1.xpose.msra.mxu0 0.0
        %2254 = vmatprep.subr.mxu0 0.0
        %2255 = vmatpush1.xpose.msra.mxu0 0.0
        %2256 = vmatprep.subr.mxu0 0.0
        %2257 = vmatpush1.xpose.msra.mxu0 0.0
        %2258 = vmatprep.subr.mxu0 0.0
        %2259 = vmatpush1.xpose.msra.mxu0 0.0
        %2260 = vmatprep.subr.mxu0 0.0
        %2261 = vmatpush1.xpose.msra.mxu0 0.0
        %2262 = vmatprep.subr.mxu0 0.0
        %2263 = vmatpush1.xpose.msra.mxu0 0.0
        %2264 = vmatprep.subr.mxu0 0.0
        %2265 = vmatpush1.xpose.msra.mxu0 0.0
        %2266 = vmatprep.subr.mxu0 0.0
        %2267 = vmatpush1.xpose.msra.mxu0 0.0
        %2268 = vmatprep.subr.mxu0 0.0
        %2269 = vmatpush1.xpose.msra.mxu0 0.0
        %2270 = vmatprep.subr.mxu0 0.0
        %2271 = vmatpush1.xpose.msra.mxu0 0.0
        %2272 = vmatprep.subr.mxu0 0.0
        %2273 = vmatpush1.xpose.msra.mxu0 0.0
        %2274 = vmatprep.subr.mxu0 0.0
        %2275 = vmatpush1.xpose.msra.mxu0 0.0
        %2276 = vmatprep.subr.mxu0 0.0
        %2277 = vmatpush1.xpose.msra.mxu0 0.0
        %2278 = vmatprep.subr.mxu0 0.0
        %2279 = vmatpush1.xpose.msra.mxu0 0.0
        %2280 = vmatprep.subr.mxu0 0.0
        %2281 = vmatpush1.xpose.msra.mxu0 0.0
        %2282 = vmatprep.mubr.f32.mxu0 0.0
        %2283 = vmatmul.mubr.f32.gmra.mrb[0].mxu0 %v2210
        %v2284 = vpop.f32.mrb[0].mxu0
        %v2285 = vadd.f32 0.0, %v2284
        %v2286 = vpop.f32.mrb[0].mxu0
        %2287 = vmatprep.mubr.f32.mxu0 0.0
        %2288 = vmatmul.mubr.f32.gmra.mrb[0].mxu0 %v2212
        %v2289 = vpop.f32.mrb[0].mxu0
        %v2290 = vadd.f32 0.0, %v2289
        %v2291 = vpop.f32.mrb[0].mxu0
        %2292 = vdwg.mxu0
        %v2293 = vmul.f32 %v2024, 0.35355338
        %v2294 = vmul.f32 %v2029, 0.35355338
        %v2295 = vmul.f32 %v2111, 0.35355338
        %v2296 = vmul.f32 %v2116, 0.35355338
        %v2297 = vmul.f32 %v2198, 0.35355338
        %v2298 = vmul.f32 %v2203, 0.35355338
        %v2299 = vmul.f32 %v2285, 0.35355338
        %v2300 = vmul.f32 %v2290, 0.35355338
        %v2301 = vsel %vm981, %v2293, -inf
        %2302 = vmax.xlane.f32.xlu0 %v2301
        %v2303 = vpop.xlane.xlu0 %2302
        %v2304 = vsel %vm981, %v2294, -inf
        %2305 = vmax.xlane.f32.xlu0 %v2304
        %v2306 = vpop.xlane.xlu0 %2305
        %v2307 = vsel %vm981, %v2295, -inf
        %2308 = vmax.xlane.f32.xlu0 %v2307
        %v2309 = vpop.xlane.xlu0 %2308
        %v2310 = vsel %vm981, %v2296, -inf
        %2311 = vmax.xlane.f32.xlu0 %v2310
        %v2312 = vpop.xlane.xlu0 %2311
        %v2313 = vsel %vm981, %v2297, -inf
        %2314 = vmax.xlane.f32.xlu0 %v2313
        %v2315 = vpop.xlane.xlu0 %2314
        %v2316 = vsel %vm981, %v2298, -inf
        %2317 = vmax.xlane.f32.xlu0 %v2316
        %v2318 = vpop.xlane.xlu0 %2317
        %v2319 = vsel %vm981, %v2299, -inf
        %2320 = vmax.xlane.f32.xlu0 %v2319
        %v2321 = vpop.xlane.xlu0 %2320
        %v2322 = vsel %vm981, %v2300, -inf
        %2323 = vmax.xlane.f32.xlu0 %v2322
        %v2324 = vpop.xlane.xlu0 %2323
        %v2325 = vsub.f32 %v2293, %v2303
        %v2326 = vsub.f32 %v2294, %v2306
        %v2327 = vsub.f32 %v2295, %v2309
        %v2328 = vsub.f32 %v2296, %v2312
        %v2329 = vsub.f32 %v2297, %v2315
        %v2330 = vsub.f32 %v2298, %v2318
        %v2331 = vsub.f32 %v2299, %v2321
        %v2332 = vsub.f32 %v2300, %v2324
        %v2333 = vmul.f32 %v2325, 1.442695
        %v2334 = vpow.pop %v2333
        %v2335 = vmul.f32 %v2326, 1.442695
        %v2336 = vpow.pop %v2335
        %v2337 = vmul.f32 %v2327, 1.442695
        %v2338 = vpow.pop %v2337
        %v2339 = vmul.f32 %v2328, 1.442695
        %v2340 = vpow.pop %v2339
        %v2341 = vmul.f32 %v2329, 1.442695
        %v2342 = vpow.pop %v2341
        %v2343 = vmul.f32 %v2330, 1.442695
        %v2344 = vpow.pop %v2343
        %v2345 = vmul.f32 %v2331, 1.442695
        %v2346 = vpow.pop %v2345
        %v2347 = vmul.f32 %v2332, 1.442695
        %v2348 = vpow.pop %v2347
        %v2349 = vsel %vm981, %v2334, 0.0
        %2350 = vadd.xlane.f32.xlu0 %v2349
        %v2351 = vpop.xlane.xlu0 %2350
        %v2352 = vsel %vm981, %v2336, 0.0
        %2353 = vadd.xlane.f32.xlu0 %v2352
        %v2354 = vpop.xlane.xlu0 %2353
        %v2355 = vsel %vm981, %v2338, 0.0
        %2356 = vadd.xlane.f32.xlu0 %v2355
        %v2357 = vpop.xlane.xlu0 %2356
        %v2358 = vsel %vm981, %v2340, 0.0
        %2359 = vadd.xlane.f32.xlu0 %v2358
        %v2360 = vpop.xlane.xlu0 %2359
        %v2361 = vsel %vm981, %v2342, 0.0
        %2362 = vadd.xlane.f32.xlu0 %v2361
        %v2363 = vpop.xlane.xlu0 %2362
        %v2364 = vsel %vm981, %v2344, 0.0
        %2365 = vadd.xlane.f32.xlu0 %v2364
        %v2366 = vpop.xlane.xlu0 %2365
        %v2367 = vsel %vm981, %v2346, 0.0
        %2368 = vadd.xlane.f32.xlu0 %v2367
        %v2369 = vpop.xlane.xlu0 %2368
        %v2370 = vsel %vm981, %v2348, 0.0
        %2371 = vadd.xlane.f32.xlu0 %v2370
        %v2372 = vpop.xlane.xlu0 %2371
        %v2373 = vrcp.pop %v2351
        %v2374 = vrcp.pop %v2354
        %v2375 = vrcp.pop %v2357
        %v2376 = vrcp.pop %v2360
        %v2377 = vrcp.pop %v2363
        %v2378 = vrcp.pop %v2366
        %v2379 = vrcp.pop %v2369
        %v2380 = vrcp.pop %v2372
        %v2381 = vmul.f32 %v2334, %v2373
        %v2382 = vmul.f32 %v2336, %v2374
        %v2383 = vmul.f32 %v2338, %v2375
        %v2384 = vmul.f32 %v2340, %v2376
        %v2385 = vmul.f32 %v2342, %v2377
        %v2386 = vmul.f32 %v2344, %v2378
        %v2387 = vmul.f32 %v2346, %v2379
        %v2388 = vmul.f32 %v2348, %v2380
        %2389 = vrot.lane.b32.xlu0 %v1923, 64
        %v2390 = vpop.permute.xlu0 %2389
        %2391 = vrot.lane.b32.xlu0 %v1928, 64
        %v2392 = vpop.permute.xlu0 %2391
        %v2396 = vsel %vm981, %v2381, 0
        %v2399 = vsel %vm981, %v2382, 0
        %2401 = vmatprep.subr.mxu0 0.0
        %2402 = vmatpush1.msra.mxu0 %v2390
        %2403 = vmatprep.subr.mxu0 0.0
        %2404 = vmatpush1.msra.mxu0 %v2392
        %2405 = vmatprep.subr.mxu0 0.0
        %2406 = vmatpush1.msra.mxu0 0.0
        %2407 = vmatprep.subr.mxu0 0.0
        %2408 = vmatpush1.msra.mxu0 0.0
        %2409 = vmatprep.subr.mxu0 0.0
        %2410 = vmatpush1.msra.mxu0 0.0
        %2411 = vmatprep.subr.mxu0 0.0
        %2412 = vmatpush1.msra.mxu0 0.0
        %2413 = vmatprep.subr.mxu0 0.0
        %2414 = vmatpush1.msra.mxu0 0.0
        %2415 = vmatprep.subr.mxu0 0.0
        %2416 = vmatpush1.msra.mxu0 0.0
        %2417 = vmatprep.subr.mxu0 0.0
        %2418 = vmatpush1.msra.mxu0 0.0
        %2419 = vmatprep.subr.mxu0 0.0
        %2420 = vmatpush1.msra.mxu0 0.0
        %2421 = vmatprep.subr.mxu0 0.0
        %2422 = vmatpush1.msra.mxu0 0.0
        %2423 = vmatprep.subr.mxu0 0.0
        %2424 = vmatpush1.msra.mxu0 0.0
        %2425 = vmatprep.subr.mxu0 0.0
        %2426 = vmatpush1.msra.mxu0 0.0
        %2427 = vmatprep.subr.mxu0 0.0
        %2428 = vmatpush1.msra.mxu0 0.0
        %2429 = vmatprep.subr.mxu0 0.0
        %2430 = vmatpush1.msra.mxu0 0.0
        %2431 = vmatprep.subr.mxu0 0.0
        %2432 = vmatpush1.msra.mxu0 0.0
        %2433 = vmatprep.subr.mxu0 0.0
        %2434 = vmatpush1.msra.mxu0 0.0
        %2435 = vmatprep.subr.mxu0 0.0
        %2436 = vmatpush1.msra.mxu0 0.0
        %2437 = vmatprep.subr.mxu0 0.0
        %2438 = vmatpush1.msra.mxu0 0.0
        %2439 = vmatprep.subr.mxu0 0.0
        %2440 = vmatpush1.msra.mxu0 0.0
        %2441 = vmatprep.subr.mxu0 0.0
        %2442 = vmatpush1.msra.mxu0 0.0
        %2443 = vmatprep.subr.mxu0 0.0
        %2444 = vmatpush1.msra.mxu0 0.0
        %2445 = vmatprep.subr.mxu0 0.0
        %2446 = vmatpush1.msra.mxu0 0.0
        %2447 = vmatprep.subr.mxu0 0.0
        %2448 = vmatpush1.msra.mxu0 0.0
        %2449 = vmatprep.subr.mxu0 0.0
        %2450 = vmatpush1.msra.mxu0 0.0
        %2451 = vmatprep.subr.mxu0 0.0
        %2452 = vmatpush1.msra.mxu0 0.0
        %2453 = vmatprep.subr.mxu0 0.0
        %2454 = vmatpush1.msra.mxu0 0.0
        %2455 = vmatprep.subr.mxu0 0.0
        %2456 = vmatpush1.msra.mxu0 0.0
        %2457 = vmatprep.subr.mxu0 0.0
        %2458 = vmatpush1.msra.mxu0 0.0
        %2459 = vmatprep.subr.mxu0 0.0
        %2460 = vmatpush1.msra.mxu0 0.0
        %2461 = vmatprep.subr.mxu0 0.0
        %2462 = vmatpush1.msra.mxu0 0.0
        %2463 = vmatprep.subr.mxu0 0.0
        %2464 = vmatpush1.msra.mxu0 0.0
        %2465 = vmatprep.mubr.f32.mxu0 0.0
        %2466 = vmatmul.mubr.f32.gmra.mrb[0].mxu0 %v2396
        %v2467 = vpop.f32.mrb[0].mxu0
        %v2468 = vadd.f32 0.0, %v2467
        %v2469 = vpop.f32.mrb[0].mxu0
        %2470 = vmatprep.mubr.f32.mxu0 0.0
        %2471 = vmatmul.mubr.f32.gmra.mrb[0].mxu0 %v2399
        %v2472 = vpop.f32.mrb[0].mxu0
        %v2473 = vadd.f32 0.0, %v2472
        %v2474 = vpop.f32.mrb[0].mxu0
        %2475 = vdwg.mxu0
        %2476 = vrot.lane.b32.xlu0 %v1934, 64
        %v2477 = vpop.permute.xlu0 %2476
        %2478 = vrot.lane.b32.xlu0 %v1936, 64
        %v2479 = vpop.permute.xlu0 %2478
        %v2483 = vsel %vm981, %v2383, 0
        %v2486 = vsel %vm981, %v2384, 0
        %2488 = vmatprep.subr.mxu0 0.0
        %2489 = vmatpush1.msra.mxu0 %v2477
        %2490 = vmatprep.subr.mxu0 0.0
        %2491 = vmatpush1.msra.mxu0 %v2479
        %2492 = vmatprep.subr.mxu0 0.0
        %2493 = vmatpush1.msra.mxu0 0.0
        %2494 = vmatprep.subr.mxu0 0.0
        %2495 = vmatpush1.msra.mxu0 0.0
        %2496 = vmatprep.subr.mxu0 0.0
        %2497 = vmatpush1.msra.mxu0 0.0
        %2498 = vmatprep.subr.mxu0 0.0
        %2499 = vmatpush1.msra.mxu0 0.0
        %2500 = vmatprep.subr.mxu0 0.0
        %2501 = vmatpush1.msra.mxu0 0.0
        %2502 = vmatprep.subr.mxu0 0.0
        %2503 = vmatpush1.msra.mxu0 0.0
        %2504 = vmatprep.subr.mxu0 0.0
        %2505 = vmatpush1.msra.mxu0 0.0
        %2506 = vmatprep.subr.mxu0 0.0
        %2507 = vmatpush1.msra.mxu0 0.0
        %2508 = vmatprep.subr.mxu0 0.0
        %2509 = vmatpush1.msra.mxu0 0.0
        %2510 = vmatprep.subr.mxu0 0.0
        %2511 = vmatpush1.msra.mxu0 0.0
        %2512 = vmatprep.subr.mxu0 0.0
        %2513 = vmatpush1.msra.mxu0 0.0
        %2514 = vmatprep.subr.mxu0 0.0
        %2515 = vmatpush1.msra.mxu0 0.0
        %2516 = vmatprep.subr.mxu0 0.0
        %2517 = vmatpush1.msra.mxu0 0.0
        %2518 = vmatprep.subr.mxu0 0.0
        %2519 = vmatpush1.msra.mxu0 0.0
        %2520 = vmatprep.subr.mxu0 0.0
        %2521 = vmatpush1.msra.mxu0 0.0
        %2522 = vmatprep.subr.mxu0 0.0
        %2523 = vmatpush1.msra.mxu0 0.0
        %2524 = vmatprep.subr.mxu0 0.0
        %2525 = vmatpush1.msra.mxu0 0.0
        %2526 = vmatprep.subr.mxu0 0.0
        %2527 = vmatpush1.msra.mxu0 0.0
        %2528 = vmatprep.subr.mxu0 0.0
        %2529 = vmatpush1.msra.mxu0 0.0
        %2530 = vmatprep.subr.mxu0 0.0
        %2531 = vmatpush1.msra.mxu0 0.0
        %2532 = vmatprep.subr.mxu0 0.0
        %2533 = vmatpush1.msra.mxu0 0.0
        %2534 = vmatprep.subr.mxu0 0.0
        %2535 = vmatpush1.msra.mxu0 0.0
        %2536 = vmatprep.subr.mxu0 0.0
        %2537 = vmatpush1.msra.mxu0 0.0
        %2538 = vmatprep.subr.mxu0 0.0
        %2539 = vmatpush1.msra.mxu0 0.0
        %2540 = vmatprep.subr.mxu0 0.0
        %2541 = vmatpush1.msra.mxu0 0.0
        %2542 = vmatprep.subr.mxu0 0.0
        %2543 = vmatpush1.msra.mxu0 0.0
        %2544 = vmatprep.subr.mxu0 0.0
        %2545 = vmatpush1.msra.mxu0 0.0
        %2546 = vmatprep.subr.mxu0 0.0
        %2547 = vmatpush1.msra.mxu0 0.0
        %2548 = vmatprep.subr.mxu0 0.0
        %2549 = vmatpush1.msra.mxu0 0.0
        %2550 = vmatprep.subr.mxu0 0.0
        %2551 = vmatpush1.msra.mxu0 0.0
        %2552 = vmatprep.mubr.f32.mxu0 0.0
        %2553 = vmatmul.mubr.f32.gmra.mrb[0].mxu0 %v2483
        %v2554 = vpop.f32.mrb[0].mxu0
        %v2555 = vadd.f32 0.0, %v2554
        %v2556 = vpop.f32.mrb[0].mxu0
        %2557 = vmatprep.mubr.f32.mxu0 0.0
        %2558 = vmatmul.mubr.f32.gmra.mrb[0].mxu0 %v2486
        %v2559 = vpop.f32.mrb[0].mxu0
        %v2560 = vadd.f32 0.0, %v2559
        %v2561 = vpop.f32.mrb[0].mxu0
        %2562 = vdwg.mxu0
        %2563 = vrot.lane.b32.xlu0 %v1938, 64
        %v2564 = vpop.permute.xlu0 %2563
        %2565 = vrot.lane.b32.xlu0 %v1940, 64
        %v2566 = vpop.permute.xlu0 %2565
        %v2570 = vsel %vm981, %v2385, 0
        %v2573 = vsel %vm981, %v2386, 0
        %2575 = vmatprep.subr.mxu0 0.0
        %2576 = vmatpush1.msra.mxu0 %v2564
        %2577 = vmatprep.subr.mxu0 0.0
        %2578 = vmatpush1.msra.mxu0 %v2566
        %2579 = vmatprep.subr.mxu0 0.0
        %2580 = vmatpush1.msra.mxu0 0.0
        %2581 = vmatprep.subr.mxu0 0.0
        %2582 = vmatpush1.msra.mxu0 0.0
        %2583 = vmatprep.subr.mxu0 0.0
        %2584 = vmatpush1.msra.mxu0 0.0
        %2585 = vmatprep.subr.mxu0 0.0
        %2586 = vmatpush1.msra.mxu0 0.0
        %2587 = vmatprep.subr.mxu0 0.0
        %2588 = vmatpush1.msra.mxu0 0.0
        %2589 = vmatprep.subr.mxu0 0.0
        %2590 = vmatpush1.msra.mxu0 0.0
        %2591 = vmatprep.subr.mxu0 0.0
        %2592 = vmatpush1.msra.mxu0 0.0
        %2593 = vmatprep.subr.mxu0 0.0
        %2594 = vmatpush1.msra.mxu0 0.0
        %2595 = vmatprep.subr.mxu0 0.0
        %2596 = vmatpush1.msra.mxu0 0.0
        %2597 = vmatprep.subr.mxu0 0.0
        %2598 = vmatpush1.msra.mxu0 0.0
        %2599 = vmatprep.subr.mxu0 0.0
        %2600 = vmatpush1.msra.mxu0 0.0
        %2601 = vmatprep.subr.mxu0 0.0
        %2602 = vmatpush1.msra.mxu0 0.0
        %2603 = vmatprep.subr.mxu0 0.0
        %2604 = vmatpush1.msra.mxu0 0.0
        %2605 = vmatprep.subr.mxu0 0.0
        %2606 = vmatpush1.msra.mxu0 0.0
        %2607 = vmatprep.subr.mxu0 0.0
        %2608 = vmatpush1.msra.mxu0 0.0
        %2609 = vmatprep.subr.mxu0 0.0
        %2610 = vmatpush1.msra.mxu0 0.0
        %2611 = vmatprep.subr.mxu0 0.0
        %2612 = vmatpush1.msra.mxu0 0.0
        %2613 = vmatprep.subr.mxu0 0.0
        %2614 = vmatpush1.msra.mxu0 0.0
        %2615 = vmatprep.subr.mxu0 0.0
        %2616 = vmatpush1.msra.mxu0 0.0
        %2617 = vmatprep.subr.mxu0 0.0
        %2618 = vmatpush1.msra.mxu0 0.0
        %2619 = vmatprep.subr.mxu0 0.0
        %2620 = vmatpush1.msra.mxu0 0.0
        %2621 = vmatprep.subr.mxu0 0.0
        %2622 = vmatpush1.msra.mxu0 0.0
        %2623 = vmatprep.subr.mxu0 0.0
        %2624 = vmatpush1.msra.mxu0 0.0
        %2625 = vmatprep.subr.mxu0 0.0
        %2626 = vmatpush1.msra.mxu0 0.0
        %2627 = vmatprep.subr.mxu0 0.0
        %2628 = vmatpush1.msra.mxu0 0.0
        %2629 = vmatprep.subr.mxu0 0.0
        %2630 = vmatpush1.msra.mxu0 0.0
        %2631 = vmatprep.subr.mxu0 0.0
        %2632 = vmatpush1.msra.mxu0 0.0
        %2633 = vmatprep.subr.mxu0 0.0
        %2634 = vmatpush1.msra.mxu0 0.0
        %2635 = vmatprep.subr.mxu0 0.0
        %2636 = vmatpush1.msra.mxu0 0.0
        %2637 = vmatprep.subr.mxu0 0.0
        %2638 = vmatpush1.msra.mxu0 0.0
        %2639 = vmatprep.mubr.f32.mxu0 0.0
        %2640 = vmatmul.mubr.f32.gmra.mrb[0].mxu0 %v2570
        %v2641 = vpop.f32.mrb[0].mxu0
        %v2642 = vadd.f32 0.0, %v2641
        %v2643 = vpop.f32.mrb[0].mxu0
        %2644 = vmatprep.mubr.f32.mxu0 0.0
        %2645 = vmatmul.mubr.f32.gmra.mrb[0].mxu0 %v2573
        %v2646 = vpop.f32.mrb[0].mxu0
        %v2647 = vadd.f32 0.0, %v2646
        %v2648 = vpop.f32.mrb[0].mxu0
        %2649 = vdwg.mxu0
        %2650 = vrot.lane.b32.xlu0 %v1942, 64
        %v2651 = vpop.permute.xlu0 %2650
        %2652 = vrot.lane.b32.xlu0 %v1944, 64
        %v2653 = vpop.permute.xlu0 %2652
        %v2657 = vsel %vm981, %v2387, 0
        %v2660 = vsel %vm981, %v2388, 0
        %2662 = vmatprep.subr.mxu0 0.0
        %2663 = vmatpush1.msra.mxu0 %v2651
        %2664 = vmatprep.subr.mxu0 0.0
        %2665 = vmatpush1.msra.mxu0 %v2653
        %2666 = vmatprep.subr.mxu0 0.0
        %2667 = vmatpush1.msra.mxu0 0.0
        %2668 = vmatprep.subr.mxu0 0.0
        %2669 = vmatpush1.msra.mxu0 0.0
        %2670 = vmatprep.subr.mxu0 0.0
        %2671 = vmatpush1.msra.mxu0 0.0
        %2672 = vmatprep.subr.mxu0 0.0
        %2673 = vmatpush1.msra.mxu0 0.0
        %2674 = vmatprep.subr.mxu0 0.0
        %2675 = vmatpush1.msra.mxu0 0.0
        %2676 = vmatprep.subr.mxu0 0.0
        %2677 = vmatpush1.msra.mxu0 0.0
        %2678 = vmatprep.subr.mxu0 0.0
        %2679 = vmatpush1.msra.mxu0 0.0
        %2680 = vmatprep.subr.mxu0 0.0
        %2681 = vmatpush1.msra.mxu0 0.0
        %2682 = vmatprep.subr.mxu0 0.0
        %2683 = vmatpush1.msra.mxu0 0.0
        %2684 = vmatprep.subr.mxu0 0.0
        %2685 = vmatpush1.msra.mxu0 0.0
        %2686 = vmatprep.subr.mxu0 0.0
        %2687 = vmatpush1.msra.mxu0 0.0
        %2688 = vmatprep.subr.mxu0 0.0
        %2689 = vmatpush1.msra.mxu0 0.0
        %2690 = vmatprep.subr.mxu0 0.0
        %2691 = vmatpush1.msra.mxu0 0.0
        %2692 = vmatprep.subr.mxu0 0.0
        %2693 = vmatpush1.msra.mxu0 0.0
        %2694 = vmatprep.subr.mxu0 0.0
        %2695 = vmatpush1.msra.mxu0 0.0
        %2696 = vmatprep.subr.mxu0 0.0
        %2697 = vmatpush1.msra.mxu0 0.0
        %2698 = vmatprep.subr.mxu0 0.0
        %2699 = vmatpush1.msra.mxu0 0.0
        %2700 = vmatprep.subr.mxu0 0.0
        %2701 = vmatpush1.msra.mxu0 0.0
        %2702 = vmatprep.subr.mxu0 0.0
        %2703 = vmatpush1.msra.mxu0 0.0
        %2704 = vmatprep.subr.mxu0 0.0
        %2705 = vmatpush1.msra.mxu0 0.0
        %2706 = vmatprep.subr.mxu0 0.0
        %2707 = vmatpush1.msra.mxu0 0.0
        %2708 = vmatprep.subr.mxu0 0.0
        %2709 = vmatpush1.msra.mxu0 0.0
        %2710 = vmatprep.subr.mxu0 0.0
        %2711 = vmatpush1.msra.mxu0 0.0
        %2712 = vmatprep.subr.mxu0 0.0
        %2713 = vmatpush1.msra.mxu0 0.0
        %2714 = vmatprep.subr.mxu0 0.0
        %2715 = vmatpush1.msra.mxu0 0.0
        %2716 = vmatprep.subr.mxu0 0.0
        %2717 = vmatpush1.msra.mxu0 0.0
        %2718 = vmatprep.subr.mxu0 0.0
        %2719 = vmatpush1.msra.mxu0 0.0
        %2720 = vmatprep.subr.mxu0 0.0
        %2721 = vmatpush1.msra.mxu0 0.0
        %2722 = vmatprep.subr.mxu0 0.0
        %2723 = vmatpush1.msra.mxu0 0.0
        %2724 = vmatprep.subr.mxu0 0.0
        %2725 = vmatpush1.msra.mxu0 0.0
        %2726 = vmatprep.mubr.f32.mxu0 0.0
        %2727 = vmatmul.mubr.f32.gmra.mrb[0].mxu0 %v2657
        %v2728 = vpop.f32.mrb[0].mxu0
        %v2729 = vadd.f32 0.0, %v2728
        %v2730 = vpop.f32.mrb[0].mxu0
        %2731 = vmatprep.mubr.f32.mxu0 0.0
        %2732 = vmatmul.mubr.f32.gmra.mrb[0].mxu0 %v2660
        %v2733 = vpop.f32.mrb[0].mxu0
        %v2734 = vadd.f32 0.0, %v2733
        %v2735 = vpop.f32.mrb[0].mxu0
        %2736 = vdwg.mxu0
        %2739 = vrot.lane.b32.xlu0 %v2555, 8
        %v2740 = vpop.permute.xlu0 %2739
        %2741 = vrot.lane.b32.xlu0 %v2560, 8
        %v2742 = vpop.permute.xlu0 %2741
        %2747 = vrot.lane.b32.xlu0 %v2642, 16
        %v2748 = vpop.permute.xlu0 %2747
        %2749 = vrot.lane.b32.xlu0 %v2647, 16
        %v2750 = vpop.permute.xlu0 %2749
        %2755 = vrot.lane.b32.xlu0 %v2729, 24
        %v2756 = vpop.permute.xlu0 %2755
        %2757 = vrot.lane.b32.xlu0 %v2734, 24
        %v2758 = vpop.permute.xlu0 %2757
        %v2761 = vsel %vm628, %v2468, %v2740
        %v2762 = vsel %vm628, %v2473, %v2742
        %v2763 = vsel %vm981, %v2761, %v2748
        %v2764 = vsel %vm981, %v2762, %v2750
        %v2765 = vsel %vm1446, %v2763, %v2756
        %v2766 = vsel %vm1446, %v2764, %v2758
        %s2767 = scalar_lea.vmem %s3, 32
        %v2768 = vld [vmem:[%s2767] sm:$0xff]
        %v2769 = vld [vmem:[%s2767 + $0x8] sm:$0xff]
        %v2770 = vld [vmem:[%s2767 + $0x10] sm:$0xff]
        %v2771 = vld [vmem:[%s2767 + $0x18] sm:$0xff]
        %s2772 = scalar_lea.vmem %s4, 1
        %v2773 = vld [vmem:[%s2772] sm:$0x1]
        %v2775 = vlaneseq
        %v2776 = vshrl.u32 %v2775, 7
        %v2777 = vsub.s32 0, %v2776
        %v2778 = vrot.slane %v2773, %v2777
        %v2781 = vsel %vm528, %v2765, 0
        %v2784 = vsel %vm528, %v2766, 0
        %2786 = vmatprep.subr.mxu0 0.0
        %2787 = vmatpush1.msra.mxu0 %v2768
        %2788 = vmatprep.subr.mxu0 0.0
        %2789 = vmatpush1.msra.mxu0 %v2769
        %2790 = vmatprep.subr.mxu0 0.0
        %2791 = vmatpush1.msra.mxu0 %v2770
        %2792 = vmatprep.subr.mxu0 0.0
        %2793 = vmatpush1.msra.mxu0 %v2771
        %2794 = vmatprep.subr.mxu0 0.0
        %2795 = vmatpush1.msra.mxu0 0.0
        %2796 = vmatprep.subr.mxu0 0.0
        %2797 = vmatpush1.msra.mxu0 0.0
        %2798 = vmatprep.subr.mxu0 0.0
        %2799 = vmatpush1.msra.mxu0 0.0
        %2800 = vmatprep.subr.mxu0 0.0
        %2801 = vmatpush1.msra.mxu0 0.0
        %2802 = vmatprep.subr.mxu0 0.0
        %2803 = vmatpush1.msra.mxu0 0.0
        %2804 = vmatprep.subr.mxu0 0.0
        %2805 = vmatpush1.msra.mxu0 0.0
        %2806 = vmatprep.subr.mxu0 0.0
        %2807 = vmatpush1.msra.mxu0 0.0
        %2808 = vmatprep.subr.mxu0 0.0
        %2809 = vmatpush1.msra.mxu0 0.0
        %2810 = vmatprep.subr.mxu0 0.0
        %2811 = vmatpush1.msra.mxu0 0.0
        %2812 = vmatprep.subr.mxu0 0.0
        %2813 = vmatpush1.msra.mxu0 0.0
        %2814 = vmatprep.subr.mxu0 0.0
        %2815 = vmatpush1.msra.mxu0 0.0
        %2816 = vmatprep.subr.mxu0 0.0
        %2817 = vmatpush1.msra.mxu0 0.0
        %2818 = vmatprep.subr.mxu0 0.0
        %2819 = vmatpush1.msra.mxu0 0.0
        %2820 = vmatprep.subr.mxu0 0.0
        %2821 = vmatpush1.msra.mxu0 0.0
        %2822 = vmatprep.subr.mxu0 0.0
        %2823 = vmatpush1.msra.mxu0 0.0
        %2824 = vmatprep.subr.mxu0 0.0
        %2825 = vmatpush1.msra.mxu0 0.0
        %2826 = vmatprep.subr.mxu0 0.0
        %2827 = vmatpush1.msra.mxu0 0.0
        %2828 = vmatprep.subr.mxu0 0.0
        %2829 = vmatpush1.msra.mxu0 0.0
        %2830 = vmatprep.subr.mxu0 0.0
        %2831 = vmatpush1.msra.mxu0 0.0
        %2832 = vmatprep.subr.mxu0 0.0
        %2833 = vmatpush1.msra.mxu0 0.0
        %2834 = vmatprep.subr.mxu0 0.0
        %2835 = vmatpush1.msra.mxu0 0.0
        %2836 = vmatprep.subr.mxu0 0.0
        %2837 = vmatpush1.msra.mxu0 0.0
        %2838 = vmatprep.subr.mxu0 0.0
        %2839 = vmatpush1.msra.mxu0 0.0
        %2840 = vmatprep.subr.mxu0 0.0
        %2841 = vmatpush1.msra.mxu0 0.0
        %2842 = vmatprep.subr.mxu0 0.0
        %2843 = vmatpush1.msra.mxu0 0.0
        %2844 = vmatprep.subr.mxu0 0.0
        %2845 = vmatpush1.msra.mxu0 0.0
        %2846 = vmatprep.subr.mxu0 0.0
        %2847 = vmatpush1.msra.mxu0 0.0
        %2848 = vmatprep.subr.mxu0 0.0
        %2849 = vmatpush1.msra.mxu0 0.0
        %2850 = vmatprep.mubr.f32.mxu0 0.0
        %2851 = vmatmul.mubr.f32.gmra.mrb[0].mxu0 %v2781
        %v2852 = vpop.f32.mrb[0].mxu0
        %v2853 = vadd.f32 %v2778, %v2852
        %v2854 = vpop.f32.mrb[0].mxu0
        %2855 = vmatprep.mubr.f32.mxu0 0.0
        %2856 = vmatmul.mubr.f32.gmra.mrb[0].mxu0 %v2784
        %v2857 = vpop.f32.mrb[0].mxu0
        %v2858 = vadd.f32 %v2778, %v2857
        %v2859 = vpop.f32.mrb[0].mxu0
        %2860 = vdwg.mxu0
        %v2861 = vadd.f32 %v1835, %v2853
        %v2862 = vadd.f32 %v1836, %v2858
        %s2863 = scalar_lea.vmem %s5, 1
        %v2864 = vld [vmem:[%s2863] sm:$0x1]
        %s2865 = scalar_lea.vmem %s6, 1
        %v2866 = vld [vmem:[%s2865] sm:$0x1]
        %v2867 = vsel %vm528, %v2861, 0.0
        %2868 = vadd.xlane.f32.xlu0 %v2867
        %v2869 = vpop.xlane.xlu0 %2868
        %v2870 = vsel %vm528, %v2862, 0.0
        %2871 = vadd.xlane.f32.xlu0 %v2870
        %v2872 = vpop.xlane.xlu0 %2871
        %v2873 = vmul.f32 %v2869, %v1551
        %v2874 = vmul.f32 %v2872, %v1551
        %v2875 = vmul.f32 %v2861, %v2861
        %v2876 = vmul.f32 %v2862, %v2862
        %v2877 = vsel %vm528, %v2875, 0.0
        %2878 = vadd.xlane.f32.xlu0 %v2877
        %v2879 = vpop.xlane.xlu0 %2878
        %v2880 = vsel %vm528, %v2876, 0.0
        %2881 = vadd.xlane.f32.xlu0 %v2880
        %v2882 = vpop.xlane.xlu0 %2881
        %v2883 = vmul.f32 %v2879, %v1551
        %v2884 = vmul.f32 %v2882, %v1551
        %v2885 = vmul.f32 %v2873, %v2873
        %v2886 = vmul.f32 %v2874, %v2874
        %v2887 = vsub.f32 %v2883, %v2885
        %v2888 = vsub.f32 %v2884, %v2886
        %v2889 = vmax.f32 %v2887, 0.0
        %v2890 = vmax.f32 %v2888, 0.0
        %v2891 = vsub.f32 %v2861, %v2873
        %v2892 = vsub.f32 %v2862, %v2874
        %v2893 = vadd.f32 %v2889, 1e-05
        %v2894 = vadd.f32 %v2890, 1e-05
        %v2895 = vrsqrt.pop %v2893
        %v2896 = vrsqrt.pop %v2894
        %v2897 = vmul.f32 %v2891, %v2895
        %v2898 = vmul.f32 %v2892, %v2896
        %v2900 = vlaneseq
        %v2901 = vshrl.u32 %v2900, 7
        %v2902 = vsub.s32 0, %v2901
        %v2903 = vrot.slane %v2864, %v2902
        %v2905 = vmul.f32 %v2897, %v2903
        %v2906 = vmul.f32 %v2898, %v2903
        %v2908 = vlaneseq
        %v2909 = vshrl.u32 %v2908, 7
        %v2910 = vsub.s32 0, %v2909
        %v2911 = vrot.slane %v2866, %v2910
        %v2913 = vadd.f32 %v2905, %v2911
        %v2914 = vadd.f32 %v2906, %v2911
        %s2915 = scalar_lea.vmem %s7, 32
        %v2916 = vld [vmem:[%s2915] sm:$0xff]
        %v2917 = vld [vmem:[%s2915 + $0x8] sm:$0xff]
        %v2918 = vld [vmem:[%s2915 + $0x10] sm:$0xff]
        %v2919 = vld [vmem:[%s2915 + $0x18] sm:$0xff]
        %s2920 = scalar_lea.vmem %s8, 1
        %v2921 = vld [vmem:[%s2920] sm:$0x1]
        %v2923 = vlaneseq
        %v2924 = vshrl.u32 %v2923, 7
        %v2925 = vsub.s32 0, %v2924
        %v2926 = vrot.slane %v2921, %v2925
        %v2929 = vsel %vm528, %v2913, 0
        %v2932 = vsel %vm528, %v2914, 0
        %2934 = vmatprep.subr.mxu0 0.0
        %2935 = vmatpush1.msra.mxu0 %v2916
        %2936 = vmatprep.subr.mxu0 0.0
        %2937 = vmatpush1.msra.mxu0 %v2917
        %2938 = vmatprep.subr.mxu0 0.0
        %2939 = vmatpush1.msra.mxu0 %v2918
        %2940 = vmatprep.subr.mxu0 0.0
        %2941 = vmatpush1.msra.mxu0 %v2919
        %2942 = vmatprep.subr.mxu0 0.0
        %2943 = vmatpush1.msra.mxu0 0.0
        %2944 = vmatprep.subr.mxu0 0.0
        %2945 = vmatpush1.msra.mxu0 0.0
        %2946 = vmatprep.subr.mxu0 0.0
        %2947 = vmatpush1.msra.mxu0 0.0
        %2948 = vmatprep.subr.mxu0 0.0
        %2949 = vmatpush1.msra.mxu0 0.0
        %2950 = vmatprep.subr.mxu0 0.0
        %2951 = vmatpush1.msra.mxu0 0.0
        %2952 = vmatprep.subr.mxu0 0.0
        %2953 = vmatpush1.msra.mxu0 0.0
        %2954 = vmatprep.subr.mxu0 0.0
        %2955 = vmatpush1.msra.mxu0 0.0
        %2956 = vmatprep.subr.mxu0 0.0
        %2957 = vmatpush1.msra.mxu0 0.0
        %2958 = vmatprep.subr.mxu0 0.0
        %2959 = vmatpush1.msra.mxu0 0.0
        %2960 = vmatprep.subr.mxu0 0.0
        %2961 = vmatpush1.msra.mxu0 0.0
        %2962 = vmatprep.subr.mxu0 0.0
        %2963 = vmatpush1.msra.mxu0 0.0
        %2964 = vmatprep.subr.mxu0 0.0
        %2965 = vmatpush1.msra.mxu0 0.0
        %2966 = vmatprep.subr.mxu0 0.0
        %2967 = vmatpush1.msra.mxu0 0.0
        %2968 = vmatprep.subr.mxu0 0.0
        %2969 = vmatpush1.msra.mxu0 0.0
        %2970 = vmatprep.subr.mxu0 0.0
        %2971 = vmatpush1.msra.mxu0 0.0
        %2972 = vmatprep.subr.mxu0 0.0
        %2973 = vmatpush1.msra.mxu0 0.0
        %2974 = vmatprep.subr.mxu0 0.0
        %2975 = vmatpush1.msra.mxu0 0.0
        %2976 = vmatprep.subr.mxu0 0.0
        %2977 = vmatpush1.msra.mxu0 0.0
        %2978 = vmatprep.subr.mxu0 0.0
        %2979 = vmatpush1.msra.mxu0 0.0
        %2980 = vmatprep.subr.mxu0 0.0
        %2981 = vmatpush1.msra.mxu0 0.0
        %2982 = vmatprep.subr.mxu0 0.0
        %2983 = vmatpush1.msra.mxu0 0.0
        %2984 = vmatprep.subr.mxu0 0.0
        %2985 = vmatpush1.msra.mxu0 0.0
        %2986 = vmatprep.subr.mxu0 0.0
        %2987 = vmatpush1.msra.mxu0 0.0
        %2988 = vmatprep.subr.mxu0 0.0
        %2989 = vmatpush1.msra.mxu0 0.0
        %2990 = vmatprep.subr.mxu0 0.0
        %2991 = vmatpush1.msra.mxu0 0.0
        %2992 = vmatprep.subr.mxu0 0.0
        %2993 = vmatpush1.msra.mxu0 0.0
        %2994 = vmatprep.subr.mxu0 0.0
        %2995 = vmatpush1.msra.mxu0 0.0
        %2996 = vmatprep.subr.mxu0 0.0
        %2997 = vmatpush1.msra.mxu0 0.0
        %2998 = vmatprep.mubr.f32.mxu0 0.0
        %2999 = vmatmul.mubr.f32.gmra.mrb[0].mxu0 %v2929
        %v3000 = vpop.f32.mrb[0].mxu0
        %v3001 = vadd.f32 %v2926, %v3000
        %v3002 = vpop.f32.mrb[0].mxu0
        %3003 = vmatprep.mubr.f32.mxu0 0.0
        %3004 = vmatmul.mubr.f32.gmra.mrb[0].mxu0 %v2932
        %v3005 = vpop.f32.mrb[0].mxu0
        %v3006 = vadd.f32 %v2926, %v3005
        %v3007 = vpop.f32.mrb[0].mxu0
        %3008 = vdwg.mxu0
        %v3009 = vmax.f32 %v3001, 0.0
        %v3010 = vmax.f32 %v3006, 0.0
        %s3011 = scalar_lea.vmem %s9, 64
        %v3012 = vld [vmem:[%s3011] sm:$0xff]
        %v3013 = vld [vmem:[%s3011 + $0x8] sm:$0xff]
        %v3014 = vld [vmem:[%s3011 + $0x10] sm:$0xff]
        %v3015 = vld [vmem:[%s3011 + $0x18] sm:$0xff]
        %v3016 = vld [vmem:[%s3011 + $0x20] sm:$0xff]
        %v3017 = vld [vmem:[%s3011 + $0x28] sm:$0xff]
        %v3018 = vld [vmem:[%s3011 + $0x30] sm:$0xff]
        %v3019 = vld [vmem:[%s3011 + $0x38] sm:$0xff]
        %s3020 = scalar_lea.vmem %s10, 1
        %v3021 = vld [vmem:[%s3020] sm:$0x1]
        %v3023 = vlaneseq
        %v3024 = vshrl.u32 %v3023, 7
        %v3025 = vsub.s32 0, %v3024
        %v3026 = vrot.slane %v3021, %v3025
        %v3029 = vsel %vm1703, %v3009, 0
        %v3032 = vsel %vm1703, %v3010, 0
        %3034 = vmatprep.subr.mxu0 0.0
        %3035 = vmatpush1.msra.mxu0 %v3012
        %3036 = vmatprep.subr.mxu0 0.0
        %3037 = vmatpush1.msra.mxu0 %v3013
        %3038 = vmatprep.subr.mxu0 0.0
        %3039 = vmatpush1.msra.mxu0 %v3014
        %3040 = vmatprep.subr.mxu0 0.0
        %3041 = vmatpush1.msra.mxu0 %v3015
        %3042 = vmatprep.subr.mxu0 0.0
        %3043 = vmatpush1.msra.mxu0 %v3016
        %3044 = vmatprep.subr.mxu0 0.0
        %3045 = vmatpush1.msra.mxu0 %v3017
        %3046 = vmatprep.subr.mxu0 0.0
        %3047 = vmatpush1.msra.mxu0 %v3018
        %3048 = vmatprep.subr.mxu0 0.0
        %3049 = vmatpush1.msra.mxu0 %v3019
        %3050 = vmatprep.subr.mxu0 0.0
        %3051 = vmatpush1.msra.mxu0 0.0
        %3052 = vmatprep.subr.mxu0 0.0
        %3053 = vmatpush1.msra.mxu0 0.0
        %3054 = vmatprep.subr.mxu0 0.0
        %3055 = vmatpush1.msra.mxu0 0.0
        %3056 = vmatprep.subr.mxu0 0.0
        %3057 = vmatpush1.msra.mxu0 0.0
        %3058 = vmatprep.subr.mxu0 0.0
        %3059 = vmatpush1.msra.mxu0 0.0
        %3060 = vmatprep.subr.mxu0 0.0
        %3061 = vmatpush1.msra.mxu0 0.0
        %3062 = vmatprep.subr.mxu0 0.0
        %3063 = vmatpush1.msra.mxu0 0.0
        %3064 = vmatprep.subr.mxu0 0.0
        %3065 = vmatpush1.msra.mxu0 0.0
        %3066 = vmatprep.subr.mxu0 0.0
        %3067 = vmatpush1.msra.mxu0 0.0
        %3068 = vmatprep.subr.mxu0 0.0
        %3069 = vmatpush1.msra.mxu0 0.0
        %3070 = vmatprep.subr.mxu0 0.0
        %3071 = vmatpush1.msra.mxu0 0.0
        %3072 = vmatprep.subr.mxu0 0.0
        %3073 = vmatpush1.msra.mxu0 0.0
        %3074 = vmatprep.subr.mxu0 0.0
        %3075 = vmatpush1.msra.mxu0 0.0
        %3076 = vmatprep.subr.mxu0 0.0
        %3077 = vmatpush1.msra.mxu0 0.0
        %3078 = vmatprep.subr.mxu0 0.0
        %3079 = vmatpush1.msra.mxu0 0.0
        %3080 = vmatprep.subr.mxu0 0.0
        %3081 = vmatpush1.msra.mxu0 0.0
        %3082 = vmatprep.subr.mxu0 0.0
        %3083 = vmatpush1.msra.mxu0 0.0
        %3084 = vmatprep.subr.mxu0 0.0
        %3085 = vmatpush1.msra.mxu0 0.0
        %3086 = vmatprep.subr.mxu0 0.0
        %3087 = vmatpush1.msra.mxu0 0.0
        %3088 = vmatprep.subr.mxu0 0.0
        %3089 = vmatpush1.msra.mxu0 0.0
        %3090 = vmatprep.subr.mxu0 0.0
        %3091 = vmatpush1.msra.mxu0 0.0
        %3092 = vmatprep.subr.mxu0 0.0
        %3093 = vmatpush1.msra.mxu0 0.0
        %3094 = vmatprep.subr.mxu0 0.0
        %3095 = vmatpush1.msra.mxu0 0.0
        %3096 = vmatprep.subr.mxu0 0.0
        %3097 = vmatpush1.msra.mxu0 0.0
        %3098 = vmatprep.mubr.f32.mxu0 0.0
        %3099 = vmatmul.mubr.f32.gmra.mrb[0].mxu0 %v3029
        %v3100 = vpop.f32.mrb[0].mxu0
        %v3101 = vadd.f32 %v3026, %v3100
        %v3102 = vpop.f32.mrb[0].mxu0
        %3103 = vmatprep.mubr.f32.mxu0 0.0
        %3104 = vmatmul.mubr.f32.gmra.mrb[0].mxu0 %v3032
        %v3105 = vpop.f32.mrb[0].mxu0
        %v3106 = vadd.f32 %v3026, %v3105
        %v3107 = vpop.f32.mrb[0].mxu0
        %3108 = vdwg.mxu0
        %v3109 = vadd.f32 %v2913, %v3101
        %v3110 = vadd.f32 %v2914, %v3106
        %s3111 = scalar_lea.vmem %s11, 1
        %v3112 = vld [vmem:[%s3111] sm:$0x1]
        %s3113 = scalar_lea.vmem %s12, 1
        %v3114 = vld [vmem:[%s3113] sm:$0x1]
        %v3115 = vsel %vm528, %v3109, 0.0
        %3116 = vadd.xlane.f32.xlu0 %v3115
        %v3117 = vpop.xlane.xlu0 %3116
        %v3118 = vsel %vm528, %v3110, 0.0
        %3119 = vadd.xlane.f32.xlu0 %v3118
        %v3120 = vpop.xlane.xlu0 %3119
        %v3121 = vmul.f32 %v3117, %v1551
        %v3122 = vmul.f32 %v3120, %v1551
        %v3123 = vmul.f32 %v3109, %v3109
        %v3124 = vmul.f32 %v3110, %v3110
        %v3125 = vsel %vm528, %v3123, 0.0
        %3126 = vadd.xlane.f32.xlu0 %v3125
        %v3127 = vpop.xlane.xlu0 %3126
        %v3128 = vsel %vm528, %v3124, 0.0
        %3129 = vadd.xlane.f32.xlu0 %v3128
        %v3130 = vpop.xlane.xlu0 %3129
        %v3131 = vmul.f32 %v3127, %v1551
        %v3132 = vmul.f32 %v3130, %v1551
        %v3133 = vmul.f32 %v3121, %v3121
        %v3134 = vmul.f32 %v3122, %v3122
        %v3135 = vsub.f32 %v3131, %v3133
        %v3136 = vsub.f32 %v3132, %v3134
        %v3137 = vmax.f32 %v3135, 0.0
        %v3138 = vmax.f32 %v3136, 0.0
        %v3139 = vsub.f32 %v3109, %v3121
        %v3140 = vsub.f32 %v3110, %v3122
        %v3141 = vadd.f32 %v3137, 1e-05
        %v3142 = vadd.f32 %v3138, 1e-05
        %v3143 = vrsqrt.pop %v3141
        %v3144 = vrsqrt.pop %v3142
        %v3145 = vmul.f32 %v3139, %v3143
        %v3146 = vmul.f32 %v3140, %v3144
        %v3148 = vlaneseq
        %v3149 = vshrl.u32 %v3148, 7
        %v3150 = vsub.s32 0, %v3149
        %v3151 = vrot.slane %v3112, %v3150
        %v3153 = vmul.f32 %v3145, %v3151
        %v3154 = vmul.f32 %v3146, %v3151
        %v3156 = vlaneseq
        %v3157 = vshrl.u32 %v3156, 7
        %v3158 = vsub.s32 0, %v3157
        %v3159 = vrot.slane %v3114, %v3158
        %v3161 = vadd.f32 %v3153, %v3159
        %v3162 = vadd.f32 %v3154, %v3159
        %v3163 = vld [vmem:[%s13] sm:$0x1]
        %v3164 = vld [vmem:[%s14] sm:$0x1]
        %v3165 = vsel %vm528, %v3161, 0.0
        %3166 = vadd.xlane.f32.xlu0 %v3165
        %v3167 = vpop.xlane.xlu0 %3166
        %v3168 = vsel %vm528, %v3162, 0.0
        %3169 = vadd.xlane.f32.xlu0 %v3168
        %v3170 = vpop.xlane.xlu0 %3169
        %v3171 = vmul.f32 %v3167, %v1551
        %v3172 = vmul.f32 %v3170, %v1551
        %v3173 = vmul.f32 %v3161, %v3161
        %v3174 = vmul.f32 %v3162, %v3162
        %v3175 = vsel %vm528, %v3173, 0.0
        %3176 = vadd.xlane.f32.xlu0 %v3175
        %v3177 = vpop.xlane.xlu0 %3176
        %v3178 = vsel %vm528, %v3174, 0.0
        %3179 = vadd.xlane.f32.xlu0 %v3178
        %v3180 = vpop.xlane.xlu0 %3179
        %v3181 = vmul.f32 %v3177, %v1551
        %v3182 = vmul.f32 %v3180, %v1551
        %v3183 = vmul.f32 %v3171, %v3171
        %v3184 = vmul.f32 %v3172, %v3172
        %v3185 = vsub.f32 %v3181, %v3183
        %v3186 = vsub.f32 %v3182, %v3184
        %v3187 = vmax.f32 %v3185, 0.0
        %v3188 = vmax.f32 %v3186, 0.0
        %v3189 = vsub.f32 %v3161, %v3171
        %v3190 = vsub.f32 %v3162, %v3172
        %v3191 = vadd.f32 %v3187, 1e-05
        %v3192 = vadd.f32 %v3188, 1e-05
        %v3193 = vrsqrt.pop %v3191
        %v3194 = vrsqrt.pop %v3192
        %v3195 = vmul.f32 %v3189, %v3193
        %v3196 = vmul.f32 %v3190, %v3194
        %v3198 = vlaneseq
        %v3199 = vshrl.u32 %v3198, 7
        %v3200 = vsub.s32 0, %v3199
        %v3201 = vrot.slane %v3163, %v3200
        %v3203 = vmul.f32 %v3195, %v3201
        %v3204 = vmul.f32 %v3196, %v3201
        %v3206 = vlaneseq
        %v3207 = vshrl.u32 %v3206, 7
        %v3208 = vsub.s32 0, %v3207
        %v3209 = vrot.slane %v3164, %v3208
        %v3211 = vadd.f32 %v3203, %v3209
        %v3212 = vadd.f32 %v3204, %v3209
        %3213 = vst.msk [vmem:[%s512] sm:$0xff] %vm528, %v3211
        %3214 = vst.msk [vmem:[%s512 + $0x8] sm:$0xff] %vm528, %v3212
        %s3215 = sand.u32 %s360, 1
        %s3216 = scalar_lea.sflag [#allocation4], %s3215
        %s3217 = sand.u32 %s360, 1
        %s3218 = smul.addr %s3217, 16
        %s3219 = scalar_lea.vmem [#allocation5], %s3218
        // Predicated region
        $region85: #{tpu_custom_call.1} parent=79 // pred_check
          %p3220 = pneg %p370
        $region86: #{tpu_custom_call.1} parent=79 // pred_check_branch
          %3222 = sbr.rel (%p3220) target = $region88
        $region87: #{tpu_custom_call.1} parent=79 // pred_region
          %s3223 = smul.u32 2, %s32
          %s3225 = ssub.s32 256, 256
          %3226 = vsyncadd %s3216, %s3225
          %s3227 = smul.addr %s3223, 128
          %s3228 = scalar_lea.hbm %s15, %s3227
          %s3229 = sshll.u32 %s3219, 4
          %s3230 = int_to_ptr.vmem [resolvable:$true] %s3229
          %3235 = dma.vmem_to_hbm [thread:$0]  %s3230, 256, %s3228, %s3216, 128, 128, 8
        $region88: #{tpu_custom_call.1} parent=79 // pred_fallthru
          _
      $region80: #{tpu_custom_call.1} parent=5 // pred_fallthru
        _
      %p3236 = scmp.le.s32.totalorder 2, %s27
      // Predicated region
      $region89: #{tpu_custom_call.1} parent=5 // pred_check
        %p3237 = pneg %p3236
      $region90: #{tpu_custom_call.1} parent=5 // pred_check_branch
        %3239 = sbr.rel (%p3237) target = $region92
      $region91: #{tpu_custom_call.1} parent=5 // pred_region
        %s3240 = ssub.s32 %s27, 2
        // Predicated region
        $region93: #{tpu_custom_call.1} parent=91 // pred_check
          %p3241 = pneg %p376
        $region94: #{tpu_custom_call.1} parent=91 // pred_check_branch
          %3243 = sbr.rel (%p3241) target = $region96
        $region95: #{tpu_custom_call.1} parent=91 // pred_region
          %s3244 = sand.u32 %s361, 1
          %s3245 = scalar_lea.sflag [#allocation4], %s3244
          %s3246 = sand.u32 %s361, 1
          %s3247 = smul.addr %s3246, 16
          %s3248 = scalar_lea.vmem [#allocation5], %s3247
          %3249 = dma.done %s3245, 256
        $region96: #{tpu_custom_call.1} parent=91 // pred_fallthru
          _
      $region92: #{tpu_custom_call.1} parent=5 // pred_fallthru
        _
    $region6: #{tpu_custom_call.1} parent=1 // loop_footer
      %s31 = sadd.s32 1, %s27
    $region7: #{tpu_custom_call.1} parent=1 // loop_footer_branch
      %26 = sbr.rel target = $region3
    $region8: #{tpu_custom_call.1} parent=1 // loop_exit
      _
    %3250 = vsyncpa [#allocation3], 1
    %s3251 = scalar_lea.sflag [#allocation3], 1
    %3252 = vsyncpa %s3251, 1
    %3253 = vsyncpa [#allocation4], 1
    %s3254 = scalar_lea.sflag [#allocation4], 1
    %3255 = vsyncpa %s3254, 1

</llo_original>
